<compile_context>
chip_gen: v6e
topology: v6e:2x2x1
jax: 0.10.0
libtpu: 0.0.40
codegen_flags: <defaults>
</compile_context>

<pallas_src>
import jax
import jax.numpy as jnp
from jax.experimental import pallas as pl
from jax.experimental.pallas import tpu as pltpu

# ---- config (mirrors the PyTorch module's config) ---------------------------
BATCH = 2
SEQ = 16
HIDDEN = 32
VOCAB = 25
NUM_LAYERS = 2
KSIZE = 9
DIL = 2
PAD = 8
MLP_HID = 512
LN_EPS = 1e-5
HIDDEN_ACT = "relu"   # config.hidden_act

GROUPS = 4                      # lane groups: GROUPS * HIDDEN = 128 lanes
KPAD = 3 * GROUPS               # conv taps padded 9 -> 12 (zero weight rows)
NSLAB = KPAD // GROUPS          # 3 aligned slab reads per conv
SEG = SEQ + 2 * PAD             # 32 scratch rows per batch segment
NCONV = 2 * NUM_LAYERS          # 4 convs total


# ---- shared math helpers (pure jnp: usable in-kernel and in the reference) --
def _activation(x):
    if HIDDEN_ACT == "relu":
        return jnp.maximum(x, 0.0)
    elif HIDDEN_ACT == "gelu":
        return jax.nn.gelu(x, approximate=False)   # matches torch F.gelu (erf)
    raise RuntimeError("Activation function not implemented")


def _layernorm(y, gamma, beta):
    mu = jnp.mean(y, axis=-1, keepdims=True)
    var = jnp.mean(jnp.square(y - mu), axis=-1, keepdims=True)
    return (y - mu) * jax.lax.rsqrt(var + LN_EPS) * gamma + beta


# ---- fused kernel ------------------------------------------------------------
def fused_forward_kernel(tok_ref, emb_ref, wconv_ref, lng_ref, lnb_ref,
                         mw1_ref, mb1_ref, mw2_ref, mb2_ref,
                         o_ref, xpad_ref):
    # TODO(synk): input_mask path (x * mask before each conv) not wired; the
    # model is exercised with input_mask=None, matching the default forward().

    def write_activation(y):
        # y: (B*L, H) f32.  Store the zero-padded activation replicated into
        # the 4 lane groups of the scratch, group j pre-shifted up by j*DIL
        # rows, so the slab reads in conv() below are sublane/lane aligned.
        groups = []
        for j in range(GROUPS):
            top = PAD - j * DIL                    # 8, 6, 4, 2
            parts = []
            for b in range(BATCH):
                parts.append(jnp.zeros((top, HIDDEN), jnp.float32))
                parts.append(y[b * SEQ:(b + 1) * SEQ, :])
                parts.append(jnp.zeros((SEG - top - SEQ, HIDDEN), jnp.float32))
            groups.append(jnp.concatenate(parts, axis=0))        # (B*SEG, H)
        xpad_ref[...] = jnp.concatenate(groups, axis=-1)         # (B*SEG, 4H)

    def conv(ci):
        # One dilated conv (K=9, dil=2, pad=8, bias=False) over all B*L rows
        # as a single im2col matmul against the packed (384, 128) bf16 tile.
        per_batch = []
        for b in range(BATCH):
            base = b * SEG
            slabs = [xpad_ref[base + GROUPS * DIL * s:
                              base + GROUPS * DIL * s + SEQ, :]
                     for s in range(NSLAB)]                       # 3 x (L, 128)
            per_batch.append(jnp.concatenate(slabs, axis=-1))     # (L, 384)
        xcol = jnp.concatenate(per_batch, axis=0)                 # (B*L, 384)
        out = jnp.dot(xcol.astype(jnp.bfloat16), wconv_ref[...],
                      preferred_element_type=jnp.float32)         # (B*L, 128)
        return out[:, ci * HIDDEN:(ci + 1) * HIDDEN]              # (B*L, H)

    # --- embedding: one-hot matmul gather on the resident 25x32 table --------
    tok = tok_ref[...]                                            # (B*L, 1) i32
    iota = jax.lax.broadcasted_iota(jnp.int32, (BATCH * SEQ, VOCAB), 1)
    onehot = (tok == iota).astype(jnp.float32)                    # (B*L, V)
    x = jnp.dot(onehot, emb_ref[...],
                preferred_element_type=jnp.float32)               # (B*L, H)

    # --- encoder: NUM_LAYERS ProteinResNetBlocks (statically unrolled) -------
    for li in range(NUM_LAYERS):
        identity = x
        write_activation(x)
        out = conv(2 * li)
        out = _layernorm(out, lng_ref[2 * li], lnb_ref[2 * li])
        out = _activation(out)
        write_activation(out)
        out = conv(2 * li + 1)
        out = _layernorm(out, lng_ref[2 * li + 1], lnb_ref[2 * li + 1])
        x = _activation(out + identity)

    # --- head: AdaptiveAvgPool1d(1).squeeze(-1) -> SimpleMLP ------------------
    pooled = jnp.concatenate(
        [jnp.mean(x[b * SEQ:(b + 1) * SEQ, :], axis=0, keepdims=True)
         for b in range(BATCH)], axis=0)                          # (B, H)
    h = jnp.dot(pooled.astype(jnp.bfloat16), mw1_ref[...],
                preferred_element_type=jnp.float32) + mb1_ref[...]  # (B, 512)
    h = jnp.maximum(h, 0.0)                  # ReLU (Dropout p=0 is identity)
    # mlp_w2 as a row: VPU multiply + lane reduce instead of an N=1 MXU pass.
    logits = jnp.sum(h * mw2_ref[...], axis=-1, keepdims=True)    # (B, 1)
    o_ref[...] = (logits + mb2_ref[0, 0]).astype(o_ref.dtype)


# ---- pallas_call wrapper -----------------------------------------------------
@jax.jit
def protein_resnet_forward(tokens, packed):
    B, L = tokens.shape
    assert B == BATCH and L == SEQ
    tok2 = tokens.reshape(B * L, 1).astype(jnp.int32)

    operands = (tok2, packed["emb"], packed["wconv"],
                packed["ln_g"], packed["ln_b"],
                packed["mlp_w1"], packed["mlp_b1"],
                packed["mlp_w2"], packed["mlp_b2"])

    vmem = pl.BlockSpec(memory_space=pltpu.MemorySpace.VMEM)
    smem = pl.BlockSpec(memory_space=pltpu.MemorySpace.SMEM)

    flops = (2 * B * L * VOCAB * HIDDEN
             + NCONV * 2 * B * L * (KPAD * HIDDEN) * (GROUPS * HIDDEN)
             + 2 * B * HIDDEN * MLP_HID + 2 * B * MLP_HID)
    nbytes = (tok2.size * 4
              + sum(int(v.size) * v.dtype.itemsize for v in operands[1:])
              + B * 4)

    out = pl.pallas_call(
        fused_forward_kernel,
        out_shape=jax.ShapeDtypeStruct((B, 1), jnp.float32),
        in_specs=[vmem] * 8 + [smem],
        out_specs=vmem,
        scratch_shapes=[pltpu.VMEM((B * SEG, GROUPS * HIDDEN), jnp.float32)],
        cost_estimate=pl.CostEstimate(
            flops=int(flops),
            transcendentals=int(NCONV * B * L),   # LayerNorm rsqrt
            bytes_accessed=int(nbytes)),
    )(*operands)
    return out


# ---- weight packing for the kernel -------------------------------------------
def pack_params(p):
    # Conv weights: rows = tap-major (t*H + cin), taps zero-padded 9 -> 12;
    # columns = [L0.conv1 | L0.conv2 | L1.conv1 | L1.conv2] (lane-dense, bf16).
    cols, ln_g, ln_b = [], [], []
    for li in range(NUM_LAYERS):
        for w, g, b in ((p["w1"][li], p["g1"][li], p["b1"][li]),
                        (p["w2"][li], p["g2"][li], p["b2"][li])):
            wp = jnp.zeros((KPAD * HIDDEN, HIDDEN), jnp.float32)
            wp = wp.at[:KSIZE * HIDDEN].set(w)
            cols.append(wp)
            ln_g.append(g)
            ln_b.append(b)
    return {
        "emb": p["emb"].astype(jnp.float32),                          # (V, H)
        "wconv": jnp.concatenate(cols, axis=1).astype(jnp.bfloat16),  # (384, 128)
        "ln_g": jnp.stack(ln_g),                                      # (4, 1, H)
        "ln_b": jnp.stack(ln_b),                                      # (4, 1, H)
        "mlp_w1": p["mlp_w1"].astype(jnp.bfloat16),                   # (H, 512)
        "mlp_b1": p["mlp_b1"],                                        # (1, 512)
        "mlp_w2": p["mlp_w2"].reshape(1, MLP_HID),                    # (1, 512)
        "mlp_b2": p["mlp_b2"],                                        # (1, 1) -> SMEM
    }


# ---- pure-JAX f32 reference (sanity check of module semantics) ---------------
def _conv_ref(x, wcol):
    B, L, H = x.shape
    xp = jnp.pad(x, ((0, 0), (PAD, PAD), (0, 0)))
    cols = [xp[:, t * DIL:t * DIL + L, :] for t in range(KSIZE)]
    xcol = jnp.concatenate(cols, axis=-1)                 # (B, L, K*H)
    return jnp.einsum("blc,ch->blh", xcol, wcol)


def reference_forward(tokens, params):
    x = jnp.take(params["emb"], tokens, axis=0)           # (B, L, H)
    for li in range(NUM_LAYERS):
        identity = x
        out = _conv_ref(x, params["w1"][li])
        out = _layernorm(out, params["g1"][li], params["b1"][li])
        out = _activation(out)
        out = _conv_ref(out, params["w2"][li])
        out = _layernorm(out, params["g2"][li], params["b2"][li])
        x = _activation(out + identity)
    pooled = jnp.mean(x, axis=1)                          # (B, H)
    h = jnp.maximum(pooled @ params["mlp_w1"] + params["mlp_b1"], 0.0)
    return h @ params["mlp_w2"] + params["mlp_b2"]


# ---- deterministic parameter init (shapes from the PyTorch __init__) ---------
def init_params(key):
    keys = jax.random.split(key, 2 + NUM_LAYERS)
    params = {}
    params["emb"] = jax.random.normal(keys[0], (VOCAB, HIDDEN), jnp.float32) * 0.02

    conv_scale = (HIDDEN * KSIZE) ** -0.5
    w1s, w2s, g1s, b1s, g2s, b2s = [], [], [], [], [], []
    for li in range(NUM_LAYERS):
        k = jax.random.split(keys[1 + li], 6)
        # torch conv weight: (out, in, K) -> im2col column layout (K*in, out)
        w1_oik = jax.random.normal(k[0], (HIDDEN, HIDDEN, KSIZE), jnp.float32) * conv_scale
        w2_oik = jax.random.normal(k[1], (HIDDEN, HIDDEN, KSIZE), jnp.float32) * conv_scale
        w1s.append(jnp.transpose(w1_oik, (2, 1, 0)).reshape(KSIZE * HIDDEN, HIDDEN))
        w2s.append(jnp.transpose(w2_oik, (2, 1, 0)).reshape(KSIZE * HIDDEN, HIDDEN))
        g1s.append((1.0 + 0.1 * jax.random.normal(k[2], (HIDDEN,))).reshape(1, HIDDEN))
        b1s.append((0.1 * jax.random.normal(k[3], (HIDDEN,))).reshape(1, HIDDEN))
        g2s.append((1.0 + 0.1 * jax.random.normal(k[4], (HIDDEN,))).reshape(1, HIDDEN))
        b2s.append((0.1 * jax.random.normal(k[5], (HIDDEN,))).reshape(1, HIDDEN))
    params["w1"] = jnp.stack(w1s)          # (NUM_LAYERS, K*H, H)
    params["w2"] = jnp.stack(w2s)
    params["g1"] = jnp.stack(g1s)          # (NUM_LAYERS, 1, H)
    params["b1"] = jnp.stack(b1s)
    params["g2"] = jnp.stack(g2s)
    params["b2"] = jnp.stack(b2s)

    # SimpleMLP with weight_norm(dim=None): w_eff = g * v / ||v||_F
    mk = jax.random.split(keys[-1], 4)
    v1 = jax.random.normal(mk[0], (MLP_HID, HIDDEN), jnp.float32) * HIDDEN ** -0.5
    params["mlp_w1"] = (jnp.float32(1.3) * v1 / jnp.linalg.norm(v1)).T       # (H, 512)
    params["mlp_b1"] = (0.1 * jax.random.normal(mk[1], (MLP_HID,))).reshape(1, MLP_HID)
    v2 = jax.random.normal(mk[2], (1, MLP_HID), jnp.float32) * MLP_HID ** -0.5
    params["mlp_w2"] = (jnp.float32(0.7) * v2 / jnp.linalg.norm(v2)).T       # (512, 1)
    params["mlp_b2"] = (0.1 * jax.random.normal(mk[3], (1,))).reshape(1, 1)
    return params


if __name__ == "__main__":
    key = jax.random.PRNGKey(0)
    pkey, tkey = jax.random.split(key)
    params = init_params(pkey)
    packed = pack_params(params)
    tokens = jax.random.randint(tkey, (BATCH, SEQ), 0, VOCAB, dtype=jnp.int32)

    out = protein_resnet_forward(tokens, packed)
    out = jax.block_until_ready(out)
    assert out.shape == (BATCH, 1) and out.dtype == jnp.float32

    # Sanity check vs pure-f32 reference; tolerance deliberately sized for the
    # bf16 matmul operands used inside the kernel.
    ref = jax.block_until_ready(reference_forward(tokens, params))
    assert jnp.allclose(out, ref, atol=3e-2, rtol=3e-2)

    print("KERNEL_OK")
</pallas_src>

<mosaic_0001>
module attributes {stable_mosaic.version = 11 : i64} {
  func.func @fused_forward_kernel(%arg0: memref<32x1xi32, #tpu.memory_space<vmem>>, %arg1: memref<25x32xf32, #tpu.memory_space<vmem>>, %arg2: memref<384x128xbf16, #tpu.memory_space<vmem>>, %arg3: memref<4x1x32xf32, #tpu.memory_space<vmem>>, %arg4: memref<4x1x32xf32, #tpu.memory_space<vmem>>, %arg5: memref<32x512xbf16, #tpu.memory_space<vmem>>, %arg6: memref<1x512xf32, #tpu.memory_space<vmem>>, %arg7: memref<1x512xf32, #tpu.memory_space<vmem>>, %arg8: memref<1x1xf32, #tpu.memory_space<smem>>, %arg9: memref<2x1xf32, #tpu.memory_space<vmem>>, %arg10: memref<64x128xf32, #tpu.memory_space<vmem>>) attributes {dimension_semantics = [], scalar_prefetch = 0 : i64, scratch_operands = 1 : i64, tpu.core_type = #tpu.core_type<tc>} {
    %c0 = arith.constant 0 : index
    %c0_0 = arith.constant 0 : index
    %0 = vector.load %arg0[%c0, %c0_0] : memref<32x1xi32, #tpu.memory_space<vmem>>, vector<32x1xi32>
    %1 = tpu.iota {dimensions = array<i32: 1>} : vector<32x25xi32>
    %2 = vector.broadcast %0 : vector<32x1xi32> to vector<32x25xi32>
    %3 = arith.cmpi eq, %2, %1 : vector<32x25xi32>
    %4 = arith.extui %3 : vector<32x25xi1> to vector<32x25xi32>
    %5 = arith.sitofp %4 : vector<32x25xi32> to vector<32x25xf32>
    %c0_1 = arith.constant 0 : index
    %c0_2 = arith.constant 0 : index
    %6 = vector.load %arg1[%c0_1, %c0_2] : memref<25x32xf32, #tpu.memory_space<vmem>>, vector<25x32xf32>
    %cst = arith.constant dense<0.000000e+00> : vector<32x32xf32>
    %7 = tpu.matmul %5, %6, %cst {dimension_numbers = #tpu.dot_dimension_numbers<[1], [0], [0], [1], [0, 0, 1, 1], [], []>} : vector<32x25xf32>, vector<25x32xf32>, vector<32x32xf32> -> vector<32x32xf32>
    %cst_3 = arith.constant 0.000000e+00 : f32
    %8 = vector.broadcast %cst_3 : f32 to vector<8x32xf32>
    %9 = vector.extract_strided_slice %7 {offsets = [0, 0], sizes = [16, 32], strides = [1, 1]} : vector<32x32xf32> to vector<16x32xf32>
    %cst_4 = arith.constant 0.000000e+00 : f32
    %10 = vector.broadcast %cst_4 : f32 to vector<8x32xf32>
    %cst_5 = arith.constant 0.000000e+00 : f32
    %11 = vector.broadcast %cst_5 : f32 to vector<8x32xf32>
    %12 = vector.extract_strided_slice %7 {offsets = [16, 0], sizes = [16, 32], strides = [1, 1]} : vector<32x32xf32> to vector<16x32xf32>
    %cst_6 = arith.constant 0.000000e+00 : f32
    %13 = vector.broadcast %cst_6 : f32 to vector<8x32xf32>
    %14 = tpu.concatenate %8, %9, %10, %11, %12, %13 in 0 : vector<8x32xf32>, vector<16x32xf32>, vector<8x32xf32>, vector<8x32xf32>, vector<16x32xf32>, vector<8x32xf32> -> vector<64x32xf32>
    %cst_7 = arith.constant 0.000000e+00 : f32
    %15 = vector.broadcast %cst_7 : f32 to vector<6x32xf32>
    %16 = vector.extract_strided_slice %7 {offsets = [0, 0], sizes = [16, 32], strides = [1, 1]} : vector<32x32xf32> to vector<16x32xf32>
    %cst_8 = arith.constant 0.000000e+00 : f32
    %17 = vector.broadcast %cst_8 : f32 to vector<10x32xf32>
    %cst_9 = arith.constant 0.000000e+00 : f32
    %18 = vector.broadcast %cst_9 : f32 to vector<6x32xf32>
    %19 = vector.extract_strided_slice %7 {offsets = [16, 0], sizes = [16, 32], strides = [1, 1]} : vector<32x32xf32> to vector<16x32xf32>
    %cst_10 = arith.constant 0.000000e+00 : f32
    %20 = vector.broadcast %cst_10 : f32 to vector<10x32xf32>
    %21 = tpu.concatenate %15, %16, %17, %18, %19, %20 in 0 : vector<6x32xf32>, vector<16x32xf32>, vector<10x32xf32>, vector<6x32xf32>, vector<16x32xf32>, vector<10x32xf32> -> vector<64x32xf32>
    %cst_11 = arith.constant 0.000000e+00 : f32
    %22 = vector.broadcast %cst_11 : f32 to vector<4x32xf32>
    %23 = vector.extract_strided_slice %7 {offsets = [0, 0], sizes = [16, 32], strides = [1, 1]} : vector<32x32xf32> to vector<16x32xf32>
    %cst_12 = arith.constant 0.000000e+00 : f32
    %24 = vector.broadcast %cst_12 : f32 to vector<12x32xf32>
    %cst_13 = arith.constant 0.000000e+00 : f32
    %25 = vector.broadcast %cst_13 : f32 to vector<4x32xf32>
    %26 = vector.extract_strided_slice %7 {offsets = [16, 0], sizes = [16, 32], strides = [1, 1]} : vector<32x32xf32> to vector<16x32xf32>
    %cst_14 = arith.constant 0.000000e+00 : f32
    %27 = vector.broadcast %cst_14 : f32 to vector<12x32xf32>
    %28 = tpu.concatenate %22, %23, %24, %25, %26, %27 in 0 : vector<4x32xf32>, vector<16x32xf32>, vector<12x32xf32>, vector<4x32xf32>, vector<16x32xf32>, vector<12x32xf32> -> vector<64x32xf32>
    %cst_15 = arith.constant 0.000000e+00 : f32
    %29 = vector.broadcast %cst_15 : f32 to vector<2x32xf32>
    %30 = vector.extract_strided_slice %7 {offsets = [0, 0], sizes = [16, 32], strides = [1, 1]} : vector<32x32xf32> to vector<16x32xf32>
    %cst_16 = arith.constant 0.000000e+00 : f32
    %31 = vector.broadcast %cst_16 : f32 to vector<14x32xf32>
    %cst_17 = arith.constant 0.000000e+00 : f32
    %32 = vector.broadcast %cst_17 : f32 to vector<2x32xf32>
    %33 = vector.extract_strided_slice %7 {offsets = [16, 0], sizes = [16, 32], strides = [1, 1]} : vector<32x32xf32> to vector<16x32xf32>
    %cst_18 = arith.constant 0.000000e+00 : f32
    %34 = vector.broadcast %cst_18 : f32 to vector<14x32xf32>
    %35 = tpu.concatenate %29, %30, %31, %32, %33, %34 in 0 : vector<2x32xf32>, vector<16x32xf32>, vector<14x32xf32>, vector<2x32xf32>, vector<16x32xf32>, vector<14x32xf32> -> vector<64x32xf32>
    %36 = tpu.concatenate %14, %21, %28, %35 in 1 : vector<64x32xf32>, vector<64x32xf32>, vector<64x32xf32>, vector<64x32xf32> -> vector<64x128xf32>
    %c0_19 = arith.constant 0 : index
    %c0_20 = arith.constant 0 : index
    %37 = vector.load %arg10[%c0_19, %c0_20] : memref<64x128xf32, #tpu.memory_space<vmem>>, vector<64x128xf32>
    tpu.vector_store %arg10[%c0_19, %c0_20], %36 {strides = array<i32>} : memref<64x128xf32, #tpu.memory_space<vmem>>, vector<64x128xf32>,
    %c0_21 = arith.constant 0 : index
    %c0_22 = arith.constant 0 : index
    %38 = vector.load %arg10[%c0_21, %c0_22] : memref<64x128xf32, #tpu.memory_space<vmem>>, vector<16x128xf32>
    %c8 = arith.constant 8 : index
    %c0_23 = arith.constant 0 : index
    %39 = vector.load %arg10[%c8, %c0_23] : memref<64x128xf32, #tpu.memory_space<vmem>>, vector<16x128xf32>
    %c16 = arith.constant 16 : index
    %c0_24 = arith.constant 0 : index
    %40 = vector.load %arg10[%c16, %c0_24] : memref<64x128xf32, #tpu.memory_space<vmem>>, vector<16x128xf32>
    %41 = tpu.concatenate %38, %39, %40 in 1 : vector<16x128xf32>, vector<16x128xf32>, vector<16x128xf32> -> vector<16x384xf32>
    %c32 = arith.constant 32 : index
    %c0_25 = arith.constant 0 : index
    %42 = vector.load %arg10[%c32, %c0_25] : memref<64x128xf32, #tpu.memory_space<vmem>>, vector<16x128xf32>
    %c40 = arith.constant 40 : index
    %c0_26 = arith.constant 0 : index
    %43 = vector.load %arg10[%c40, %c0_26] : memref<64x128xf32, #tpu.memory_space<vmem>>, vector<16x128xf32>
    %c48 = arith.constant 48 : index
    %c0_27 = arith.constant 0 : index
    %44 = vector.load %arg10[%c48, %c0_27] : memref<64x128xf32, #tpu.memory_space<vmem>>, vector<16x128xf32>
    %45 = tpu.concatenate %42, %43, %44 in 1 : vector<16x128xf32>, vector<16x128xf32>, vector<16x128xf32> -> vector<16x384xf32>
    %46 = tpu.concatenate %41, %45 in 0 : vector<16x384xf32>, vector<16x384xf32> -> vector<32x384xf32>
    %47 = arith.truncf %46 : vector<32x384xf32> to vector<32x384xbf16>
    %c0_28 = arith.constant 0 : index
    %c0_29 = arith.constant 0 : index
    %48 = vector.load %arg2[%c0_28, %c0_29] : memref<384x128xbf16, #tpu.memory_space<vmem>>, vector<384x128xbf16>
    %cst_30 = arith.constant dense<0.000000e+00> : vector<32x128xf32>
    %49 = tpu.matmul %47, %48, %cst_30 {dimension_numbers = #tpu.dot_dimension_numbers<[1], [0], [0], [1], [0, 0, 1, 1], [], []>} : vector<32x384xbf16>, vector<384x128xbf16>, vector<32x128xf32> -> vector<32x128xf32>
    %50 = vector.extract_strided_slice %49 {offsets = [0, 0], sizes = [32, 32], strides = [1, 1]} : vector<32x128xf32> to vector<32x32xf32>
    %c0_31 = arith.constant 0 : index
    %c0_32 = arith.constant 0 : index
    %c0_33 = arith.constant 0 : index
    %51 = vector.load %arg3[%c0_31, %c0_32, %c0_33] : memref<4x1x32xf32, #tpu.memory_space<vmem>>, vector<1x1x32xf32>
    %52 = vector.shape_cast %51 : vector<1x1x32xf32> to vector<1x32xf32>
    %c0_34 = arith.constant 0 : index
    %c0_35 = arith.constant 0 : index
    %c0_36 = arith.constant 0 : index
    %53 = vector.load %arg4[%c0_34, %c0_35, %c0_36] : memref<4x1x32xf32, #tpu.memory_space<vmem>>, vector<1x1x32xf32>
    %54 = vector.shape_cast %53 : vector<1x1x32xf32> to vector<1x32xf32>
    %cst_37 = arith.constant dense<0.000000e+00> : vector<32xf32>
    %55 = vector.multi_reduction <add>, %50, %cst_37 [1] : vector<32x32xf32> to vector<32xf32>
    %56 = vector.shape_cast %55 : vector<32xf32> to vector<32x1xf32>
    %cst_38 = arith.constant 3.200000e+01 : f32
    %57 = vector.broadcast %cst_38 : f32 to vector<32x1xf32>
    %58 = arith.divf %56, %57 : vector<32x1xf32>
    %59 = vector.broadcast %58 : vector<32x1xf32> to vector<32x32xf32>
    %60 = arith.subf %50, %59 : vector<32x32xf32>
    %61 = arith.mulf %60, %60 : vector<32x32xf32>
    %cst_39 = arith.constant dense<0.000000e+00> : vector<32xf32>
    %62 = vector.multi_reduction <add>, %61, %cst_39 [1] : vector<32x32xf32> to vector<32xf32>
    %63 = vector.shape_cast %62 : vector<32xf32> to vector<32x1xf32>
    %cst_40 = arith.constant 3.200000e+01 : f32
    %64 = vector.broadcast %cst_40 : f32 to vector<32x1xf32>
    %65 = arith.divf %63, %64 : vector<32x1xf32>
    %66 = vector.broadcast %58 : vector<32x1xf32> to vector<32x32xf32>
    %67 = arith.subf %50, %66 : vector<32x32xf32>
    %cst_41 = arith.constant 9.99999974E-6 : f32
    %68 = vector.broadcast %cst_41 : f32 to vector<32x1xf32>
    %69 = arith.addf %65, %68 : vector<32x1xf32>
    %70 = math.rsqrt %69 : vector<32x1xf32>
    %71 = vector.broadcast %70 : vector<32x1xf32> to vector<32x32xf32>
    %72 = arith.mulf %67, %71 : vector<32x32xf32>
    %73 = vector.broadcast %52 : vector<1x32xf32> to vector<32x32xf32>
    %74 = arith.mulf %72, %73 : vector<32x32xf32>
    %75 = vector.broadcast %54 : vector<1x32xf32> to vector<32x32xf32>
    %76 = arith.addf %74, %75 : vector<32x32xf32>
    %cst_42 = arith.constant 0.000000e+00 : f32
    %77 = vector.broadcast %cst_42 : f32 to vector<32x32xf32>
    %78 = arith.maximumf %76, %77 : vector<32x32xf32>
    %cst_43 = arith.constant 0.000000e+00 : f32
    %79 = vector.broadcast %cst_43 : f32 to vector<8x32xf32>
    %80 = vector.extract_strided_slice %78 {offsets = [0, 0], sizes = [16, 32], strides = [1, 1]} : vector<32x32xf32> to vector<16x32xf32>
    %cst_44 = arith.constant 0.000000e+00 : f32
    %81 = vector.broadcast %cst_44 : f32 to vector<8x32xf32>
    %cst_45 = arith.constant 0.000000e+00 : f32
    %82 = vector.broadcast %cst_45 : f32 to vector<8x32xf32>
    %83 = vector.extract_strided_slice %78 {offsets = [16, 0], sizes = [16, 32], strides = [1, 1]} : vector<32x32xf32> to vector<16x32xf32>
    %cst_46 = arith.constant 0.000000e+00 : f32
    %84 = vector.broadcast %cst_46 : f32 to vector<8x32xf32>
    %85 = tpu.concatenate %79, %80, %81, %82, %83, %84 in 0 : vector<8x32xf32>, vector<16x32xf32>, vector<8x32xf32>, vector<8x32xf32>, vector<16x32xf32>, vector<8x32xf32> -> vector<64x32xf32>
    %cst_47 = arith.constant 0.000000e+00 : f32
    %86 = vector.broadcast %cst_47 : f32 to vector<6x32xf32>
    %87 = vector.extract_strided_slice %78 {offsets = [0, 0], sizes = [16, 32], strides = [1, 1]} : vector<32x32xf32> to vector<16x32xf32>
    %cst_48 = arith.constant 0.000000e+00 : f32
    %88 = vector.broadcast %cst_48 : f32 to vector<10x32xf32>
    %cst_49 = arith.constant 0.000000e+00 : f32
    %89 = vector.broadcast %cst_49 : f32 to vector<6x32xf32>
    %90 = vector.extract_strided_slice %78 {offsets = [16, 0], sizes = [16, 32], strides = [1, 1]} : vector<32x32xf32> to vector<16x32xf32>
    %cst_50 = arith.constant 0.000000e+00 : f32
    %91 = vector.broadcast %cst_50 : f32 to vector<10x32xf32>
    %92 = tpu.concatenate %86, %87, %88, %89, %90, %91 in 0 : vector<6x32xf32>, vector<16x32xf32>, vector<10x32xf32>, vector<6x32xf32>, vector<16x32xf32>, vector<10x32xf32> -> vector<64x32xf32>
    %cst_51 = arith.constant 0.000000e+00 : f32
    %93 = vector.broadcast %cst_51 : f32 to vector<4x32xf32>
    %94 = vector.extract_strided_slice %78 {offsets = [0, 0], sizes = [16, 32], strides = [1, 1]} : vector<32x32xf32> to vector<16x32xf32>
    %cst_52 = arith.constant 0.000000e+00 : f32
    %95 = vector.broadcast %cst_52 : f32 to vector<12x32xf32>
    %cst_53 = arith.constant 0.000000e+00 : f32
    %96 = vector.broadcast %cst_53 : f32 to vector<4x32xf32>
    %97 = vector.extract_strided_slice %78 {offsets = [16, 0], sizes = [16, 32], strides = [1, 1]} : vector<32x32xf32> to vector<16x32xf32>
    %cst_54 = arith.constant 0.000000e+00 : f32
    %98 = vector.broadcast %cst_54 : f32 to vector<12x32xf32>
    %99 = tpu.concatenate %93, %94, %95, %96, %97, %98 in 0 : vector<4x32xf32>, vector<16x32xf32>, vector<12x32xf32>, vector<4x32xf32>, vector<16x32xf32>, vector<12x32xf32> -> vector<64x32xf32>
    %cst_55 = arith.constant 0.000000e+00 : f32
    %100 = vector.broadcast %cst_55 : f32 to vector<2x32xf32>
    %101 = vector.extract_strided_slice %78 {offsets = [0, 0], sizes = [16, 32], strides = [1, 1]} : vector<32x32xf32> to vector<16x32xf32>
    %cst_56 = arith.constant 0.000000e+00 : f32
    %102 = vector.broadcast %cst_56 : f32 to vector<14x32xf32>
    %cst_57 = arith.constant 0.000000e+00 : f32
    %103 = vector.broadcast %cst_57 : f32 to vector<2x32xf32>
    %104 = vector.extract_strided_slice %78 {offsets = [16, 0], sizes = [16, 32], strides = [1, 1]} : vector<32x32xf32> to vector<16x32xf32>
    %cst_58 = arith.constant 0.000000e+00 : f32
    %105 = vector.broadcast %cst_58 : f32 to vector<14x32xf32>
    %106 = tpu.concatenate %100, %101, %102, %103, %104, %105 in 0 : vector<2x32xf32>, vector<16x32xf32>, vector<14x32xf32>, vector<2x32xf32>, vector<16x32xf32>, vector<14x32xf32> -> vector<64x32xf32>
    %107 = tpu.concatenate %85, %92, %99, %106 in 1 : vector<64x32xf32>, vector<64x32xf32>, vector<64x32xf32>, vector<64x32xf32> -> vector<64x128xf32>
    %c0_59 = arith.constant 0 : index
    %c0_60 = arith.constant 0 : index
    %108 = vector.load %arg10[%c0_59, %c0_60] : memref<64x128xf32, #tpu.memory_space<vmem>>, vector<64x128xf32>
    tpu.vector_store %arg10[%c0_59, %c0_60], %107 {strides = array<i32>} : memref<64x128xf32, #tpu.memory_space<vmem>>, vector<64x128xf32>,
    %c0_61 = arith.constant 0 : index
    %c0_62 = arith.constant 0 : index
    %109 = vector.load %arg10[%c0_61, %c0_62] : memref<64x128xf32, #tpu.memory_space<vmem>>, vector<16x128xf32>
    %c8_63 = arith.constant 8 : index
    %c0_64 = arith.constant 0 : index
    %110 = vector.load %arg10[%c8_63, %c0_64] : memref<64x128xf32, #tpu.memory_space<vmem>>, vector<16x128xf32>
    %c16_65 = arith.constant 16 : index
    %c0_66 = arith.constant 0 : index
    %111 = vector.load %arg10[%c16_65, %c0_66] : memref<64x128xf32, #tpu.memory_space<vmem>>, vector<16x128xf32>
    %112 = tpu.concatenate %109, %110, %111 in 1 : vector<16x128xf32>, vector<16x128xf32>, vector<16x128xf32> -> vector<16x384xf32>
    %c32_67 = arith.constant 32 : index
    %c0_68 = arith.constant 0 : index
    %113 = vector.load %arg10[%c32_67, %c0_68] : memref<64x128xf32, #tpu.memory_space<vmem>>, vector<16x128xf32>
    %c40_69 = arith.constant 40 : index
    %c0_70 = arith.constant 0 : index
    %114 = vector.load %arg10[%c40_69, %c0_70] : memref<64x128xf32, #tpu.memory_space<vmem>>, vector<16x128xf32>
    %c48_71 = arith.constant 48 : index
    %c0_72 = arith.constant 0 : index
    %115 = vector.load %arg10[%c48_71, %c0_72] : memref<64x128xf32, #tpu.memory_space<vmem>>, vector<16x128xf32>
    %116 = tpu.concatenate %113, %114, %115 in 1 : vector<16x128xf32>, vector<16x128xf32>, vector<16x128xf32> -> vector<16x384xf32>
    %117 = tpu.concatenate %112, %116 in 0 : vector<16x384xf32>, vector<16x384xf32> -> vector<32x384xf32>
    %118 = arith.truncf %117 : vector<32x384xf32> to vector<32x384xbf16>
    %c0_73 = arith.constant 0 : index
    %c0_74 = arith.constant 0 : index
    %119 = vector.load %arg2[%c0_73, %c0_74] : memref<384x128xbf16, #tpu.memory_space<vmem>>, vector<384x128xbf16>
    %cst_75 = arith.constant dense<0.000000e+00> : vector<32x128xf32>
    %120 = tpu.matmul %118, %119, %cst_75 {dimension_numbers = #tpu.dot_dimension_numbers<[1], [0], [0], [1], [0, 0, 1, 1], [], []>} : vector<32x384xbf16>, vector<384x128xbf16>, vector<32x128xf32> -> vector<32x128xf32>
    %121 = vector.extract_strided_slice %120 {offsets = [0, 32], sizes = [32, 32], strides = [1, 1]} : vector<32x128xf32> to vector<32x32xf32>
    %c1 = arith.constant 1 : index
    %c0_76 = arith.constant 0 : index
    %c0_77 = arith.constant 0 : index
    %122 = vector.load %arg3[%c1, %c0_76, %c0_77] : memref<4x1x32xf32, #tpu.memory_space<vmem>>, vector<1x1x32xf32>
    %123 = vector.shape_cast %122 : vector<1x1x32xf32> to vector<1x32xf32>
    %c1_78 = arith.constant 1 : index
    %c0_79 = arith.constant 0 : index
    %c0_80 = arith.constant 0 : index
    %124 = vector.load %arg4[%c1_78, %c0_79, %c0_80] : memref<4x1x32xf32, #tpu.memory_space<vmem>>, vector<1x1x32xf32>
    %125 = vector.shape_cast %124 : vector<1x1x32xf32> to vector<1x32xf32>
    %cst_81 = arith.constant dense<0.000000e+00> : vector<32xf32>
    %126 = vector.multi_reduction <add>, %121, %cst_81 [1] : vector<32x32xf32> to vector<32xf32>
    %127 = vector.shape_cast %126 : vector<32xf32> to vector<32x1xf32>
    %cst_82 = arith.constant 3.200000e+01 : f32
    %128 = vector.broadcast %cst_82 : f32 to vector<32x1xf32>
    %129 = arith.divf %127, %128 : vector<32x1xf32>
    %130 = vector.broadcast %129 : vector<32x1xf32> to vector<32x32xf32>
    %131 = arith.subf %121, %130 : vector<32x32xf32>
    %132 = arith.mulf %131, %131 : vector<32x32xf32>
    %cst_83 = arith.constant dense<0.000000e+00> : vector<32xf32>
    %133 = vector.multi_reduction <add>, %132, %cst_83 [1] : vector<32x32xf32> to vector<32xf32>
    %134 = vector.shape_cast %133 : vector<32xf32> to vector<32x1xf32>
    %cst_84 = arith.constant 3.200000e+01 : f32
    %135 = vector.broadcast %cst_84 : f32 to vector<32x1xf32>
    %136 = arith.divf %134, %135 : vector<32x1xf32>
    %137 = vector.broadcast %129 : vector<32x1xf32> to vector<32x32xf32>
    %138 = arith.subf %121, %137 : vector<32x32xf32>
    %cst_85 = arith.constant 9.99999974E-6 : f32
    %139 = vector.broadcast %cst_85 : f32 to vector<32x1xf32>
    %140 = arith.addf %136, %139 : vector<32x1xf32>
    %141 = math.rsqrt %140 : vector<32x1xf32>
    %142 = vector.broadcast %141 : vector<32x1xf32> to vector<32x32xf32>
    %143 = arith.mulf %138, %142 : vector<32x32xf32>
    %144 = vector.broadcast %123 : vector<1x32xf32> to vector<32x32xf32>
    %145 = arith.mulf %143, %144 : vector<32x32xf32>
    %146 = vector.broadcast %125 : vector<1x32xf32> to vector<32x32xf32>
    %147 = arith.addf %145, %146 : vector<32x32xf32>
    %148 = arith.addf %147, %7 : vector<32x32xf32>
    %cst_86 = arith.constant 0.000000e+00 : f32
    %149 = vector.broadcast %cst_86 : f32 to vector<32x32xf32>
    %150 = arith.maximumf %148, %149 : vector<32x32xf32>
    %cst_87 = arith.constant 0.000000e+00 : f32
    %151 = vector.broadcast %cst_87 : f32 to vector<8x32xf32>
    %152 = vector.extract_strided_slice %150 {offsets = [0, 0], sizes = [16, 32], strides = [1, 1]} : vector<32x32xf32> to vector<16x32xf32>
    %cst_88 = arith.constant 0.000000e+00 : f32
    %153 = vector.broadcast %cst_88 : f32 to vector<8x32xf32>
    %cst_89 = arith.constant 0.000000e+00 : f32
    %154 = vector.broadcast %cst_89 : f32 to vector<8x32xf32>
    %155 = vector.extract_strided_slice %150 {offsets = [16, 0], sizes = [16, 32], strides = [1, 1]} : vector<32x32xf32> to vector<16x32xf32>
    %cst_90 = arith.constant 0.000000e+00 : f32
    %156 = vector.broadcast %cst_90 : f32 to vector<8x32xf32>
    %157 = tpu.concatenate %151, %152, %153, %154, %155, %156 in 0 : vector<8x32xf32>, vector<16x32xf32>, vector<8x32xf32>, vector<8x32xf32>, vector<16x32xf32>, vector<8x32xf32> -> vector<64x32xf32>
    %cst_91 = arith.constant 0.000000e+00 : f32
    %158 = vector.broadcast %cst_91 : f32 to vector<6x32xf32>
    %159 = vector.extract_strided_slice %150 {offsets = [0, 0], sizes = [16, 32], strides = [1, 1]} : vector<32x32xf32> to vector<16x32xf32>
    %cst_92 = arith.constant 0.000000e+00 : f32
    %160 = vector.broadcast %cst_92 : f32 to vector<10x32xf32>
    %cst_93 = arith.constant 0.000000e+00 : f32
    %161 = vector.broadcast %cst_93 : f32 to vector<6x32xf32>
    %162 = vector.extract_strided_slice %150 {offsets = [16, 0], sizes = [16, 32], strides = [1, 1]} : vector<32x32xf32> to vector<16x32xf32>
    %cst_94 = arith.constant 0.000000e+00 : f32
    %163 = vector.broadcast %cst_94 : f32 to vector<10x32xf32>
    %164 = tpu.concatenate %158, %159, %160, %161, %162, %163 in 0 : vector<6x32xf32>, vector<16x32xf32>, vector<10x32xf32>, vector<6x32xf32>, vector<16x32xf32>, vector<10x32xf32> -> vector<64x32xf32>
    %cst_95 = arith.constant 0.000000e+00 : f32
    %165 = vector.broadcast %cst_95 : f32 to vector<4x32xf32>
    %166 = vector.extract_strided_slice %150 {offsets = [0, 0], sizes = [16, 32], strides = [1, 1]} : vector<32x32xf32> to vector<16x32xf32>
    %cst_96 = arith.constant 0.000000e+00 : f32
    %167 = vector.broadcast %cst_96 : f32 to vector<12x32xf32>
    %cst_97 = arith.constant 0.000000e+00 : f32
    %168 = vector.broadcast %cst_97 : f32 to vector<4x32xf32>
    %169 = vector.extract_strided_slice %150 {offsets = [16, 0], sizes = [16, 32], strides = [1, 1]} : vector<32x32xf32> to vector<16x32xf32>
    %cst_98 = arith.constant 0.000000e+00 : f32
    %170 = vector.broadcast %cst_98 : f32 to vector<12x32xf32>
    %171 = tpu.concatenate %165, %166, %167, %168, %169, %170 in 0 : vector<4x32xf32>, vector<16x32xf32>, vector<12x32xf32>, vector<4x32xf32>, vector<16x32xf32>, vector<12x32xf32> -> vector<64x32xf32>
    %cst_99 = arith.constant 0.000000e+00 : f32
    %172 = vector.broadcast %cst_99 : f32 to vector<2x32xf32>
    %173 = vector.extract_strided_slice %150 {offsets = [0, 0], sizes = [16, 32], strides = [1, 1]} : vector<32x32xf32> to vector<16x32xf32>
    %cst_100 = arith.constant 0.000000e+00 : f32
    %174 = vector.broadcast %cst_100 : f32 to vector<14x32xf32>
    %cst_101 = arith.constant 0.000000e+00 : f32
    %175 = vector.broadcast %cst_101 : f32 to vector<2x32xf32>
    %176 = vector.extract_strided_slice %150 {offsets = [16, 0], sizes = [16, 32], strides = [1, 1]} : vector<32x32xf32> to vector<16x32xf32>
    %cst_102 = arith.constant 0.000000e+00 : f32
    %177 = vector.broadcast %cst_102 : f32 to vector<14x32xf32>
    %178 = tpu.concatenate %172, %173, %174, %175, %176, %177 in 0 : vector<2x32xf32>, vector<16x32xf32>, vector<14x32xf32>, vector<2x32xf32>, vector<16x32xf32>, vector<14x32xf32> -> vector<64x32xf32>
    %179 = tpu.concatenate %157, %164, %171, %178 in 1 : vector<64x32xf32>, vector<64x32xf32>, vector<64x32xf32>, vector<64x32xf32> -> vector<64x128xf32>
    %c0_103 = arith.constant 0 : index
    %c0_104 = arith.constant 0 : index
    %180 = vector.load %arg10[%c0_103, %c0_104] : memref<64x128xf32, #tpu.memory_space<vmem>>, vector<64x128xf32>
    tpu.vector_store %arg10[%c0_103, %c0_104], %179 {strides = array<i32>} : memref<64x128xf32, #tpu.memory_space<vmem>>, vector<64x128xf32>,
    %c0_105 = arith.constant 0 : index
    %c0_106 = arith.constant 0 : index
    %181 = vector.load %arg10[%c0_105, %c0_106] : memref<64x128xf32, #tpu.memory_space<vmem>>, vector<16x128xf32>
    %c8_107 = arith.constant 8 : index
    %c0_108 = arith.constant 0 : index
    %182 = vector.load %arg10[%c8_107, %c0_108] : memref<64x128xf32, #tpu.memory_space<vmem>>, vector<16x128xf32>
    %c16_109 = arith.constant 16 : index
    %c0_110 = arith.constant 0 : index
    %183 = vector.load %arg10[%c16_109, %c0_110] : memref<64x128xf32, #tpu.memory_space<vmem>>, vector<16x128xf32>
    %184 = tpu.concatenate %181, %182, %183 in 1 : vector<16x128xf32>, vector<16x128xf32>, vector<16x128xf32> -> vector<16x384xf32>
    %c32_111 = arith.constant 32 : index
    %c0_112 = arith.constant 0 : index
    %185 = vector.load %arg10[%c32_111, %c0_112] : memref<64x128xf32, #tpu.memory_space<vmem>>, vector<16x128xf32>
    %c40_113 = arith.constant 40 : index
    %c0_114 = arith.constant 0 : index
    %186 = vector.load %arg10[%c40_113, %c0_114] : memref<64x128xf32, #tpu.memory_space<vmem>>, vector<16x128xf32>
    %c48_115 = arith.constant 48 : index
    %c0_116 = arith.constant 0 : index
    %187 = vector.load %arg10[%c48_115, %c0_116] : memref<64x128xf32, #tpu.memory_space<vmem>>, vector<16x128xf32>
    %188 = tpu.concatenate %185, %186, %187 in 1 : vector<16x128xf32>, vector<16x128xf32>, vector<16x128xf32> -> vector<16x384xf32>
    %189 = tpu.concatenate %184, %188 in 0 : vector<16x384xf32>, vector<16x384xf32> -> vector<32x384xf32>
    %190 = arith.truncf %189 : vector<32x384xf32> to vector<32x384xbf16>
    %c0_117 = arith.constant 0 : index
    %c0_118 = arith.constant 0 : index
    %191 = vector.load %arg2[%c0_117, %c0_118] : memref<384x128xbf16, #tpu.memory_space<vmem>>, vector<384x128xbf16>
    %cst_119 = arith.constant dense<0.000000e+00> : vector<32x128xf32>
    %192 = tpu.matmul %190, %191, %cst_119 {dimension_numbers = #tpu.dot_dimension_numbers<[1], [0], [0], [1], [0, 0, 1, 1], [], []>} : vector<32x384xbf16>, vector<384x128xbf16>, vector<32x128xf32> -> vector<32x128xf32>
    %193 = vector.extract_strided_slice %192 {offsets = [0, 64], sizes = [32, 32], strides = [1, 1]} : vector<32x128xf32> to vector<32x32xf32>
    %c2 = arith.constant 2 : index
    %c0_120 = arith.constant 0 : index
    %c0_121 = arith.constant 0 : index
    %194 = vector.load %arg3[%c2, %c0_120, %c0_121] : memref<4x1x32xf32, #tpu.memory_space<vmem>>, vector<1x1x32xf32>
    %195 = vector.shape_cast %194 : vector<1x1x32xf32> to vector<1x32xf32>
    %c2_122 = arith.constant 2 : index
    %c0_123 = arith.constant 0 : index
    %c0_124 = arith.constant 0 : index
    %196 = vector.load %arg4[%c2_122, %c0_123, %c0_124] : memref<4x1x32xf32, #tpu.memory_space<vmem>>, vector<1x1x32xf32>
    %197 = vector.shape_cast %196 : vector<1x1x32xf32> to vector<1x32xf32>
    %cst_125 = arith.constant dense<0.000000e+00> : vector<32xf32>
    %198 = vector.multi_reduction <add>, %193, %cst_125 [1] : vector<32x32xf32> to vector<32xf32>
    %199 = vector.shape_cast %198 : vector<32xf32> to vector<32x1xf32>
    %cst_126 = arith.constant 3.200000e+01 : f32
    %200 = vector.broadcast %cst_126 : f32 to vector<32x1xf32>
    %201 = arith.divf %199, %200 : vector<32x1xf32>
    %202 = vector.broadcast %201 : vector<32x1xf32> to vector<32x32xf32>
    %203 = arith.subf %193, %202 : vector<32x32xf32>
    %204 = arith.mulf %203, %203 : vector<32x32xf32>
    %cst_127 = arith.constant dense<0.000000e+00> : vector<32xf32>
    %205 = vector.multi_reduction <add>, %204, %cst_127 [1] : vector<32x32xf32> to vector<32xf32>
    %206 = vector.shape_cast %205 : vector<32xf32> to vector<32x1xf32>
    %cst_128 = arith.constant 3.200000e+01 : f32
    %207 = vector.broadcast %cst_128 : f32 to vector<32x1xf32>
    %208 = arith.divf %206, %207 : vector<32x1xf32>
    %209 = vector.broadcast %201 : vector<32x1xf32> to vector<32x32xf32>
    %210 = arith.subf %193, %209 : vector<32x32xf32>
    %cst_129 = arith.constant 9.99999974E-6 : f32
    %211 = vector.broadcast %cst_129 : f32 to vector<32x1xf32>
    %212 = arith.addf %208, %211 : vector<32x1xf32>
    %213 = math.rsqrt %212 : vector<32x1xf32>
    %214 = vector.broadcast %213 : vector<32x1xf32> to vector<32x32xf32>
    %215 = arith.mulf %210, %214 : vector<32x32xf32>
    %216 = vector.broadcast %195 : vector<1x32xf32> to vector<32x32xf32>
    %217 = arith.mulf %215, %216 : vector<32x32xf32>
    %218 = vector.broadcast %197 : vector<1x32xf32> to vector<32x32xf32>
    %219 = arith.addf %217, %218 : vector<32x32xf32>
    %cst_130 = arith.constant 0.000000e+00 : f32
    %220 = vector.broadcast %cst_130 : f32 to vector<32x32xf32>
    %221 = arith.maximumf %219, %220 : vector<32x32xf32>
    %cst_131 = arith.constant 0.000000e+00 : f32
    %222 = vector.broadcast %cst_131 : f32 to vector<8x32xf32>
    %223 = vector.extract_strided_slice %221 {offsets = [0, 0], sizes = [16, 32], strides = [1, 1]} : vector<32x32xf32> to vector<16x32xf32>
    %cst_132 = arith.constant 0.000000e+00 : f32
    %224 = vector.broadcast %cst_132 : f32 to vector<8x32xf32>
    %cst_133 = arith.constant 0.000000e+00 : f32
    %225 = vector.broadcast %cst_133 : f32 to vector<8x32xf32>
    %226 = vector.extract_strided_slice %221 {offsets = [16, 0], sizes = [16, 32], strides = [1, 1]} : vector<32x32xf32> to vector<16x32xf32>
    %cst_134 = arith.constant 0.000000e+00 : f32
    %227 = vector.broadcast %cst_134 : f32 to vector<8x32xf32>
    %228 = tpu.concatenate %222, %223, %224, %225, %226, %227 in 0 : vector<8x32xf32>, vector<16x32xf32>, vector<8x32xf32>, vector<8x32xf32>, vector<16x32xf32>, vector<8x32xf32> -> vector<64x32xf32>
    %cst_135 = arith.constant 0.000000e+00 : f32
    %229 = vector.broadcast %cst_135 : f32 to vector<6x32xf32>
    %230 = vector.extract_strided_slice %221 {offsets = [0, 0], sizes = [16, 32], strides = [1, 1]} : vector<32x32xf32> to vector<16x32xf32>
    %cst_136 = arith.constant 0.000000e+00 : f32
    %231 = vector.broadcast %cst_136 : f32 to vector<10x32xf32>
    %cst_137 = arith.constant 0.000000e+00 : f32
    %232 = vector.broadcast %cst_137 : f32 to vector<6x32xf32>
    %233 = vector.extract_strided_slice %221 {offsets = [16, 0], sizes = [16, 32], strides = [1, 1]} : vector<32x32xf32> to vector<16x32xf32>
    %cst_138 = arith.constant 0.000000e+00 : f32
    %234 = vector.broadcast %cst_138 : f32 to vector<10x32xf32>
    %235 = tpu.concatenate %229, %230, %231, %232, %233, %234 in 0 : vector<6x32xf32>, vector<16x32xf32>, vector<10x32xf32>, vector<6x32xf32>, vector<16x32xf32>, vector<10x32xf32> -> vector<64x32xf32>
    %cst_139 = arith.constant 0.000000e+00 : f32
    %236 = vector.broadcast %cst_139 : f32 to vector<4x32xf32>
    %237 = vector.extract_strided_slice %221 {offsets = [0, 0], sizes = [16, 32], strides = [1, 1]} : vector<32x32xf32> to vector<16x32xf32>
    %cst_140 = arith.constant 0.000000e+00 : f32
    %238 = vector.broadcast %cst_140 : f32 to vector<12x32xf32>
    %cst_141 = arith.constant 0.000000e+00 : f32
    %239 = vector.broadcast %cst_141 : f32 to vector<4x32xf32>
    %240 = vector.extract_strided_slice %221 {offsets = [16, 0], sizes = [16, 32], strides = [1, 1]} : vector<32x32xf32> to vector<16x32xf32>
    %cst_142 = arith.constant 0.000000e+00 : f32
    %241 = vector.broadcast %cst_142 : f32 to vector<12x32xf32>
    %242 = tpu.concatenate %236, %237, %238, %239, %240, %241 in 0 : vector<4x32xf32>, vector<16x32xf32>, vector<12x32xf32>, vector<4x32xf32>, vector<16x32xf32>, vector<12x32xf32> -> vector<64x32xf32>
    %cst_143 = arith.constant 0.000000e+00 : f32
    %243 = vector.broadcast %cst_143 : f32 to vector<2x32xf32>
    %244 = vector.extract_strided_slice %221 {offsets = [0, 0], sizes = [16, 32], strides = [1, 1]} : vector<32x32xf32> to vector<16x32xf32>
    %cst_144 = arith.constant 0.000000e+00 : f32
    %245 = vector.broadcast %cst_144 : f32 to vector<14x32xf32>
    %cst_145 = arith.constant 0.000000e+00 : f32
    %246 = vector.broadcast %cst_145 : f32 to vector<2x32xf32>
    %247 = vector.extract_strided_slice %221 {offsets = [16, 0], sizes = [16, 32], strides = [1, 1]} : vector<32x32xf32> to vector<16x32xf32>
    %cst_146 = arith.constant 0.000000e+00 : f32
    %248 = vector.broadcast %cst_146 : f32 to vector<14x32xf32>
    %249 = tpu.concatenate %243, %244, %245, %246, %247, %248 in 0 : vector<2x32xf32>, vector<16x32xf32>, vector<14x32xf32>, vector<2x32xf32>, vector<16x32xf32>, vector<14x32xf32> -> vector<64x32xf32>
    %250 = tpu.concatenate %228, %235, %242, %249 in 1 : vector<64x32xf32>, vector<64x32xf32>, vector<64x32xf32>, vector<64x32xf32> -> vector<64x128xf32>
    %c0_147 = arith.constant 0 : index
    %c0_148 = arith.constant 0 : index
    %251 = vector.load %arg10[%c0_147, %c0_148] : memref<64x128xf32, #tpu.memory_space<vmem>>, vector<64x128xf32>
    tpu.vector_store %arg10[%c0_147, %c0_148], %250 {strides = array<i32>} : memref<64x128xf32, #tpu.memory_space<vmem>>, vector<64x128xf32>,
    %c0_149 = arith.constant 0 : index
    %c0_150 = arith.constant 0 : index
    %252 = vector.load %arg10[%c0_149, %c0_150] : memref<64x128xf32, #tpu.memory_space<vmem>>, vector<16x128xf32>
    %c8_151 = arith.constant 8 : index
    %c0_152 = arith.constant 0 : index
    %253 = vector.load %arg10[%c8_151, %c0_152] : memref<64x128xf32, #tpu.memory_space<vmem>>, vector<16x128xf32>
    %c16_153 = arith.constant 16 : index
    %c0_154 = arith.constant 0 : index
    %254 = vector.load %arg10[%c16_153, %c0_154] : memref<64x128xf32, #tpu.memory_space<vmem>>, vector<16x128xf32>
    %255 = tpu.concatenate %252, %253, %254 in 1 : vector<16x128xf32>, vector<16x128xf32>, vector<16x128xf32> -> vector<16x384xf32>
    %c32_155 = arith.constant 32 : index
    %c0_156 = arith.constant 0 : index
    %256 = vector.load %arg10[%c32_155, %c0_156] : memref<64x128xf32, #tpu.memory_space<vmem>>, vector<16x128xf32>
    %c40_157 = arith.constant 40 : index
    %c0_158 = arith.constant 0 : index
    %257 = vector.load %arg10[%c40_157, %c0_158] : memref<64x128xf32, #tpu.memory_space<vmem>>, vector<16x128xf32>
    %c48_159 = arith.constant 48 : index
    %c0_160 = arith.constant 0 : index
    %258 = vector.load %arg10[%c48_159, %c0_160] : memref<64x128xf32, #tpu.memory_space<vmem>>, vector<16x128xf32>
    %259 = tpu.concatenate %256, %257, %258 in 1 : vector<16x128xf32>, vector<16x128xf32>, vector<16x128xf32> -> vector<16x384xf32>
    %260 = tpu.concatenate %255, %259 in 0 : vector<16x384xf32>, vector<16x384xf32> -> vector<32x384xf32>
    %261 = arith.truncf %260 : vector<32x384xf32> to vector<32x384xbf16>
    %c0_161 = arith.constant 0 : index
    %c0_162 = arith.constant 0 : index
    %262 = vector.load %arg2[%c0_161, %c0_162] : memref<384x128xbf16, #tpu.memory_space<vmem>>, vector<384x128xbf16>
    %cst_163 = arith.constant dense<0.000000e+00> : vector<32x128xf32>
    %263 = tpu.matmul %261, %262, %cst_163 {dimension_numbers = #tpu.dot_dimension_numbers<[1], [0], [0], [1], [0, 0, 1, 1], [], []>} : vector<32x384xbf16>, vector<384x128xbf16>, vector<32x128xf32> -> vector<32x128xf32>
    %264 = vector.extract_strided_slice %263 {offsets = [0, 96], sizes = [32, 32], strides = [1, 1]} : vector<32x128xf32> to vector<32x32xf32>
    %c3 = arith.constant 3 : index
    %c0_164 = arith.constant 0 : index
    %c0_165 = arith.constant 0 : index
    %265 = vector.load %arg3[%c3, %c0_164, %c0_165] : memref<4x1x32xf32, #tpu.memory_space<vmem>>, vector<1x1x32xf32>
    %266 = vector.shape_cast %265 : vector<1x1x32xf32> to vector<1x32xf32>
    %c3_166 = arith.constant 3 : index
    %c0_167 = arith.constant 0 : index
    %c0_168 = arith.constant 0 : index
    %267 = vector.load %arg4[%c3_166, %c0_167, %c0_168] : memref<4x1x32xf32, #tpu.memory_space<vmem>>, vector<1x1x32xf32>
    %268 = vector.shape_cast %267 : vector<1x1x32xf32> to vector<1x32xf32>
    %cst_169 = arith.constant dense<0.000000e+00> : vector<32xf32>
    %269 = vector.multi_reduction <add>, %264, %cst_169 [1] : vector<32x32xf32> to vector<32xf32>
    %270 = vector.shape_cast %269 : vector<32xf32> to vector<32x1xf32>
    %cst_170 = arith.constant 3.200000e+01 : f32
    %271 = vector.broadcast %cst_170 : f32 to vector<32x1xf32>
    %272 = arith.divf %270, %271 : vector<32x1xf32>
    %273 = vector.broadcast %272 : vector<32x1xf32> to vector<32x32xf32>
    %274 = arith.subf %264, %273 : vector<32x32xf32>
    %275 = arith.mulf %274, %274 : vector<32x32xf32>
    %cst_171 = arith.constant dense<0.000000e+00> : vector<32xf32>
    %276 = vector.multi_reduction <add>, %275, %cst_171 [1] : vector<32x32xf32> to vector<32xf32>
    %277 = vector.shape_cast %276 : vector<32xf32> to vector<32x1xf32>
    %cst_172 = arith.constant 3.200000e+01 : f32
    %278 = vector.broadcast %cst_172 : f32 to vector<32x1xf32>
    %279 = arith.divf %277, %278 : vector<32x1xf32>
    %280 = vector.broadcast %272 : vector<32x1xf32> to vector<32x32xf32>
    %281 = arith.subf %264, %280 : vector<32x32xf32>
    %cst_173 = arith.constant 9.99999974E-6 : f32
    %282 = vector.broadcast %cst_173 : f32 to vector<32x1xf32>
    %283 = arith.addf %279, %282 : vector<32x1xf32>
    %284 = math.rsqrt %283 : vector<32x1xf32>
    %285 = vector.broadcast %284 : vector<32x1xf32> to vector<32x32xf32>
    %286 = arith.mulf %281, %285 : vector<32x32xf32>
    %287 = vector.broadcast %266 : vector<1x32xf32> to vector<32x32xf32>
    %288 = arith.mulf %286, %287 : vector<32x32xf32>
    %289 = vector.broadcast %268 : vector<1x32xf32> to vector<32x32xf32>
    %290 = arith.addf %288, %289 : vector<32x32xf32>
    %291 = arith.addf %290, %150 : vector<32x32xf32>
    %cst_174 = arith.constant 0.000000e+00 : f32
    %292 = vector.broadcast %cst_174 : f32 to vector<32x32xf32>
    %293 = arith.maximumf %291, %292 : vector<32x32xf32>
    %294 = vector.extract_strided_slice %293 {offsets = [0, 0], sizes = [16, 32], strides = [1, 1]} : vector<32x32xf32> to vector<16x32xf32>
    %cst_175 = arith.constant dense<0.000000e+00> : vector<32xf32>
    %295 = vector.multi_reduction <add>, %294, %cst_175 [0] : vector<16x32xf32> to vector<32xf32>
    %296 = vector.shape_cast %295 : vector<32xf32> to vector<1x32xf32>
    %cst_176 = arith.constant 1.600000e+01 : f32
    %297 = vector.broadcast %cst_176 : f32 to vector<1x32xf32>
    %298 = arith.divf %296, %297 : vector<1x32xf32>
    %299 = vector.extract_strided_slice %293 {offsets = [16, 0], sizes = [16, 32], strides = [1, 1]} : vector<32x32xf32> to vector<16x32xf32>
    %cst_177 = arith.constant dense<0.000000e+00> : vector<32xf32>
    %300 = vector.multi_reduction <add>, %299, %cst_177 [0] : vector<16x32xf32> to vector<32xf32>
    %301 = vector.shape_cast %300 : vector<32xf32> to vector<1x32xf32>
    %cst_178 = arith.constant 1.600000e+01 : f32
    %302 = vector.broadcast %cst_178 : f32 to vector<1x32xf32>
    %303 = arith.divf %301, %302 : vector<1x32xf32>
    %304 = tpu.concatenate %298, %303 in 0 : vector<1x32xf32>, vector<1x32xf32> -> vector<2x32xf32>
    %305 = arith.truncf %304 : vector<2x32xf32> to vector<2x32xbf16>
    %c0_179 = arith.constant 0 : index
    %c0_180 = arith.constant 0 : index
    %306 = vector.load %arg5[%c0_179, %c0_180] : memref<32x512xbf16, #tpu.memory_space<vmem>>, vector<32x512xbf16>
    %cst_181 = arith.constant dense<0.000000e+00> : vector<2x512xf32>
    %307 = tpu.matmul %305, %306, %cst_181 {dimension_numbers = #tpu.dot_dimension_numbers<[1], [0], [0], [1], [0, 0, 1, 1], [], []>} : vector<2x32xbf16>, vector<32x512xbf16>, vector<2x512xf32> -> vector<2x512xf32>
    %c0_182 = arith.constant 0 : index
    %c0_183 = arith.constant 0 : index
    %308 = vector.load %arg6[%c0_182, %c0_183] : memref<1x512xf32, #tpu.memory_space<vmem>>, vector<1x512xf32>
    %309 = vector.broadcast %308 : vector<1x512xf32> to vector<2x512xf32>
    %310 = arith.addf %307, %309 : vector<2x512xf32>
    %cst_184 = arith.constant 0.000000e+00 : f32
    %311 = vector.broadcast %cst_184 : f32 to vector<2x512xf32>
    %312 = arith.maximumf %310, %311 : vector<2x512xf32>
    %c0_185 = arith.constant 0 : index
    %c0_186 = arith.constant 0 : index
    %313 = vector.load %arg7[%c0_185, %c0_186] : memref<1x512xf32, #tpu.memory_space<vmem>>, vector<1x512xf32>
    %314 = vector.broadcast %313 : vector<1x512xf32> to vector<2x512xf32>
    %315 = arith.mulf %312, %314 : vector<2x512xf32>
    %cst_187 = arith.constant dense<0.000000e+00> : vector<2xf32>
    %316 = vector.multi_reduction <add>, %315, %cst_187 [1] : vector<2x512xf32> to vector<2xf32>
    %317 = vector.shape_cast %316 : vector<2xf32> to vector<2x1xf32>
    %c0_188 = arith.constant 0 : index
    %c0_189 = arith.constant 0 : index
    %318 = memref.load %arg8[%c0_188, %c0_189] : memref<1x1xf32, #tpu.memory_space<smem>>
    %319 = vector.broadcast %318 : f32 to vector<2x1xf32>
    %320 = arith.addf %317, %319 : vector<2x1xf32>
    %c0_190 = arith.constant 0 : index
    %c0_191 = arith.constant 0 : index
    %321 = vector.load %arg9[%c0_190, %c0_191] : memref<2x1xf32, #tpu.memory_space<vmem>>, vector<2x1xf32>
    tpu.vector_store %arg9[%c0_190, %c0_191], %320 {strides = array<i32>} : memref<2x1xf32, #tpu.memory_space<vmem>>, vector<2x1xf32>,
    return
  }
}

</mosaic_0001>

<llo_original>
// kernel: protein_resnet_forward.1
$region0: #{protein_resnet_forward.1}
  #allocation0 [shape = 'u32[]', space=smem, size = 0x4, offset = 0x4, fixed_abs, tag = 'smem constant byte address 0x4 - core index']
  #allocation1 [shape = 'u32[144,128]{1,0:T(1,128)}', space=vmem, size = 0x12000, scoped, tag = 'internal scratch']
  #allocation2 [shape = 'f32[64,128]{1,0:T(8,128)}', space=vmem, size = 0x8000, scoped, tag = 'scratch operand']
  #allocation3 [shape = 'f32[1,1]{1,0:T(1,128)S(6)}', space=smem, size = 0x200, scoped, tag = 'scoped memory for protein_resnet_forward.1']
  %s0 = inlined_call_operand.vmem [shape: s32[32,1], index: 0, kind: input, shape index: {}]
  %s1 = inlined_call_operand.vmem [shape: f32[25,32], index: 1, kind: input, shape index: {}]
  %s2 = inlined_call_operand.hbm [shape: bf16[384,128], index: 2, kind: input, shape index: {}]
  %s3 = inlined_call_operand.vmem [shape: f32[4,1,32], index: 3, kind: input, shape index: {}]
  %s4 = inlined_call_operand.hbm [shape: f32[4,1,32], index: 4, kind: input, shape index: {}]
  %s5 = inlined_call_operand.hbm [shape: bf16[32,512], index: 5, kind: input, shape index: {}]
  %s6 = inlined_call_operand.vmem [shape: f32[1,512], index: 6, kind: input, shape index: {}]
  %s7 = inlined_call_operand.vmem [shape: f32[1,512], index: 7, kind: input, shape index: {}]
  %s8 = inlined_call_operand.<no memory space> [shape: f32[1,1], index: 8, kind: input, shape index: {}]
  %s9 = inlined_call_operand.vmem [shape: f32[2,1], index: 9, kind: output, shape index: {}]
  %s10 = sld [smem:[#allocation0]]
  $region58: #{protein_resnet_forward.1} parent=0
    _
  %s12 = ssub.s32 1, %s10
  %s13 = scalar_select 0, %s12, %s10
  %14 = sst [smem:[#allocation3]] %s8
  $region1: #{protein_resnet_forward.1} parent=0
    #allocation4 [shape = 'u8[98304]{0}', space=vmem, size = 0x18000, scoped, tag = 'input window, operand 2, single buffered']
    #allocation5 [shape = 's32[1]{0}', space=sflag, size = 0x4, scoped, tag = 'scoped memory for protein_resnet_forward.1']
    #allocation6 [shape = 'u8[2048]{0}', space=vmem, size = 0x800, scoped, tag = 'input window, operand 4, single buffered']
    #allocation7 [shape = 's32[1]{0}', space=sflag, size = 0x4, scoped, tag = 'scoped memory for protein_resnet_forward.1']
    #allocation8 [shape = 'u8[32768]{0}', space=vmem, size = 0x8000, scoped, tag = 'input window, operand 5, single buffered']
    %15 = vsyncpa [#allocation5], 0
    %16 = vsyncpa [#allocation7], 0
    // Predicated region
    $region2: #{protein_resnet_forward.1} parent=1 // pred_check
      _
    $region3: #{protein_resnet_forward.1} parent=1 // pred_check_branch
      %18 = sbr.rel (0) target = $region5
    $region4: #{protein_resnet_forward.1} parent=1 // pred_region
      _
    $region5: #{protein_resnet_forward.1} parent=1 // pred_fallthru
      _
    // Predicated region
    $region6: #{protein_resnet_forward.1} parent=1 // pred_check
      _
    $region7: #{protein_resnet_forward.1} parent=1 // pred_check_branch
      %20 = sbr.rel (0) target = $region9
    $region8: #{protein_resnet_forward.1} parent=1 // pred_region
      _
    $region9: #{protein_resnet_forward.1} parent=1 // pred_fallthru
      _
    // Predicated region
    $region10: #{protein_resnet_forward.1} parent=1 // pred_check
      _
    $region11: #{protein_resnet_forward.1} parent=1 // pred_check_branch
      %22 = sbr.rel (0) target = $region13
    $region12: #{protein_resnet_forward.1} parent=1 // pred_region
      %s24 = ssub.s32 3072, 3072
      %25 = vsyncadd [#allocation5], %s24
      %s26 = sshll.u32 [#allocation4], 4
      %s27 = int_to_ptr.vmem [resolvable:$true] %s26
      %32 = dma.hbm_to_vmem [thread:$0]  %s2, 3072, %s27, [#allocation5], 64, 64, 4
    $region13: #{protein_resnet_forward.1} parent=1 // pred_fallthru
      _
    // Predicated region
    $region14: #{protein_resnet_forward.1} parent=1 // pred_check
      _
    $region15: #{protein_resnet_forward.1} parent=1 // pred_check_branch
      %34 = sbr.rel (0) target = $region17
    $region16: #{protein_resnet_forward.1} parent=1 // pred_region
      _
    $region17: #{protein_resnet_forward.1} parent=1 // pred_fallthru
      _
    // Predicated region
    $region18: #{protein_resnet_forward.1} parent=1 // pred_check
      _
    $region19: #{protein_resnet_forward.1} parent=1 // pred_check_branch
      %36 = sbr.rel (0) target = $region21
    $region20: #{protein_resnet_forward.1} parent=1 // pred_region
      %s38 = ssub.s32 64, 64
      %39 = vsyncadd [#allocation7], %s38
      %s40 = sshll.u32 [#allocation6], 4
      %s41 = int_to_ptr.vmem [resolvable:$true] %s40
      %46 = dma.hbm_to_vmem [thread:$0]  %s4, 64, %s41, [#allocation7], 16, 16, 1
    $region21: #{protein_resnet_forward.1} parent=1 // pred_fallthru
      _
    // Predicated region
    $region22: #{protein_resnet_forward.1} parent=1 // pred_check
      _
    $region23: #{protein_resnet_forward.1} parent=1 // pred_check_branch
      %48 = sbr.rel (0) target = $region25
    $region24: #{protein_resnet_forward.1} parent=1 // pred_region
      %s50 = ssub.s32 1024, 1024
      %51 = vsyncadd [#allocation7], %s50
      %s52 = sshll.u32 [#allocation8], 4
      %s53 = int_to_ptr.vmem [resolvable:$true] %s52
      %58 = dma.hbm_to_vmem [thread:$0]  %s5, 1024, %s53, [#allocation7], 256, 256, 16
    $region25: #{protein_resnet_forward.1} parent=1 // pred_fallthru
      _
    // Predicated region
    $region26: #{protein_resnet_forward.1} parent=1 // pred_check
      _
    $region27: #{protein_resnet_forward.1} parent=1 // pred_check_branch
      %60 = sbr.rel (0) target = $region29
    $region28: #{protein_resnet_forward.1} parent=1 // pred_region
      _
    $region29: #{protein_resnet_forward.1} parent=1 // pred_fallthru
      _
    // Predicated region
    $region30: #{protein_resnet_forward.1} parent=1 // pred_check
      _
    $region31: #{protein_resnet_forward.1} parent=1 // pred_check_branch
      %62 = sbr.rel (0) target = $region33
    $region32: #{protein_resnet_forward.1} parent=1 // pred_region
      _
    $region33: #{protein_resnet_forward.1} parent=1 // pred_fallthru
      _
    // Predicated region
    $region34: #{protein_resnet_forward.1} parent=1 // pred_check
      _
    $region35: #{protein_resnet_forward.1} parent=1 // pred_check_branch
      %64 = sbr.rel (0) target = $region37
    $region36: #{protein_resnet_forward.1} parent=1 // pred_region
      _
    $region37: #{protein_resnet_forward.1} parent=1 // pred_fallthru
      _
    // Predicated region
    $region38: #{protein_resnet_forward.1} parent=1 // pred_check
      _
    $region39: #{protein_resnet_forward.1} parent=1 // pred_check_branch
      %66 = sbr.rel (0) target = $region41
    $region40: #{protein_resnet_forward.1} parent=1 // pred_region
      %67 = dma.done [#allocation5], 3072
    $region41: #{protein_resnet_forward.1} parent=1 // pred_fallthru
      _
    // Predicated region
    $region42: #{protein_resnet_forward.1} parent=1 // pred_check
      _
    $region43: #{protein_resnet_forward.1} parent=1 // pred_check_branch
      %69 = sbr.rel (0) target = $region45
    $region44: #{protein_resnet_forward.1} parent=1 // pred_region
      %70 = dma.done [#allocation7], 64
    $region45: #{protein_resnet_forward.1} parent=1 // pred_fallthru
      _
    // Predicated region
    $region46: #{protein_resnet_forward.1} parent=1 // pred_check
      _
    $region47: #{protein_resnet_forward.1} parent=1 // pred_check_branch
      %72 = sbr.rel (0) target = $region49
    $region48: #{protein_resnet_forward.1} parent=1 // pred_region
      %73 = dma.done [#allocation7], 1024
    $region49: #{protein_resnet_forward.1} parent=1 // pred_fallthru
      _
    %v75 = vld [vmem:[%s0] sm:$0xff]
    %v76 = vld [vmem:[%s0 + $0x8] sm:$0xff]
    %v77 = vld [vmem:[%s0 + $0x10] sm:$0xff]
    %v78 = vld [vmem:[%s0 + $0x18] sm:$0xff]
    %v79 = vlaneseq
    %v80 = vand.u32 %v79, 127
    %81 = vset.pattern.permute.xlu0 0
    %82 = vperm.xlu0 %81, %v75
    %v83 = vpop.permute.xlu0 %82
    %84 = vset.pattern.permute.xlu0 0
    %85 = vperm.xlu0 %84, %v76
    %v86 = vpop.permute.xlu0 %85
    %87 = vset.pattern.permute.xlu0 0
    %88 = vperm.xlu0 %87, %v77
    %v89 = vpop.permute.xlu0 %88
    %90 = vset.pattern.permute.xlu0 0
    %91 = vperm.xlu0 %90, %v78
    %v92 = vpop.permute.xlu0 %91
    %vm93 = vcmp.eq.s32.totalorder %v83, %v80
    %vm94 = vcmp.eq.s32.totalorder %v86, %v80
    %vm95 = vcmp.eq.s32.totalorder %v89, %v80
    %vm96 = vcmp.eq.s32.totalorder %v92, %v80
    %v97 = vsel %vm93, 1, 0
    %v98 = vsel %vm94, 1, 0
    %v99 = vsel %vm95, 1, 0
    %v100 = vsel %vm96, 1, 0
    %v101 = vcvt.s32.f32 %v97
    %v102 = vcvt.s32.f32 %v98
    %v103 = vcvt.s32.f32 %v99
    %v104 = vcvt.s32.f32 %v100
    %v105 = vld [vmem:[%s1] sm:$0xff]
    %v106 = vld [vmem:[%s1 + $0x8] sm:$0xff]
    %v107 = vld [vmem:[%s1 + $0x10] sm:$0xff]
    %v108 = vld [vmem:[%s1 + $0x18] sm:$0x1]
    %vm109 = vcmask 203776
    %v111 = vsel %vm109, %v101, 0
    %v114 = vsel %vm109, %v102, 0
    %v117 = vsel %vm109, %v103, 0
    %v120 = vsel %vm109, %v104, 0
    %vm122 = vcmask 1040384
    %v124 = vsel %vm122, %v108, 0
    %126 = vmatprep.subr.mxu0 0.0
    %127 = vmatpush1.msra.mxu0 0.0
    %128 = vmatprep.subr.mxu0 0.0
    %129 = vmatpush1.msra.mxu0 0.0
    %130 = vmatprep.subr.mxu0 0.0
    %131 = vmatpush1.msra.mxu0 0.0
    %132 = vmatprep.subr.mxu0 0.0
    %133 = vmatpush1.msra.mxu0 0.0
    %134 = vmatprep.subr.mxu0 0.0
    %135 = vmatpush1.msra.mxu0 0.0
    %136 = vmatprep.subr.mxu0 0.0
    %137 = vmatpush1.msra.mxu0 0.0
    %138 = vmatprep.subr.mxu0 0.0
    %139 = vmatpush1.msra.mxu0 0.0
    %140 = vmatprep.subr.mxu0 0.0
    %141 = vmatpush1.msra.mxu0 0.0
    %142 = vmatprep.subr.mxu0 0.0
    %143 = vmatpush1.msra.mxu0 0.0
    %144 = vmatprep.subr.mxu0 0.0
    %145 = vmatpush1.msra.mxu0 0.0
    %146 = vmatprep.subr.mxu0 0.0
    %147 = vmatpush1.msra.mxu0 0.0
    %148 = vmatprep.subr.mxu0 0.0
    %149 = vmatpush1.msra.mxu0 0.0
    %150 = vmatprep.subr.mxu0 0.0
    %151 = vmatpush1.msra.mxu0 %v124
    %152 = vmatprep.subr.mxu0 0.0
    %153 = vmatpush1.msra.mxu0 %v107
    %154 = vmatprep.subr.mxu0 0.0
    %155 = vmatpush1.msra.mxu0 %v106
    %156 = vmatprep.subr.mxu0 0.0
    %157 = vmatpush1.msra.mxu0 %v105
    %158 = vmatprep.subr.mxu0 0.0
    %159 = vmatpush2.msra.mxu0 0.0
    %160 = vmatprep.subr.mxu0 0.0
    %161 = vmatpush2.msra.mxu0 0.0
    %162 = vmatprep.subr.mxu0 0.0
    %163 = vmatpush2.msra.mxu0 0.0
    %164 = vmatprep.subr.mxu0 0.0
    %165 = vmatpush2.msra.mxu0 0.0
    %166 = vmatprep.subr.mxu0 0.0
    %167 = vmatpush2.msra.mxu0 0.0
    %168 = vmatprep.subr.mxu0 0.0
    %169 = vmatpush2.msra.mxu0 0.0
    %170 = vmatprep.subr.mxu0 0.0
    %171 = vmatpush2.msra.mxu0 0.0
    %172 = vmatprep.subr.mxu0 0.0
    %173 = vmatpush2.msra.mxu0 0.0
    %174 = vmatprep.subr.mxu0 0.0
    %175 = vmatpush2.msra.mxu0 0.0
    %176 = vmatprep.subr.mxu0 0.0
    %177 = vmatpush2.msra.mxu0 0.0
    %178 = vmatprep.subr.mxu0 0.0
    %179 = vmatpush2.msra.mxu0 0.0
    %180 = vmatprep.subr.mxu0 0.0
    %181 = vmatpush2.msra.mxu0 0.0
    %182 = vmatprep.subr.mxu0 0.0
    %183 = vmatpush2.msra.mxu0 0.0
    %184 = vmatprep.subr.mxu0 0.0
    %185 = vmatpush2.msra.mxu0 0.0
    %186 = vmatprep.subr.mxu0 0.0
    %187 = vmatpush2.msra.mxu0 0.0
    %188 = vmatprep.subr.mxu0 0.0
    %189 = vmatpush2.msra.mxu0 0.0
    %190 = vmatprep.mubr.f32.mxu0 0.0
    %191 = vmatmul.mubr.f32.gmra.mxu0 %v111
    %v192 = vpop.f32.mrf.mxu0
    %v193 = vadd.f32 0.0, %v192
    %v194 = vpop.f32.mrf.mxu0
    %195 = vmatprep.mubr.f32.mxu0 0.0
    %196 = vmatmul.mubr.f32.gmra.mxu0 %v114
    %v197 = vpop.f32.mrf.mxu0
    %v198 = vadd.f32 0.0, %v197
    %v199 = vpop.f32.mrf.mxu0
    %200 = vmatprep.mubr.f32.mxu0 0.0
    %201 = vmatmul.mubr.f32.gmra.mxu0 %v117
    %v202 = vpop.f32.mrf.mxu0
    %v203 = vadd.f32 0.0, %v202
    %v204 = vpop.f32.mrf.mxu0
    %205 = vmatprep.mubr.f32.mxu0 0.0
    %206 = vmatmul.mubr.f32.gmra.mxu0 %v120
    %v207 = vpop.f32.mrf.mxu0
    %v208 = vadd.f32 0.0, %v207
    %v209 = vpop.f32.mrf.mxu0
    %210 = vdwg.mxu0
    %vm213 = vcmask 1045504
    %v214 = vrot.slane %v193, 2
    %v215 = vrot.slane %v198, 2
    %v216 = vsel %vm213, %v214, %v215
    %v221 = vrot.slane %v203, 2
    %v222 = vrot.slane %v208, 2
    %v223 = vsel %vm213, %v221, %v222
    %v226 = vsel %vm213, 0.0, %v214
    %v227 = vsel %vm213, %v215, 0.0
    %v228 = vsel %vm213, 0.0, %v221
    %v229 = vsel %vm213, %v222, 0.0
    %vm230 = vcmask 1043456
    %v231 = vrot.slane %v193, 4
    %v232 = vrot.slane %v198, 4
    %v233 = vsel %vm230, %v231, %v232
    %v236 = vrot.slane %v203, 4
    %v237 = vrot.slane %v208, 4
    %v238 = vsel %vm230, %v236, %v237
    %v241 = vsel %vm230, 0.0, %v231
    %v242 = vsel %vm230, %v232, 0.0
    %v243 = vsel %vm230, 0.0, %v236
    %v244 = vsel %vm230, %v237, 0.0
    %vm245 = vcmask 1041408
    %v246 = vrot.slane %v193, 6
    %v247 = vrot.slane %v198, 6
    %v248 = vsel %vm245, %v246, %v247
    %v251 = vrot.slane %v203, 6
    %v252 = vrot.slane %v208, 6
    %v253 = vsel %vm245, %v251, %v252
    %v256 = vsel %vm245, 0.0, %v246
    %v257 = vsel %vm245, %v247, 0.0
    %v258 = vsel %vm245, 0.0, %v251
    %v259 = vsel %vm245, %v252, 0.0
    %265 = vrot.lane.b32.xlu0 %v226, 32
    %v266 = vpop.permute.xlu0 %265
    %267 = vrot.lane.b32.xlu0 %v216, 32
    %v268 = vpop.permute.xlu0 %267
    %269 = vrot.lane.b32.xlu0 %v227, 32
    %v270 = vpop.permute.xlu0 %269
    %271 = vrot.lane.b32.xlu0 0.0, 32
    %v272 = vpop.permute.xlu0 %271
    %273 = vrot.lane.b32.xlu0 %v228, 32
    %v274 = vpop.permute.xlu0 %273
    %275 = vrot.lane.b32.xlu0 %v223, 32
    %v276 = vpop.permute.xlu0 %275
    %277 = vrot.lane.b32.xlu0 %v229, 32
    %v278 = vpop.permute.xlu0 %277
    %290 = vrot.lane.b32.xlu0 %v241, 64
    %v291 = vpop.permute.xlu0 %290
    %292 = vrot.lane.b32.xlu0 %v233, 64
    %v293 = vpop.permute.xlu0 %292
    %294 = vrot.lane.b32.xlu0 %v242, 64
    %v295 = vpop.permute.xlu0 %294
    %296 = vrot.lane.b32.xlu0 0.0, 64
    %v297 = vpop.permute.xlu0 %296
    %298 = vrot.lane.b32.xlu0 %v243, 64
    %v299 = vpop.permute.xlu0 %298
    %300 = vrot.lane.b32.xlu0 %v238, 64
    %v301 = vpop.permute.xlu0 %300
    %302 = vrot.lane.b32.xlu0 %v244, 64
    %v303 = vpop.permute.xlu0 %302
    %315 = vrot.lane.b32.xlu0 %v256, 96
    %v316 = vpop.permute.xlu0 %315
    %317 = vrot.lane.b32.xlu0 %v248, 96
    %v318 = vpop.permute.xlu0 %317
    %319 = vrot.lane.b32.xlu0 %v257, 96
    %v320 = vpop.permute.xlu0 %319
    %321 = vrot.lane.b32.xlu0 0.0, 96
    %v322 = vpop.permute.xlu0 %321
    %323 = vrot.lane.b32.xlu0 %v258, 96
    %v324 = vpop.permute.xlu0 %323
    %325 = vrot.lane.b32.xlu0 %v253, 96
    %v326 = vpop.permute.xlu0 %325
    %327 = vrot.lane.b32.xlu0 %v259, 96
    %v328 = vpop.permute.xlu0 %327
    %vm336 = vcmask 261120
    %v337 = vsel %vm336, 0.0, %v266
    %v338 = vsel %vm336, %v193, %v268
    %v339 = vsel %vm336, %v198, %v270
    %v340 = vsel %vm336, 0.0, %v272
    %v341 = vsel %vm336, 0.0, %v274
    %v342 = vsel %vm336, %v203, %v276
    %v343 = vsel %vm336, %v208, %v278
    %vm344 = vcmask 523264
    %v345 = vsel %vm344, %v337, %v291
    %v346 = vsel %vm344, %v338, %v293
    %v347 = vsel %vm344, %v339, %v295
    %v348 = vsel %vm344, %v340, %v297
    %v349 = vsel %vm344, %v341, %v299
    %v350 = vsel %vm344, %v342, %v301
    %v351 = vsel %vm344, %v343, %v303
    %vm352 = vcmask 785408
    %v353 = vsel %vm352, %v345, %v316
    %v354 = vsel %vm352, %v346, %v318
    %v355 = vsel %vm352, %v347, %v320
    %v356 = vsel %vm352, %v348, %v322
    %v357 = vsel %vm352, %v349, %v324
    %v358 = vsel %vm352, %v350, %v326
    %v359 = vsel %vm352, %v351, %v328
    %360 = vst [vmem:[#allocation2] sm:$0xff] %v353
    %361 = vst [vmem:[#allocation2 + $0x8] sm:$0xff] %v354
    %362 = vst [vmem:[#allocation2 + $0x10] sm:$0xff] %v355
    %363 = vst [vmem:[#allocation2 + $0x18] sm:$0xff] %v356
    %364 = vst [vmem:[#allocation2 + $0x20] sm:$0xff] %v357
    %365 = vst [vmem:[#allocation2 + $0x28] sm:$0xff] %v358
    %366 = vst [vmem:[#allocation2 + $0x30] sm:$0xff] %v359
    %367 = vst [vmem:[#allocation2 + $0x38] sm:$0xff] %v356
    %v368 = vld [vmem:[#allocation2] sm:$0xff]
    %v369 = vld [vmem:[#allocation2 + $0x8] sm:$0xff]
    %v370 = vld [vmem:[#allocation2 + $0x10] sm:$0xff]
    %v371 = vld [vmem:[#allocation2 + $0x18] sm:$0xff]
    %v372 = vld [vmem:[#allocation2 + $0x20] sm:$0xff]
    %v373 = vld [vmem:[#allocation2 + $0x28] sm:$0xff]
    %v374 = vld [vmem:[#allocation2 + $0x30] sm:$0xff]
    %v375 = vld [vmem:[#allocation2 + $0x30] sm:$0xff]
    %v376 = vld [vmem:[#allocation2 + $0x38] sm:$0xff]
    %v377 = vpack.c.bf16 %v369, %v368
    %v378 = vpack.c.bf16 %v370, %v369
    %v379 = vpack.c.bf16 %v371, %v370
    %v380 = vpack.c.bf16 %v373, %v372
    %v381 = vpack.c.bf16 %v374, %v373
    %v382 = vpack.c.bf16 %v376, %v375
    %v383 = vld [vmem:[#allocation4] sm:$0xf]
    %v384 = vld [vmem:[#allocation4 + $0x4] sm:$0xf]
    %v385 = vld [vmem:[#allocation4 + $0x8] sm:$0xf]
    %v386 = vld [vmem:[#allocation4 + $0xc] sm:$0xf]
    %v387 = vld [vmem:[#allocation4 + $0x10] sm:$0xf]
    %v388 = vld [vmem:[#allocation4 + $0x14] sm:$0xf]
    %v389 = vld [vmem:[#allocation4 + $0x18] sm:$0xf]
    %v390 = vld [vmem:[#allocation4 + $0x1c] sm:$0xf]
    %v391 = vld [vmem:[#allocation4 + $0x20] sm:$0xf]
    %v392 = vld [vmem:[#allocation4 + $0x24] sm:$0xf]
    %v393 = vld [vmem:[#allocation4 + $0x28] sm:$0xf]
    %v394 = vld [vmem:[#allocation4 + $0x2c] sm:$0xf]
    %v395 = vld [vmem:[#allocation4 + $0x30] sm:$0xf]
    %v396 = vld [vmem:[#allocation4 + $0x34] sm:$0xf]
    %v397 = vld [vmem:[#allocation4 + $0x38] sm:$0xf]
    %v398 = vld [vmem:[#allocation4 + $0x3c] sm:$0xf]
    %v399 = vld [vmem:[#allocation4 + $0x40] sm:$0xf]
    %v400 = vld [vmem:[#allocation4 + $0x44] sm:$0xf]
    %v401 = vld [vmem:[#allocation4 + $0x48] sm:$0xf]
    %v402 = vld [vmem:[#allocation4 + $0x4c] sm:$0xf]
    %v403 = vld [vmem:[#allocation4 + $0x50] sm:$0xf]
    %v404 = vld [vmem:[#allocation4 + $0x54] sm:$0xf]
    %v405 = vld [vmem:[#allocation4 + $0x58] sm:$0xf]
    %v406 = vld [vmem:[#allocation4 + $0x5c] sm:$0xf]
    %v407 = vld [vmem:[#allocation4 + $0x60] sm:$0xf]
    %v408 = vld [vmem:[#allocation4 + $0x64] sm:$0xf]
    %v409 = vld [vmem:[#allocation4 + $0x68] sm:$0xf]
    %v410 = vld [vmem:[#allocation4 + $0x6c] sm:$0xf]
    %v411 = vld [vmem:[#allocation4 + $0x70] sm:$0xf]
    %v412 = vld [vmem:[#allocation4 + $0x74] sm:$0xf]
    %v413 = vld [vmem:[#allocation4 + $0x78] sm:$0xf]
    %v414 = vld [vmem:[#allocation4 + $0x7c] sm:$0xf]
    %v415 = vld [vmem:[#allocation4 + $0x80] sm:$0xf]
    %v416 = vld [vmem:[#allocation4 + $0x84] sm:$0xf]
    %v417 = vld [vmem:[#allocation4 + $0x88] sm:$0xf]
    %v418 = vld [vmem:[#allocation4 + $0x8c] sm:$0xf]
    %v419 = vld [vmem:[#allocation4 + $0x90] sm:$0xf]
    %v420 = vld [vmem:[#allocation4 + $0x94] sm:$0xf]
    %v421 = vld [vmem:[#allocation4 + $0x98] sm:$0xf]
    %v422 = vld [vmem:[#allocation4 + $0x9c] sm:$0xf]
    %v423 = vld [vmem:[#allocation4 + $0xa0] sm:$0xf]
    %v424 = vld [vmem:[#allocation4 + $0xa4] sm:$0xf]
    %v425 = vld [vmem:[#allocation4 + $0xa8] sm:$0xf]
    %v426 = vld [vmem:[#allocation4 + $0xac] sm:$0xf]
    %v427 = vld [vmem:[#allocation4 + $0xb0] sm:$0xf]
    %v428 = vld [vmem:[#allocation4 + $0xb4] sm:$0xf]
    %v429 = vld [vmem:[#allocation4 + $0xb8] sm:$0xf]
    %v430 = vld [vmem:[#allocation4 + $0xbc] sm:$0xf]
    %v479 = vunpack.c.l.b16 %v383
    %v480 = vunpack.c.l.b16 %v384
    %v481 = vunpack.c.l.b16 %v385
    %v482 = vunpack.c.l.b16 %v386
    %v483 = vunpack.c.l.b16 %v387
    %v484 = vunpack.c.l.b16 %v388
    %v485 = vunpack.c.l.b16 %v389
    %v486 = vunpack.c.l.b16 %v390
    %v487 = vunpack.c.l.b16 %v391
    %v488 = vunpack.c.l.b16 %v392
    %v489 = vunpack.c.l.b16 %v393
    %v490 = vunpack.c.l.b16 %v394
    %v491 = vunpack.c.l.b16 %v395
    %v492 = vunpack.c.l.b16 %v396
    %v493 = vunpack.c.l.b16 %v397
    %v494 = vunpack.c.l.b16 %v398
    %v495 = vunpack.c.l.b16 %v399
    %v496 = vunpack.c.l.b16 %v400
    %v497 = vunpack.c.l.b16 %v401
    %v498 = vunpack.c.l.b16 %v402
    %v499 = vunpack.c.l.b16 %v403
    %v500 = vunpack.c.l.b16 %v404
    %v501 = vunpack.c.l.b16 %v405
    %v502 = vunpack.c.l.b16 %v406
    %v503 = vunpack.c.l.b16 %v407
    %v504 = vunpack.c.l.b16 %v408
    %v505 = vunpack.c.l.b16 %v409
    %v506 = vunpack.c.l.b16 %v410
    %v507 = vunpack.c.l.b16 %v411
    %v508 = vunpack.c.l.b16 %v412
    %v509 = vunpack.c.l.b16 %v413
    %v510 = vunpack.c.l.b16 %v414
    %v511 = vunpack.c.l.b16 %v415
    %v512 = vunpack.c.l.b16 %v416
    %v513 = vunpack.c.l.b16 %v417
    %v514 = vunpack.c.l.b16 %v418
    %v515 = vunpack.c.l.b16 %v419
    %v516 = vunpack.c.l.b16 %v420
    %v517 = vunpack.c.l.b16 %v421
    %v518 = vunpack.c.l.b16 %v422
    %v519 = vunpack.c.l.b16 %v423
    %v520 = vunpack.c.l.b16 %v424
    %v521 = vunpack.c.l.b16 %v425
    %v522 = vunpack.c.l.b16 %v426
    %v523 = vunpack.c.l.b16 %v427
    %v524 = vunpack.c.l.b16 %v428
    %v525 = vunpack.c.l.b16 %v429
    %v526 = vunpack.c.l.b16 %v430
    %v527 = vpack.c.b16 %v480, %v479
    %v528 = vpack.c.b16 %v482, %v481
    %v529 = vpack.c.b16 %v484, %v483
    %v530 = vpack.c.b16 %v486, %v485
    %v531 = vpack.c.b16 %v488, %v487
    %v532 = vpack.c.b16 %v490, %v489
    %v533 = vpack.c.b16 %v492, %v491
    %v534 = vpack.c.b16 %v494, %v493
    %v535 = vpack.c.b16 %v496, %v495
    %v536 = vpack.c.b16 %v498, %v497
    %v537 = vpack.c.b16 %v500, %v499
    %v538 = vpack.c.b16 %v502, %v501
    %v539 = vpack.c.b16 %v504, %v503
    %v540 = vpack.c.b16 %v506, %v505
    %v541 = vpack.c.b16 %v508, %v507
    %v542 = vpack.c.b16 %v510, %v509
    %v543 = vpack.c.b16 %v512, %v511
    %v544 = vpack.c.b16 %v514, %v513
    %v545 = vpack.c.b16 %v516, %v515
    %v546 = vpack.c.b16 %v518, %v517
    %v547 = vpack.c.b16 %v520, %v519
    %v548 = vpack.c.b16 %v522, %v521
    %v549 = vpack.c.b16 %v524, %v523
    %v550 = vpack.c.b16 %v526, %v525
    %575 = vmatprep.subr.bf16.mxu0 0
    %576 = vmatpush1.bf16.msra.mxu0 %v534
    %577 = vmatprep.subr.bf16.mxu0 0
    %578 = vmatpush1.bf16.msra.mxu0 %v533
    %579 = vmatprep.subr.bf16.mxu0 0
    %580 = vmatpush1.bf16.msra.mxu0 %v532
    %581 = vmatprep.subr.bf16.mxu0 0
    %582 = vmatpush1.bf16.msra.mxu0 %v531
    %583 = vmatprep.subr.bf16.mxu0 0
    %584 = vmatpush1.bf16.msra.mxu0 %v530
    %585 = vmatprep.subr.bf16.mxu0 0
    %586 = vmatpush1.bf16.msra.mxu0 %v529
    %587 = vmatprep.subr.bf16.mxu0 0
    %588 = vmatpush1.bf16.msra.mxu0 %v528
    %589 = vmatprep.subr.bf16.mxu0 0
    %590 = vmatpush1.bf16.msra.mxu0 %v527
    %591 = vmatprep.subr.bf16.mxu0 0
    %592 = vmatpush2.bf16.msra.mxu0 %v542
    %593 = vmatprep.subr.bf16.mxu0 0
    %594 = vmatpush2.bf16.msra.mxu0 %v541
    %595 = vmatprep.subr.bf16.mxu0 0
    %596 = vmatpush2.bf16.msra.mxu0 %v540
    %597 = vmatprep.subr.bf16.mxu0 0
    %598 = vmatpush2.bf16.msra.mxu0 %v539
    %599 = vmatprep.subr.bf16.mxu0 0
    %600 = vmatpush2.bf16.msra.mxu0 %v538
    %601 = vmatprep.subr.bf16.mxu0 0
    %602 = vmatpush2.bf16.msra.mxu0 %v537
    %603 = vmatprep.subr.bf16.mxu0 0
    %604 = vmatpush2.bf16.msra.mxu0 %v536
    %605 = vmatprep.subr.bf16.mxu0 0
    %606 = vmatpush2.bf16.msra.mxu0 %v535
    %607 = vmatprep.mubr.bf16.mxu0 %v378
    %608 = vmatmul.mubr.bf16.gmra.mxu0 %v377
    %v609 = vpop.f32.mrf.mxu0
    %v610 = vadd.f32 0.0, %v609
    %v611 = vpop.f32.mrf.mxu0
    %v612 = vpop.f32.mrf.mxu0
    %v613 = vadd.f32 0.0, %v612
    %v614 = vpop.f32.mrf.mxu0
    %615 = vmatprep.mubr.bf16.mxu0 %v381
    %616 = vmatmul.mubr.bf16.gmra.mxu0 %v380
    %v617 = vpop.f32.mrf.mxu0
    %v618 = vadd.f32 0.0, %v617
    %v619 = vpop.f32.mrf.mxu0
    %v620 = vpop.f32.mrf.mxu0
    %v621 = vadd.f32 0.0, %v620
    %v622 = vpop.f32.mrf.mxu0
    %623 = vdwg.mxu0
    %624 = vmatprep.subr.bf16.mxu0 0
    %625 = vmatpush1.bf16.msra.mxu0 %v550
    %626 = vmatprep.subr.bf16.mxu0 0
    %627 = vmatpush1.bf16.msra.mxu0 %v549
    %628 = vmatprep.subr.bf16.mxu0 0
    %629 = vmatpush1.bf16.msra.mxu0 %v548
    %630 = vmatprep.subr.bf16.mxu0 0
    %631 = vmatpush1.bf16.msra.mxu0 %v547
    %632 = vmatprep.subr.bf16.mxu0 0
    %633 = vmatpush1.bf16.msra.mxu0 %v546
    %634 = vmatprep.subr.bf16.mxu0 0
    %635 = vmatpush1.bf16.msra.mxu0 %v545
    %636 = vmatprep.subr.bf16.mxu0 0
    %637 = vmatpush1.bf16.msra.mxu0 %v544
    %638 = vmatprep.subr.bf16.mxu0 0
    %639 = vmatpush1.bf16.msra.mxu0 %v543
    %640 = vmatprep.subr.bf16.mxu0 0
    %641 = vmatpush2.bf16.msra.mxu0 0
    %642 = vmatprep.subr.bf16.mxu0 0
    %643 = vmatpush2.bf16.msra.mxu0 0
    %644 = vmatprep.subr.bf16.mxu0 0
    %645 = vmatpush2.bf16.msra.mxu0 0
    %646 = vmatprep.subr.bf16.mxu0 0
    %647 = vmatpush2.bf16.msra.mxu0 0
    %648 = vmatprep.subr.bf16.mxu0 0
    %649 = vmatpush2.bf16.msra.mxu0 0
    %650 = vmatprep.subr.bf16.mxu0 0
    %651 = vmatpush2.bf16.msra.mxu0 0
    %652 = vmatprep.subr.bf16.mxu0 0
    %653 = vmatpush2.bf16.msra.mxu0 0
    %654 = vmatprep.subr.bf16.mxu0 0
    %655 = vmatpush2.bf16.msra.mxu0 0
    %656 = vmatprep.mubr.bf16.mxu0 0
    %657 = vmatmul.mubr.bf16.gmra.mxu0 %v379
    %v658 = vpop.f32.mrf.mxu0
    %v659 = vadd.f32 %v610, %v658
    %v660 = vpop.f32.mrf.mxu0
    %v661 = vpop.f32.mrf.mxu0
    %v662 = vadd.f32 %v613, %v661
    %v663 = vpop.f32.mrf.mxu0
    %664 = vmatprep.mubr.bf16.mxu0 0
    %665 = vmatmul.mubr.bf16.gmra.mxu0 %v382
    %v666 = vpop.f32.mrf.mxu0
    %v667 = vadd.f32 %v618, %v666
    %v668 = vpop.f32.mrf.mxu0
    %v669 = vpop.f32.mrf.mxu0
    %v670 = vadd.f32 %v621, %v669
    %v671 = vpop.f32.mrf.mxu0
    %672 = vdwg.mxu0
    %v673 = vld [vmem:[%s3] sm:$0x1]
    %v674 = vld [vmem:[#allocation6] sm:$0x1]
    %v675 = vsel %vm336, %v659, 0.0
    %676 = vadd.xlane.f32.xlu0 %v675
    %v677 = vpop.xlane.xlu0 %676
    %v678 = vsel %vm336, %v662, 0.0
    %679 = vadd.xlane.f32.xlu0 %v678
    %v680 = vpop.xlane.xlu0 %679
    %v681 = vsel %vm336, %v667, 0.0
    %682 = vadd.xlane.f32.xlu0 %v681
    %v683 = vpop.xlane.xlu0 %682
    %v684 = vsel %vm336, %v670, 0.0
    %685 = vadd.xlane.f32.xlu0 %v684
    %v686 = vpop.xlane.xlu0 %685
    %v687 = vrcp.pop 32.0
    %v688 = vmul.f32 %v677, %v687
    %v689 = vmul.f32 %v680, %v687
    %v690 = vmul.f32 %v683, %v687
    %v691 = vmul.f32 %v686, %v687
    %v692 = vsub.f32 %v659, %v688
    %v693 = vsub.f32 %v662, %v689
    %v694 = vsub.f32 %v667, %v690
    %v695 = vsub.f32 %v670, %v691
    %v696 = vmul.f32 %v692, %v692
    %v697 = vmul.f32 %v693, %v693
    %v698 = vmul.f32 %v694, %v694
    %v699 = vmul.f32 %v695, %v695
    %v700 = vsel %vm336, %v696, 0.0
    %701 = vadd.xlane.f32.xlu0 %v700
    %v702 = vpop.xlane.xlu0 %701
    %v703 = vsel %vm336, %v697, 0.0
    %704 = vadd.xlane.f32.xlu0 %v703
    %v705 = vpop.xlane.xlu0 %704
    %v706 = vsel %vm336, %v698, 0.0
    %707 = vadd.xlane.f32.xlu0 %v706
    %v708 = vpop.xlane.xlu0 %707
    %v709 = vsel %vm336, %v699, 0.0
    %710 = vadd.xlane.f32.xlu0 %v709
    %v711 = vpop.xlane.xlu0 %710
    %v712 = vmul.f32 %v702, %v687
    %v713 = vmul.f32 %v705, %v687
    %v714 = vmul.f32 %v708, %v687
    %v715 = vmul.f32 %v711, %v687
    %v716 = vadd.f32 %v712, 1e-05
    %v717 = vadd.f32 %v713, 1e-05
    %v718 = vadd.f32 %v714, 1e-05
    %v719 = vadd.f32 %v715, 1e-05
    %v720 = vrsqrt.pop %v716
    %v721 = vrsqrt.pop %v717
    %v722 = vrsqrt.pop %v718
    %v723 = vrsqrt.pop %v719
    %v724 = vmul.f32 %v692, %v720
    %v725 = vmul.f32 %v693, %v721
    %v726 = vmul.f32 %v694, %v722
    %v727 = vmul.f32 %v695, %v723
    %v729 = vlaneseq
    %v730 = vshrl.u32 %v729, 7
    %v731 = vsub.s32 0, %v730
    %v732 = vrot.slane %v673, %v731
    %v734 = vmul.f32 %v724, %v732
    %v735 = vmul.f32 %v725, %v732
    %v736 = vmul.f32 %v726, %v732
    %v737 = vmul.f32 %v727, %v732
    %v739 = vlaneseq
    %v740 = vshrl.u32 %v739, 7
    %v741 = vsub.s32 0, %v740
    %v742 = vrot.slane %v674, %v741
    %v744 = vadd.f32 %v734, %v742
    %v745 = vadd.f32 %v735, %v742
    %v746 = vadd.f32 %v736, %v742
    %v747 = vadd.f32 %v737, %v742
    %v748 = vmax.f32 %v744, 0.0
    %v749 = vmax.f32 %v745, 0.0
    %v750 = vmax.f32 %v746, 0.0
    %v751 = vmax.f32 %v747, 0.0
    %v754 = vrot.slane %v748, 2
    %v755 = vrot.slane %v749, 2
    %v756 = vsel %vm213, %v754, %v755
    %v761 = vrot.slane %v750, 2
    %v762 = vrot.slane %v751, 2
    %v763 = vsel %vm213, %v761, %v762
    %v766 = vsel %vm213, 0.0, %v754
    %v767 = vsel %vm213, %v755, 0.0
    %v768 = vsel %vm213, 0.0, %v761
    %v769 = vsel %vm213, %v762, 0.0
    %v770 = vrot.slane %v748, 4
    %v771 = vrot.slane %v749, 4
    %v772 = vsel %vm230, %v770, %v771
    %v775 = vrot.slane %v750, 4
    %v776 = vrot.slane %v751, 4
    %v777 = vsel %vm230, %v775, %v776
    %v780 = vsel %vm230, 0.0, %v770
    %v781 = vsel %vm230, %v771, 0.0
    %v782 = vsel %vm230, 0.0, %v775
    %v783 = vsel %vm230, %v776, 0.0
    %v784 = vrot.slane %v748, 6
    %v785 = vrot.slane %v749, 6
    %v786 = vsel %vm245, %v784, %v785
    %v789 = vrot.slane %v750, 6
    %v790 = vrot.slane %v751, 6
    %v791 = vsel %vm245, %v789, %v790
    %v794 = vsel %vm245, 0.0, %v784
    %v795 = vsel %vm245, %v785, 0.0
    %v796 = vsel %vm245, 0.0, %v789
    %v797 = vsel %vm245, %v790, 0.0
    %802 = vrot.lane.b32.xlu0 %v766, 32
    %v803 = vpop.permute.xlu0 %802
    %804 = vrot.lane.b32.xlu0 %v756, 32
    %v805 = vpop.permute.xlu0 %804
    %806 = vrot.lane.b32.xlu0 %v767, 32
    %v807 = vpop.permute.xlu0 %806
    %808 = vrot.lane.b32.xlu0 %v768, 32
    %v809 = vpop.permute.xlu0 %808
    %810 = vrot.lane.b32.xlu0 %v763, 32
    %v811 = vpop.permute.xlu0 %810
    %812 = vrot.lane.b32.xlu0 %v769, 32
    %v813 = vpop.permute.xlu0 %812
    %824 = vrot.lane.b32.xlu0 %v780, 64
    %v825 = vpop.permute.xlu0 %824
    %826 = vrot.lane.b32.xlu0 %v772, 64
    %v827 = vpop.permute.xlu0 %826
    %828 = vrot.lane.b32.xlu0 %v781, 64
    %v829 = vpop.permute.xlu0 %828
    %830 = vrot.lane.b32.xlu0 %v782, 64
    %v831 = vpop.permute.xlu0 %830
    %832 = vrot.lane.b32.xlu0 %v777, 64
    %v833 = vpop.permute.xlu0 %832
    %834 = vrot.lane.b32.xlu0 %v783, 64
    %v835 = vpop.permute.xlu0 %834
    %846 = vrot.lane.b32.xlu0 %v794, 96
    %v847 = vpop.permute.xlu0 %846
    %848 = vrot.lane.b32.xlu0 %v786, 96
    %v849 = vpop.permute.xlu0 %848
    %850 = vrot.lane.b32.xlu0 %v795, 96
    %v851 = vpop.permute.xlu0 %850
    %852 = vrot.lane.b32.xlu0 %v796, 96
    %v853 = vpop.permute.xlu0 %852
    %854 = vrot.lane.b32.xlu0 %v791, 96
    %v855 = vpop.permute.xlu0 %854
    %856 = vrot.lane.b32.xlu0 %v797, 96
    %v857 = vpop.permute.xlu0 %856
    %v864 = vsel %vm336, 0.0, %v803
    %v865 = vsel %vm336, %v748, %v805
    %v866 = vsel %vm336, %v749, %v807
    %v867 = vsel %vm336, 0.0, %v809
    %v868 = vsel %vm336, %v750, %v811
    %v869 = vsel %vm336, %v751, %v813
    %v870 = vsel %vm344, %v864, %v825
    %v871 = vsel %vm344, %v865, %v827
    %v872 = vsel %vm344, %v866, %v829
    %v873 = vsel %vm344, %v867, %v831
    %v874 = vsel %vm344, %v868, %v833
    %v875 = vsel %vm344, %v869, %v835
    %v876 = vsel %vm352, %v870, %v847
    %v877 = vsel %vm352, %v871, %v849
    %v878 = vsel %vm352, %v872, %v851
    %v879 = vsel %vm352, %v873, %v853
    %v880 = vsel %vm352, %v874, %v855
    %v881 = vsel %vm352, %v875, %v857
    %882 = vst [vmem:[#allocation2] sm:$0xff] %v876
    %883 = vst [vmem:[#allocation2 + $0x8] sm:$0xff] %v877
    %884 = vst [vmem:[#allocation2 + $0x10] sm:$0xff] %v878
    %885 = vst [vmem:[#allocation2 + $0x18] sm:$0xff] %v356
    %886 = vst [vmem:[#allocation2 + $0x20] sm:$0xff] %v879
    %887 = vst [vmem:[#allocation2 + $0x28] sm:$0xff] %v880
    %888 = vst [vmem:[#allocation2 + $0x30] sm:$0xff] %v881
    %889 = vst [vmem:[#allocation2 + $0x38] sm:$0xff] %v356
    %v890 = vld [vmem:[#allocation2] sm:$0xff]
    %v891 = vld [vmem:[#allocation2 + $0x8] sm:$0xff]
    %v892 = vld [vmem:[#allocation2 + $0x10] sm:$0xff]
    %v893 = vld [vmem:[#allocation2 + $0x18] sm:$0xff]
    %v894 = vld [vmem:[#allocation2 + $0x20] sm:$0xff]
    %v895 = vld [vmem:[#allocation2 + $0x28] sm:$0xff]
    %v896 = vld [vmem:[#allocation2 + $0x30] sm:$0xff]
    %v897 = vld [vmem:[#allocation2 + $0x30] sm:$0xff]
    %v898 = vld [vmem:[#allocation2 + $0x38] sm:$0xff]
    %v899 = vpack.c.bf16 %v891, %v890
    %v900 = vpack.c.bf16 %v892, %v891
    %v901 = vpack.c.bf16 %v893, %v892
    %v902 = vpack.c.bf16 %v895, %v894
    %v903 = vpack.c.bf16 %v896, %v895
    %v904 = vpack.c.bf16 %v898, %v897
    %v905 = vld [vmem:[#allocation4] sm:$0xf]
    %v906 = vld [vmem:[#allocation4 + $0x4] sm:$0xf]
    %v907 = vld [vmem:[#allocation4 + $0x8] sm:$0xf]
    %v908 = vld [vmem:[#allocation4 + $0xc] sm:$0xf]
    %v909 = vld [vmem:[#allocation4 + $0x10] sm:$0xf]
    %v910 = vld [vmem:[#allocation4 + $0x14] sm:$0xf]
    %v911 = vld [vmem:[#allocation4 + $0x18] sm:$0xf]
    %v912 = vld [vmem:[#allocation4 + $0x1c] sm:$0xf]
    %v913 = vld [vmem:[#allocation4 + $0x20] sm:$0xf]
    %v914 = vld [vmem:[#allocation4 + $0x24] sm:$0xf]
    %v915 = vld [vmem:[#allocation4 + $0x28] sm:$0xf]
    %v916 = vld [vmem:[#allocation4 + $0x2c] sm:$0xf]
    %v917 = vld [vmem:[#allocation4 + $0x30] sm:$0xf]
    %v918 = vld [vmem:[#allocation4 + $0x34] sm:$0xf]
    %v919 = vld [vmem:[#allocation4 + $0x38] sm:$0xf]
    %v920 = vld [vmem:[#allocation4 + $0x3c] sm:$0xf]
    %v921 = vld [vmem:[#allocation4 + $0x40] sm:$0xf]
    %v922 = vld [vmem:[#allocation4 + $0x44] sm:$0xf]
    %v923 = vld [vmem:[#allocation4 + $0x48] sm:$0xf]
    %v924 = vld [vmem:[#allocation4 + $0x4c] sm:$0xf]
    %v925 = vld [vmem:[#allocation4 + $0x50] sm:$0xf]
    %v926 = vld [vmem:[#allocation4 + $0x54] sm:$0xf]
    %v927 = vld [vmem:[#allocation4 + $0x58] sm:$0xf]
    %v928 = vld [vmem:[#allocation4 + $0x5c] sm:$0xf]
    %v929 = vld [vmem:[#allocation4 + $0x60] sm:$0xf]
    %v930 = vld [vmem:[#allocation4 + $0x64] sm:$0xf]
    %v931 = vld [vmem:[#allocation4 + $0x68] sm:$0xf]
    %v932 = vld [vmem:[#allocation4 + $0x6c] sm:$0xf]
    %v933 = vld [vmem:[#allocation4 + $0x70] sm:$0xf]
    %v934 = vld [vmem:[#allocation4 + $0x74] sm:$0xf]
    %v935 = vld [vmem:[#allocation4 + $0x78] sm:$0xf]
    %v936 = vld [vmem:[#allocation4 + $0x7c] sm:$0xf]
    %v937 = vld [vmem:[#allocation4 + $0x80] sm:$0xf]
    %v938 = vld [vmem:[#allocation4 + $0x84] sm:$0xf]
    %v939 = vld [vmem:[#allocation4 + $0x88] sm:$0xf]
    %v940 = vld [vmem:[#allocation4 + $0x8c] sm:$0xf]
    %v941 = vld [vmem:[#allocation4 + $0x90] sm:$0xf]
    %v942 = vld [vmem:[#allocation4 + $0x94] sm:$0xf]
    %v943 = vld [vmem:[#allocation4 + $0x98] sm:$0xf]
    %v944 = vld [vmem:[#allocation4 + $0x9c] sm:$0xf]
    %v945 = vld [vmem:[#allocation4 + $0xa0] sm:$0xf]
    %v946 = vld [vmem:[#allocation4 + $0xa4] sm:$0xf]
    %v947 = vld [vmem:[#allocation4 + $0xa8] sm:$0xf]
    %v948 = vld [vmem:[#allocation4 + $0xac] sm:$0xf]
    %v949 = vld [vmem:[#allocation4 + $0xb0] sm:$0xf]
    %v950 = vld [vmem:[#allocation4 + $0xb4] sm:$0xf]
    %v951 = vld [vmem:[#allocation4 + $0xb8] sm:$0xf]
    %v952 = vld [vmem:[#allocation4 + $0xbc] sm:$0xf]
    %v1001 = vunpack.c.l.b16 %v905
    %v1002 = vunpack.c.l.b16 %v906
    %v1003 = vunpack.c.l.b16 %v907
    %v1004 = vunpack.c.l.b16 %v908
    %v1005 = vunpack.c.l.b16 %v909
    %v1006 = vunpack.c.l.b16 %v910
    %v1007 = vunpack.c.l.b16 %v911
    %v1008 = vunpack.c.l.b16 %v912
    %v1009 = vunpack.c.l.b16 %v913
    %v1010 = vunpack.c.l.b16 %v914
    %v1011 = vunpack.c.l.b16 %v915
    %v1012 = vunpack.c.l.b16 %v916
    %v1013 = vunpack.c.l.b16 %v917
    %v1014 = vunpack.c.l.b16 %v918
    %v1015 = vunpack.c.l.b16 %v919
    %v1016 = vunpack.c.l.b16 %v920
    %v1017 = vunpack.c.l.b16 %v921
    %v1018 = vunpack.c.l.b16 %v922
    %v1019 = vunpack.c.l.b16 %v923
    %v1020 = vunpack.c.l.b16 %v924
    %v1021 = vunpack.c.l.b16 %v925
    %v1022 = vunpack.c.l.b16 %v926
    %v1023 = vunpack.c.l.b16 %v927
    %v1024 = vunpack.c.l.b16 %v928
    %v1025 = vunpack.c.l.b16 %v929
    %v1026 = vunpack.c.l.b16 %v930
    %v1027 = vunpack.c.l.b16 %v931
    %v1028 = vunpack.c.l.b16 %v932
    %v1029 = vunpack.c.l.b16 %v933
    %v1030 = vunpack.c.l.b16 %v934
    %v1031 = vunpack.c.l.b16 %v935
    %v1032 = vunpack.c.l.b16 %v936
    %v1033 = vunpack.c.l.b16 %v937
    %v1034 = vunpack.c.l.b16 %v938
    %v1035 = vunpack.c.l.b16 %v939
    %v1036 = vunpack.c.l.b16 %v940
    %v1037 = vunpack.c.l.b16 %v941
    %v1038 = vunpack.c.l.b16 %v942
    %v1039 = vunpack.c.l.b16 %v943
    %v1040 = vunpack.c.l.b16 %v944
    %v1041 = vunpack.c.l.b16 %v945
    %v1042 = vunpack.c.l.b16 %v946
    %v1043 = vunpack.c.l.b16 %v947
    %v1044 = vunpack.c.l.b16 %v948
    %v1045 = vunpack.c.l.b16 %v949
    %v1046 = vunpack.c.l.b16 %v950
    %v1047 = vunpack.c.l.b16 %v951
    %v1048 = vunpack.c.l.b16 %v952
    %v1049 = vpack.c.b16 %v1002, %v1001
    %v1050 = vpack.c.b16 %v1004, %v1003
    %v1051 = vpack.c.b16 %v1006, %v1005
    %v1052 = vpack.c.b16 %v1008, %v1007
    %v1053 = vpack.c.b16 %v1010, %v1009
    %v1054 = vpack.c.b16 %v1012, %v1011
    %v1055 = vpack.c.b16 %v1014, %v1013
    %v1056 = vpack.c.b16 %v1016, %v1015
    %v1057 = vpack.c.b16 %v1018, %v1017
    %v1058 = vpack.c.b16 %v1020, %v1019
    %v1059 = vpack.c.b16 %v1022, %v1021
    %v1060 = vpack.c.b16 %v1024, %v1023
    %v1061 = vpack.c.b16 %v1026, %v1025
    %v1062 = vpack.c.b16 %v1028, %v1027
    %v1063 = vpack.c.b16 %v1030, %v1029
    %v1064 = vpack.c.b16 %v1032, %v1031
    %v1065 = vpack.c.b16 %v1034, %v1033
    %v1066 = vpack.c.b16 %v1036, %v1035
    %v1067 = vpack.c.b16 %v1038, %v1037
    %v1068 = vpack.c.b16 %v1040, %v1039
    %v1069 = vpack.c.b16 %v1042, %v1041
    %v1070 = vpack.c.b16 %v1044, %v1043
    %v1071 = vpack.c.b16 %v1046, %v1045
    %v1072 = vpack.c.b16 %v1048, %v1047
    %1097 = vmatprep.subr.bf16.mxu0 0
    %1098 = vmatpush1.bf16.msra.mxu0 %v1056
    %1099 = vmatprep.subr.bf16.mxu0 0
    %1100 = vmatpush1.bf16.msra.mxu0 %v1055
    %1101 = vmatprep.subr.bf16.mxu0 0
    %1102 = vmatpush1.bf16.msra.mxu0 %v1054
    %1103 = vmatprep.subr.bf16.mxu0 0
    %1104 = vmatpush1.bf16.msra.mxu0 %v1053
    %1105 = vmatprep.subr.bf16.mxu0 0
    %1106 = vmatpush1.bf16.msra.mxu0 %v1052
    %1107 = vmatprep.subr.bf16.mxu0 0
    %1108 = vmatpush1.bf16.msra.mxu0 %v1051
    %1109 = vmatprep.subr.bf16.mxu0 0
    %1110 = vmatpush1.bf16.msra.mxu0 %v1050
    %1111 = vmatprep.subr.bf16.mxu0 0
    %1112 = vmatpush1.bf16.msra.mxu0 %v1049
    %1113 = vmatprep.subr.bf16.mxu0 0
    %1114 = vmatpush2.bf16.msra.mxu0 %v1064
    %1115 = vmatprep.subr.bf16.mxu0 0
    %1116 = vmatpush2.bf16.msra.mxu0 %v1063
    %1117 = vmatprep.subr.bf16.mxu0 0
    %1118 = vmatpush2.bf16.msra.mxu0 %v1062
    %1119 = vmatprep.subr.bf16.mxu0 0
    %1120 = vmatpush2.bf16.msra.mxu0 %v1061
    %1121 = vmatprep.subr.bf16.mxu0 0
    %1122 = vmatpush2.bf16.msra.mxu0 %v1060
    %1123 = vmatprep.subr.bf16.mxu0 0
    %1124 = vmatpush2.bf16.msra.mxu0 %v1059
    %1125 = vmatprep.subr.bf16.mxu0 0
    %1126 = vmatpush2.bf16.msra.mxu0 %v1058
    %1127 = vmatprep.subr.bf16.mxu0 0
    %1128 = vmatpush2.bf16.msra.mxu0 %v1057
    %1129 = vmatprep.mubr.bf16.mxu0 %v900
    %1130 = vmatmul.mubr.bf16.gmra.mxu0 %v899
    %v1131 = vpop.f32.mrf.mxu0
    %v1132 = vadd.f32 0.0, %v1131
    %v1133 = vpop.f32.mrf.mxu0
    %v1134 = vpop.f32.mrf.mxu0
    %v1135 = vadd.f32 0.0, %v1134
    %v1136 = vpop.f32.mrf.mxu0
    %1137 = vmatprep.mubr.bf16.mxu0 %v903
    %1138 = vmatmul.mubr.bf16.gmra.mxu0 %v902
    %v1139 = vpop.f32.mrf.mxu0
    %v1140 = vadd.f32 0.0, %v1139
    %v1141 = vpop.f32.mrf.mxu0
    %v1142 = vpop.f32.mrf.mxu0
    %v1143 = vadd.f32 0.0, %v1142
    %v1144 = vpop.f32.mrf.mxu0
    %1145 = vdwg.mxu0
    %1146 = vmatprep.subr.bf16.mxu0 0
    %1147 = vmatpush1.bf16.msra.mxu0 %v1072
    %1148 = vmatprep.subr.bf16.mxu0 0
    %1149 = vmatpush1.bf16.msra.mxu0 %v1071
    %1150 = vmatprep.subr.bf16.mxu0 0
    %1151 = vmatpush1.bf16.msra.mxu0 %v1070
    %1152 = vmatprep.subr.bf16.mxu0 0
    %1153 = vmatpush1.bf16.msra.mxu0 %v1069
    %1154 = vmatprep.subr.bf16.mxu0 0
    %1155 = vmatpush1.bf16.msra.mxu0 %v1068
    %1156 = vmatprep.subr.bf16.mxu0 0
    %1157 = vmatpush1.bf16.msra.mxu0 %v1067
    %1158 = vmatprep.subr.bf16.mxu0 0
    %1159 = vmatpush1.bf16.msra.mxu0 %v1066
    %1160 = vmatprep.subr.bf16.mxu0 0
    %1161 = vmatpush1.bf16.msra.mxu0 %v1065
    %1162 = vmatprep.subr.bf16.mxu0 0
    %1163 = vmatpush2.bf16.msra.mxu0 0
    %1164 = vmatprep.subr.bf16.mxu0 0
    %1165 = vmatpush2.bf16.msra.mxu0 0
    %1166 = vmatprep.subr.bf16.mxu0 0
    %1167 = vmatpush2.bf16.msra.mxu0 0
    %1168 = vmatprep.subr.bf16.mxu0 0
    %1169 = vmatpush2.bf16.msra.mxu0 0
    %1170 = vmatprep.subr.bf16.mxu0 0
    %1171 = vmatpush2.bf16.msra.mxu0 0
    %1172 = vmatprep.subr.bf16.mxu0 0
    %1173 = vmatpush2.bf16.msra.mxu0 0
    %1174 = vmatprep.subr.bf16.mxu0 0
    %1175 = vmatpush2.bf16.msra.mxu0 0
    %1176 = vmatprep.subr.bf16.mxu0 0
    %1177 = vmatpush2.bf16.msra.mxu0 0
    %1178 = vmatprep.mubr.bf16.mxu0 0
    %1179 = vmatmul.mubr.bf16.gmra.mxu0 %v901
    %v1180 = vpop.f32.mrf.mxu0
    %v1181 = vadd.f32 %v1132, %v1180
    %v1182 = vpop.f32.mrf.mxu0
    %v1183 = vpop.f32.mrf.mxu0
    %v1184 = vadd.f32 %v1135, %v1183
    %v1185 = vpop.f32.mrf.mxu0
    %1186 = vmatprep.mubr.bf16.mxu0 0
    %1187 = vmatmul.mubr.bf16.gmra.mxu0 %v904
    %v1188 = vpop.f32.mrf.mxu0
    %v1189 = vadd.f32 %v1140, %v1188
    %v1190 = vpop.f32.mrf.mxu0
    %v1191 = vpop.f32.mrf.mxu0
    %v1192 = vadd.f32 %v1143, %v1191
    %v1193 = vpop.f32.mrf.mxu0
    %1194 = vdwg.mxu0
    %s1195 = scalar_lea.vmem %s3, 1
    %v1196 = vld [vmem:[%s1195] sm:$0x1]
    %s1197 = scalar_lea.vmem [#allocation6], 1
    %v1198 = vld [vmem:[%s1197] sm:$0x1]
    %1203 = vrot.lane.b32.xlu0 %v1181, 96
    %v1204 = vpop.permute.xlu0 %1203
    %1205 = vrot.lane.b32.xlu0 %v1184, 96
    %v1206 = vpop.permute.xlu0 %1205
    %1207 = vrot.lane.b32.xlu0 %v1189, 96
    %v1208 = vpop.permute.xlu0 %1207
    %1209 = vrot.lane.b32.xlu0 %v1192, 96
    %v1210 = vpop.permute.xlu0 %1209
    %v1215 = vsel %vm336, %v1204, 0.0
    %1216 = vadd.xlane.f32.xlu0 %v1215
    %v1217 = vpop.xlane.xlu0 %1216
    %v1218 = vsel %vm336, %v1206, 0.0
    %1219 = vadd.xlane.f32.xlu0 %v1218
    %v1220 = vpop.xlane.xlu0 %1219
    %v1221 = vsel %vm336, %v1208, 0.0
    %1222 = vadd.xlane.f32.xlu0 %v1221
    %v1223 = vpop.xlane.xlu0 %1222
    %v1224 = vsel %vm336, %v1210, 0.0
    %1225 = vadd.xlane.f32.xlu0 %v1224
    %v1226 = vpop.xlane.xlu0 %1225
    %v1227 = vmul.f32 %v1217, %v687
    %v1228 = vmul.f32 %v1220, %v687
    %v1229 = vmul.f32 %v1223, %v687
    %v1230 = vmul.f32 %v1226, %v687
    %v1231 = vsub.f32 %v1181, %v1227
    %v1232 = vsub.f32 %v1184, %v1228
    %v1233 = vsub.f32 %v1189, %v1229
    %v1234 = vsub.f32 %v1192, %v1230
    %v1235 = vmul.f32 %v1231, %v1231
    %v1236 = vmul.f32 %v1232, %v1232
    %v1237 = vmul.f32 %v1233, %v1233
    %v1238 = vmul.f32 %v1234, %v1234
    %1243 = vrot.lane.b32.xlu0 %v1235, 96
    %v1244 = vpop.permute.xlu0 %1243
    %1245 = vrot.lane.b32.xlu0 %v1236, 96
    %v1246 = vpop.permute.xlu0 %1245
    %1247 = vrot.lane.b32.xlu0 %v1237, 96
    %v1248 = vpop.permute.xlu0 %1247
    %1249 = vrot.lane.b32.xlu0 %v1238, 96
    %v1250 = vpop.permute.xlu0 %1249
    %v1255 = vsel %vm336, %v1244, 0.0
    %1256 = vadd.xlane.f32.xlu0 %v1255
    %v1257 = vpop.xlane.xlu0 %1256
    %v1258 = vsel %vm336, %v1246, 0.0
    %1259 = vadd.xlane.f32.xlu0 %v1258
    %v1260 = vpop.xlane.xlu0 %1259
    %v1261 = vsel %vm336, %v1248, 0.0
    %1262 = vadd.xlane.f32.xlu0 %v1261
    %v1263 = vpop.xlane.xlu0 %1262
    %v1264 = vsel %vm336, %v1250, 0.0
    %1265 = vadd.xlane.f32.xlu0 %v1264
    %v1266 = vpop.xlane.xlu0 %1265
    %v1267 = vmul.f32 %v1257, %v687
    %v1268 = vmul.f32 %v1260, %v687
    %v1269 = vmul.f32 %v1263, %v687
    %v1270 = vmul.f32 %v1266, %v687
    %v1271 = vadd.f32 %v1267, 1e-05
    %v1272 = vadd.f32 %v1268, 1e-05
    %v1273 = vadd.f32 %v1269, 1e-05
    %v1274 = vadd.f32 %v1270, 1e-05
    %v1275 = vrsqrt.pop %v1271
    %v1276 = vrsqrt.pop %v1272
    %v1277 = vrsqrt.pop %v1273
    %v1278 = vrsqrt.pop %v1274
    %v1279 = vmul.f32 %v1231, %v1275
    %v1280 = vmul.f32 %v1232, %v1276
    %v1281 = vmul.f32 %v1233, %v1277
    %v1282 = vmul.f32 %v1234, %v1278
    %v1284 = vlaneseq
    %v1285 = vshrl.u32 %v1284, 7
    %v1286 = vsub.s32 0, %v1285
    %v1287 = vrot.slane %v1196, %v1286
    %1288 = vrot.lane.b32.xlu0 %v1287, 32
    %v1289 = vpop.permute.xlu0 %1288
    %v1291 = vmul.f32 %v1279, %v1289
    %v1292 = vmul.f32 %v1280, %v1289
    %v1293 = vmul.f32 %v1281, %v1289
    %v1294 = vmul.f32 %v1282, %v1289
    %v1296 = vlaneseq
    %v1297 = vshrl.u32 %v1296, 7
    %v1298 = vsub.s32 0, %v1297
    %v1299 = vrot.slane %v1198, %v1298
    %1300 = vrot.lane.b32.xlu0 %v1299, 32
    %v1301 = vpop.permute.xlu0 %1300
    %v1303 = vadd.f32 %v1291, %v1301
    %v1304 = vadd.f32 %v1292, %v1301
    %v1305 = vadd.f32 %v1293, %v1301
    %v1306 = vadd.f32 %v1294, %v1301
    %1307 = vrot.lane.b32.xlu0 %v193, 32
    %v1308 = vpop.permute.xlu0 %1307
    %1309 = vrot.lane.b32.xlu0 %v198, 32
    %v1310 = vpop.permute.xlu0 %1309
    %1311 = vrot.lane.b32.xlu0 %v203, 32
    %v1312 = vpop.permute.xlu0 %1311
    %1313 = vrot.lane.b32.xlu0 %v208, 32
    %v1314 = vpop.permute.xlu0 %1313
    %v1319 = vadd.f32 %v1303, %v1308
    %v1320 = vadd.f32 %v1304, %v1310
    %v1321 = vadd.f32 %v1305, %v1312
    %v1322 = vadd.f32 %v1306, %v1314
    %v1323 = vmax.f32 %v1319, 0.0
    %v1324 = vmax.f32 %v1320, 0.0
    %v1325 = vmax.f32 %v1321, 0.0
    %v1326 = vmax.f32 %v1322, 0.0
    %1329 = vrot.lane.b32.xlu0 %v1323, 96
    %v1330 = vpop.permute.xlu0 %1329
    %1331 = vrot.lane.b32.xlu0 %v1324, 96
    %v1332 = vpop.permute.xlu0 %1331
    %1337 = vrot.lane.b32.xlu0 %v1325, 96
    %v1338 = vpop.permute.xlu0 %1337
    %1339 = vrot.lane.b32.xlu0 %v1326, 96
    %v1340 = vpop.permute.xlu0 %1339
    %v1343 = vrot.slane %v1323, 2
    %v1344 = vrot.slane %v1324, 2
    %v1345 = vsel %vm213, %v1343, %v1344
    %1346 = vrot.lane.b32.xlu0 %v1343, 96
    %v1347 = vpop.permute.xlu0 %1346
    %1348 = vrot.lane.b32.xlu0 %v1345, 96
    %v1349 = vpop.permute.xlu0 %1348
    %1350 = vrot.lane.b32.xlu0 %v1344, 96
    %v1351 = vpop.permute.xlu0 %1350
    %v1354 = vrot.slane %v1325, 2
    %v1355 = vrot.slane %v1326, 2
    %v1356 = vsel %vm213, %v1354, %v1355
    %1357 = vrot.lane.b32.xlu0 %v1354, 96
    %v1358 = vpop.permute.xlu0 %1357
    %1359 = vrot.lane.b32.xlu0 %v1356, 96
    %v1360 = vpop.permute.xlu0 %1359
    %1361 = vrot.lane.b32.xlu0 %v1355, 96
    %v1362 = vpop.permute.xlu0 %1361
    %v1365 = vsel %vm213, 0.0, %v1347
    %v1366 = vsel %vm213, %v1351, 0.0
    %v1367 = vsel %vm213, 0.0, %v1358
    %v1368 = vsel %vm213, %v1362, 0.0
    %v1369 = vrot.slane %v1323, 4
    %v1370 = vrot.slane %v1324, 4
    %v1371 = vsel %vm230, %v1369, %v1370
    %1372 = vrot.lane.b32.xlu0 %v1369, 96
    %v1373 = vpop.permute.xlu0 %1372
    %1374 = vrot.lane.b32.xlu0 %v1371, 96
    %v1375 = vpop.permute.xlu0 %1374
    %1376 = vrot.lane.b32.xlu0 %v1370, 96
    %v1377 = vpop.permute.xlu0 %1376
    %v1380 = vrot.slane %v1325, 4
    %v1381 = vrot.slane %v1326, 4
    %v1382 = vsel %vm230, %v1380, %v1381
    %1383 = vrot.lane.b32.xlu0 %v1380, 96
    %v1384 = vpop.permute.xlu0 %1383
    %1385 = vrot.lane.b32.xlu0 %v1382, 96
    %v1386 = vpop.permute.xlu0 %1385
    %1387 = vrot.lane.b32.xlu0 %v1381, 96
    %v1388 = vpop.permute.xlu0 %1387
    %v1391 = vsel %vm230, 0.0, %v1373
    %v1392 = vsel %vm230, %v1377, 0.0
    %v1393 = vsel %vm230, 0.0, %v1384
    %v1394 = vsel %vm230, %v1388, 0.0
    %v1395 = vrot.slane %v1323, 6
    %v1396 = vrot.slane %v1324, 6
    %v1397 = vsel %vm245, %v1395, %v1396
    %1398 = vrot.lane.b32.xlu0 %v1395, 96
    %v1399 = vpop.permute.xlu0 %1398
    %1400 = vrot.lane.b32.xlu0 %v1397, 96
    %v1401 = vpop.permute.xlu0 %1400
    %1402 = vrot.lane.b32.xlu0 %v1396, 96
    %v1403 = vpop.permute.xlu0 %1402
    %v1406 = vrot.slane %v1325, 6
    %v1407 = vrot.slane %v1326, 6
    %v1408 = vsel %vm245, %v1406, %v1407
    %1409 = vrot.lane.b32.xlu0 %v1406, 96
    %v1410 = vpop.permute.xlu0 %1409
    %1411 = vrot.lane.b32.xlu0 %v1408, 96
    %v1412 = vpop.permute.xlu0 %1411
    %1413 = vrot.lane.b32.xlu0 %v1407, 96
    %v1414 = vpop.permute.xlu0 %1413
    %v1417 = vsel %vm245, 0.0, %v1399
    %v1418 = vsel %vm245, %v1403, 0.0
    %v1419 = vsel %vm245, 0.0, %v1410
    %v1420 = vsel %vm245, %v1414, 0.0
    %1425 = vrot.lane.b32.xlu0 %v1365, 32
    %v1426 = vpop.permute.xlu0 %1425
    %1427 = vrot.lane.b32.xlu0 %v1349, 32
    %v1428 = vpop.permute.xlu0 %1427
    %1429 = vrot.lane.b32.xlu0 %v1366, 32
    %v1430 = vpop.permute.xlu0 %1429
    %1431 = vrot.lane.b32.xlu0 %v1367, 32
    %v1432 = vpop.permute.xlu0 %1431
    %1433 = vrot.lane.b32.xlu0 %v1360, 32
    %v1434 = vpop.permute.xlu0 %1433
    %1435 = vrot.lane.b32.xlu0 %v1368, 32
    %v1436 = vpop.permute.xlu0 %1435
    %1447 = vrot.lane.b32.xlu0 %v1391, 64
    %v1448 = vpop.permute.xlu0 %1447
    %1449 = vrot.lane.b32.xlu0 %v1375, 64
    %v1450 = vpop.permute.xlu0 %1449
    %1451 = vrot.lane.b32.xlu0 %v1392, 64
    %v1452 = vpop.permute.xlu0 %1451
    %1453 = vrot.lane.b32.xlu0 %v1393, 64
    %v1454 = vpop.permute.xlu0 %1453
    %1455 = vrot.lane.b32.xlu0 %v1386, 64
    %v1456 = vpop.permute.xlu0 %1455
    %1457 = vrot.lane.b32.xlu0 %v1394, 64
    %v1458 = vpop.permute.xlu0 %1457
    %1469 = vrot.lane.b32.xlu0 %v1417, 96
    %v1470 = vpop.permute.xlu0 %1469
    %1471 = vrot.lane.b32.xlu0 %v1401, 96
    %v1472 = vpop.permute.xlu0 %1471
    %1473 = vrot.lane.b32.xlu0 %v1418, 96
    %v1474 = vpop.permute.xlu0 %1473
    %1475 = vrot.lane.b32.xlu0 %v1419, 96
    %v1476 = vpop.permute.xlu0 %1475
    %1477 = vrot.lane.b32.xlu0 %v1412, 96
    %v1478 = vpop.permute.xlu0 %1477
    %1479 = vrot.lane.b32.xlu0 %v1420, 96
    %v1480 = vpop.permute.xlu0 %1479
    %v1487 = vsel %vm336, 0.0, %v1426
    %v1488 = vsel %vm336, %v1330, %v1428
    %v1489 = vsel %vm336, %v1332, %v1430
    %v1490 = vsel %vm336, 0.0, %v1432
    %v1491 = vsel %vm336, %v1338, %v1434
    %v1492 = vsel %vm336, %v1340, %v1436
    %v1493 = vsel %vm344, %v1487, %v1448
    %v1494 = vsel %vm344, %v1488, %v1450
    %v1495 = vsel %vm344, %v1489, %v1452
    %v1496 = vsel %vm344, %v1490, %v1454
    %v1497 = vsel %vm344, %v1491, %v1456
    %v1498 = vsel %vm344, %v1492, %v1458
    %v1499 = vsel %vm352, %v1493, %v1470
    %v1500 = vsel %vm352, %v1494, %v1472
    %v1501 = vsel %vm352, %v1495, %v1474
    %v1502 = vsel %vm352, %v1496, %v1476
    %v1503 = vsel %vm352, %v1497, %v1478
    %v1504 = vsel %vm352, %v1498, %v1480
    %1505 = vst [vmem:[#allocation2] sm:$0xff] %v1499
    %1506 = vst [vmem:[#allocation2 + $0x8] sm:$0xff] %v1500
    %1507 = vst [vmem:[#allocation2 + $0x10] sm:$0xff] %v1501
    %1508 = vst [vmem:[#allocation2 + $0x18] sm:$0xff] %v356
    %1509 = vst [vmem:[#allocation2 + $0x20] sm:$0xff] %v1502
    %1510 = vst [vmem:[#allocation2 + $0x28] sm:$0xff] %v1503
    %1511 = vst [vmem:[#allocation2 + $0x30] sm:$0xff] %v1504
    %1512 = vst [vmem:[#allocation2 + $0x38] sm:$0xff] %v356
    %v1513 = vld [vmem:[#allocation2] sm:$0xff]
    %v1514 = vld [vmem:[#allocation2 + $0x8] sm:$0xff]
    %v1515 = vld [vmem:[#allocation2 + $0x10] sm:$0xff]
    %v1516 = vld [vmem:[#allocation2 + $0x18] sm:$0xff]
    %v1517 = vld [vmem:[#allocation2 + $0x20] sm:$0xff]
    %v1518 = vld [vmem:[#allocation2 + $0x28] sm:$0xff]
    %v1519 = vld [vmem:[#allocation2 + $0x30] sm:$0xff]
    %v1520 = vld [vmem:[#allocation2 + $0x30] sm:$0xff]
    %v1521 = vld [vmem:[#allocation2 + $0x38] sm:$0xff]
    %v1522 = vpack.c.bf16 %v1514, %v1513
    %v1523 = vpack.c.bf16 %v1515, %v1514
    %v1524 = vpack.c.bf16 %v1516, %v1515
    %v1525 = vpack.c.bf16 %v1518, %v1517
    %v1526 = vpack.c.bf16 %v1519, %v1518
    %v1527 = vpack.c.bf16 %v1521, %v1520
    %v1528 = vld [vmem:[#allocation4] sm:$0xf]
    %v1529 = vld [vmem:[#allocation4 + $0x4] sm:$0xf]
    %v1530 = vld [vmem:[#allocation4 + $0x8] sm:$0xf]
    %v1531 = vld [vmem:[#allocation4 + $0xc] sm:$0xf]
    %v1532 = vld [vmem:[#allocation4 + $0x10] sm:$0xf]
    %v1533 = vld [vmem:[#allocation4 + $0x14] sm:$0xf]
    %v1534 = vld [vmem:[#allocation4 + $0x18] sm:$0xf]
    %v1535 = vld [vmem:[#allocation4 + $0x1c] sm:$0xf]
    %v1536 = vld [vmem:[#allocation4 + $0x20] sm:$0xf]
    %v1537 = vld [vmem:[#allocation4 + $0x24] sm:$0xf]
    %v1538 = vld [vmem:[#allocation4 + $0x28] sm:$0xf]
    %v1539 = vld [vmem:[#allocation4 + $0x2c] sm:$0xf]
    %v1540 = vld [vmem:[#allocation4 + $0x30] sm:$0xf]
    %v1541 = vld [vmem:[#allocation4 + $0x34] sm:$0xf]
    %v1542 = vld [vmem:[#allocation4 + $0x38] sm:$0xf]
    %v1543 = vld [vmem:[#allocation4 + $0x3c] sm:$0xf]
    %v1544 = vld [vmem:[#allocation4 + $0x40] sm:$0xf]
    %v1545 = vld [vmem:[#allocation4 + $0x44] sm:$0xf]
    %v1546 = vld [vmem:[#allocation4 + $0x48] sm:$0xf]
    %v1547 = vld [vmem:[#allocation4 + $0x4c] sm:$0xf]
    %v1548 = vld [vmem:[#allocation4 + $0x50] sm:$0xf]
    %v1549 = vld [vmem:[#allocation4 + $0x54] sm:$0xf]
    %v1550 = vld [vmem:[#allocation4 + $0x58] sm:$0xf]
    %v1551 = vld [vmem:[#allocation4 + $0x5c] sm:$0xf]
    %v1552 = vld [vmem:[#allocation4 + $0x60] sm:$0xf]
    %v1553 = vld [vmem:[#allocation4 + $0x64] sm:$0xf]
    %v1554 = vld [vmem:[#allocation4 + $0x68] sm:$0xf]
    %v1555 = vld [vmem:[#allocation4 + $0x6c] sm:$0xf]
    %v1556 = vld [vmem:[#allocation4 + $0x70] sm:$0xf]
    %v1557 = vld [vmem:[#allocation4 + $0x74] sm:$0xf]
    %v1558 = vld [vmem:[#allocation4 + $0x78] sm:$0xf]
    %v1559 = vld [vmem:[#allocation4 + $0x7c] sm:$0xf]
    %v1560 = vld [vmem:[#allocation4 + $0x80] sm:$0xf]
    %v1561 = vld [vmem:[#allocation4 + $0x84] sm:$0xf]
    %v1562 = vld [vmem:[#allocation4 + $0x88] sm:$0xf]
    %v1563 = vld [vmem:[#allocation4 + $0x8c] sm:$0xf]
    %v1564 = vld [vmem:[#allocation4 + $0x90] sm:$0xf]
    %v1565 = vld [vmem:[#allocation4 + $0x94] sm:$0xf]
    %v1566 = vld [vmem:[#allocation4 + $0x98] sm:$0xf]
    %v1567 = vld [vmem:[#allocation4 + $0x9c] sm:$0xf]
    %v1568 = vld [vmem:[#allocation4 + $0xa0] sm:$0xf]
    %v1569 = vld [vmem:[#allocation4 + $0xa4] sm:$0xf]
    %v1570 = vld [vmem:[#allocation4 + $0xa8] sm:$0xf]
    %v1571 = vld [vmem:[#allocation4 + $0xac] sm:$0xf]
    %v1572 = vld [vmem:[#allocation4 + $0xb0] sm:$0xf]
    %v1573 = vld [vmem:[#allocation4 + $0xb4] sm:$0xf]
    %v1574 = vld [vmem:[#allocation4 + $0xb8] sm:$0xf]
    %v1575 = vld [vmem:[#allocation4 + $0xbc] sm:$0xf]
    %v1624 = vunpack.c.l.b16 %v1528
    %v1625 = vunpack.c.l.b16 %v1529
    %v1626 = vunpack.c.l.b16 %v1530
    %v1627 = vunpack.c.l.b16 %v1531
    %v1628 = vunpack.c.l.b16 %v1532
    %v1629 = vunpack.c.l.b16 %v1533
    %v1630 = vunpack.c.l.b16 %v1534
    %v1631 = vunpack.c.l.b16 %v1535
    %v1632 = vunpack.c.l.b16 %v1536
    %v1633 = vunpack.c.l.b16 %v1537
    %v1634 = vunpack.c.l.b16 %v1538
    %v1635 = vunpack.c.l.b16 %v1539
    %v1636 = vunpack.c.l.b16 %v1540
    %v1637 = vunpack.c.l.b16 %v1541
    %v1638 = vunpack.c.l.b16 %v1542
    %v1639 = vunpack.c.l.b16 %v1543
    %v1640 = vunpack.c.l.b16 %v1544
    %v1641 = vunpack.c.l.b16 %v1545
    %v1642 = vunpack.c.l.b16 %v1546
    %v1643 = vunpack.c.l.b16 %v1547
    %v1644 = vunpack.c.l.b16 %v1548
    %v1645 = vunpack.c.l.b16 %v1549
    %v1646 = vunpack.c.l.b16 %v1550
    %v1647 = vunpack.c.l.b16 %v1551
    %v1648 = vunpack.c.l.b16 %v1552
    %v1649 = vunpack.c.l.b16 %v1553
    %v1650 = vunpack.c.l.b16 %v1554
    %v1651 = vunpack.c.l.b16 %v1555
    %v1652 = vunpack.c.l.b16 %v1556
    %v1653 = vunpack.c.l.b16 %v1557
    %v1654 = vunpack.c.l.b16 %v1558
    %v1655 = vunpack.c.l.b16 %v1559
    %v1656 = vunpack.c.l.b16 %v1560
    %v1657 = vunpack.c.l.b16 %v1561
    %v1658 = vunpack.c.l.b16 %v1562
    %v1659 = vunpack.c.l.b16 %v1563
    %v1660 = vunpack.c.l.b16 %v1564
    %v1661 = vunpack.c.l.b16 %v1565
    %v1662 = vunpack.c.l.b16 %v1566
    %v1663 = vunpack.c.l.b16 %v1567
    %v1664 = vunpack.c.l.b16 %v1568
    %v1665 = vunpack.c.l.b16 %v1569
    %v1666 = vunpack.c.l.b16 %v1570
    %v1667 = vunpack.c.l.b16 %v1571
    %v1668 = vunpack.c.l.b16 %v1572
    %v1669 = vunpack.c.l.b16 %v1573
    %v1670 = vunpack.c.l.b16 %v1574
    %v1671 = vunpack.c.l.b16 %v1575
    %v1672 = vpack.c.b16 %v1625, %v1624
    %v1673 = vpack.c.b16 %v1627, %v1626
    %v1674 = vpack.c.b16 %v1629, %v1628
    %v1675 = vpack.c.b16 %v1631, %v1630
    %v1676 = vpack.c.b16 %v1633, %v1632
    %v1677 = vpack.c.b16 %v1635, %v1634
    %v1678 = vpack.c.b16 %v1637, %v1636
    %v1679 = vpack.c.b16 %v1639, %v1638
    %v1680 = vpack.c.b16 %v1641, %v1640
    %v1681 = vpack.c.b16 %v1643, %v1642
    %v1682 = vpack.c.b16 %v1645, %v1644
    %v1683 = vpack.c.b16 %v1647, %v1646
    %v1684 = vpack.c.b16 %v1649, %v1648
    %v1685 = vpack.c.b16 %v1651, %v1650
    %v1686 = vpack.c.b16 %v1653, %v1652
    %v1687 = vpack.c.b16 %v1655, %v1654
    %v1688 = vpack.c.b16 %v1657, %v1656
    %v1689 = vpack.c.b16 %v1659, %v1658
    %v1690 = vpack.c.b16 %v1661, %v1660
    %v1691 = vpack.c.b16 %v1663, %v1662
    %v1692 = vpack.c.b16 %v1665, %v1664
    %v1693 = vpack.c.b16 %v1667, %v1666
    %v1694 = vpack.c.b16 %v1669, %v1668
    %v1695 = vpack.c.b16 %v1671, %v1670
    %1720 = vmatprep.subr.bf16.mxu0 0
    %1721 = vmatpush1.bf16.msra.mxu0 %v1679
    %1722 = vmatprep.subr.bf16.mxu0 0
    %1723 = vmatpush1.bf16.msra.mxu0 %v1678
    %1724 = vmatprep.subr.bf16.mxu0 0
    %1725 = vmatpush1.bf16.msra.mxu0 %v1677
    %1726 = vmatprep.subr.bf16.mxu0 0
    %1727 = vmatpush1.bf16.msra.mxu0 %v1676
    %1728 = vmatprep.subr.bf16.mxu0 0
    %1729 = vmatpush1.bf16.msra.mxu0 %v1675
    %1730 = vmatprep.subr.bf16.mxu0 0
    %1731 = vmatpush1.bf16.msra.mxu0 %v1674
    %1732 = vmatprep.subr.bf16.mxu0 0
    %1733 = vmatpush1.bf16.msra.mxu0 %v1673
    %1734 = vmatprep.subr.bf16.mxu0 0
    %1735 = vmatpush1.bf16.msra.mxu0 %v1672
    %1736 = vmatprep.subr.bf16.mxu0 0
    %1737 = vmatpush2.bf16.msra.mxu0 %v1687
    %1738 = vmatprep.subr.bf16.mxu0 0
    %1739 = vmatpush2.bf16.msra.mxu0 %v1686
    %1740 = vmatprep.subr.bf16.mxu0 0
    %1741 = vmatpush2.bf16.msra.mxu0 %v1685
    %1742 = vmatprep.subr.bf16.mxu0 0
    %1743 = vmatpush2.bf16.msra.mxu0 %v1684
    %1744 = vmatprep.subr.bf16.mxu0 0
    %1745 = vmatpush2.bf16.msra.mxu0 %v1683
    %1746 = vmatprep.subr.bf16.mxu0 0
    %1747 = vmatpush2.bf16.msra.mxu0 %v1682
    %1748 = vmatprep.subr.bf16.mxu0 0
    %1749 = vmatpush2.bf16.msra.mxu0 %v1681
    %1750 = vmatprep.subr.bf16.mxu0 0
    %1751 = vmatpush2.bf16.msra.mxu0 %v1680
    %1752 = vmatprep.mubr.bf16.mxu0 %v1523
    %1753 = vmatmul.mubr.bf16.gmra.mxu0 %v1522
    %v1754 = vpop.f32.mrf.mxu0
    %v1755 = vadd.f32 0.0, %v1754
    %v1756 = vpop.f32.mrf.mxu0
    %v1757 = vpop.f32.mrf.mxu0
    %v1758 = vadd.f32 0.0, %v1757
    %v1759 = vpop.f32.mrf.mxu0
    %1760 = vmatprep.mubr.bf16.mxu0 %v1526
    %1761 = vmatmul.mubr.bf16.gmra.mxu0 %v1525
    %v1762 = vpop.f32.mrf.mxu0
    %v1763 = vadd.f32 0.0, %v1762
    %v1764 = vpop.f32.mrf.mxu0
    %v1765 = vpop.f32.mrf.mxu0
    %v1766 = vadd.f32 0.0, %v1765
    %v1767 = vpop.f32.mrf.mxu0
    %1768 = vdwg.mxu0
    %1769 = vmatprep.subr.bf16.mxu0 0
    %1770 = vmatpush1.bf16.msra.mxu0 %v1695
    %1771 = vmatprep.subr.bf16.mxu0 0
    %1772 = vmatpush1.bf16.msra.mxu0 %v1694
    %1773 = vmatprep.subr.bf16.mxu0 0
    %1774 = vmatpush1.bf16.msra.mxu0 %v1693
    %1775 = vmatprep.subr.bf16.mxu0 0
    %1776 = vmatpush1.bf16.msra.mxu0 %v1692
    %1777 = vmatprep.subr.bf16.mxu0 0
    %1778 = vmatpush1.bf16.msra.mxu0 %v1691
    %1779 = vmatprep.subr.bf16.mxu0 0
    %1780 = vmatpush1.bf16.msra.mxu0 %v1690
    %1781 = vmatprep.subr.bf16.mxu0 0
    %1782 = vmatpush1.bf16.msra.mxu0 %v1689
    %1783 = vmatprep.subr.bf16.mxu0 0
    %1784 = vmatpush1.bf16.msra.mxu0 %v1688
    %1785 = vmatprep.subr.bf16.mxu0 0
    %1786 = vmatpush2.bf16.msra.mxu0 0
    %1787 = vmatprep.subr.bf16.mxu0 0
    %1788 = vmatpush2.bf16.msra.mxu0 0
    %1789 = vmatprep.subr.bf16.mxu0 0
    %1790 = vmatpush2.bf16.msra.mxu0 0
    %1791 = vmatprep.subr.bf16.mxu0 0
    %1792 = vmatpush2.bf16.msra.mxu0 0
    %1793 = vmatprep.subr.bf16.mxu0 0
    %1794 = vmatpush2.bf16.msra.mxu0 0
    %1795 = vmatprep.subr.bf16.mxu0 0
    %1796 = vmatpush2.bf16.msra.mxu0 0
    %1797 = vmatprep.subr.bf16.mxu0 0
    %1798 = vmatpush2.bf16.msra.mxu0 0
    %1799 = vmatprep.subr.bf16.mxu0 0
    %1800 = vmatpush2.bf16.msra.mxu0 0
    %1801 = vmatprep.mubr.bf16.mxu0 0
    %1802 = vmatmul.mubr.bf16.gmra.mxu0 %v1524
    %v1803 = vpop.f32.mrf.mxu0
    %v1804 = vadd.f32 %v1755, %v1803
    %v1805 = vpop.f32.mrf.mxu0
    %v1806 = vpop.f32.mrf.mxu0
    %v1807 = vadd.f32 %v1758, %v1806
    %v1808 = vpop.f32.mrf.mxu0
    %1809 = vmatprep.mubr.bf16.mxu0 0
    %1810 = vmatmul.mubr.bf16.gmra.mxu0 %v1527
    %v1811 = vpop.f32.mrf.mxu0
    %v1812 = vadd.f32 %v1763, %v1811
    %v1813 = vpop.f32.mrf.mxu0
    %v1814 = vpop.f32.mrf.mxu0
    %v1815 = vadd.f32 %v1766, %v1814
    %v1816 = vpop.f32.mrf.mxu0
    %1817 = vdwg.mxu0
    %s1818 = scalar_lea.vmem %s3, 2
    %v1819 = vld [vmem:[%s1818] sm:$0x1]
    %s1820 = scalar_lea.vmem [#allocation6], 2
    %v1821 = vld [vmem:[%s1820] sm:$0x1]
    %1826 = vrot.lane.b32.xlu0 %v1804, 64
    %v1827 = vpop.permute.xlu0 %1826
    %1828 = vrot.lane.b32.xlu0 %v1807, 64
    %v1829 = vpop.permute.xlu0 %1828
    %1830 = vrot.lane.b32.xlu0 %v1812, 64
    %v1831 = vpop.permute.xlu0 %1830
    %1832 = vrot.lane.b32.xlu0 %v1815, 64
    %v1833 = vpop.permute.xlu0 %1832
    %v1838 = vsel %vm336, %v1827, 0.0
    %1839 = vadd.xlane.f32.xlu0 %v1838
    %v1840 = vpop.xlane.xlu0 %1839
    %v1841 = vsel %vm336, %v1829, 0.0
    %1842 = vadd.xlane.f32.xlu0 %v1841
    %v1843 = vpop.xlane.xlu0 %1842
    %v1844 = vsel %vm336, %v1831, 0.0
    %1845 = vadd.xlane.f32.xlu0 %v1844
    %v1846 = vpop.xlane.xlu0 %1845
    %v1847 = vsel %vm336, %v1833, 0.0
    %1848 = vadd.xlane.f32.xlu0 %v1847
    %v1849 = vpop.xlane.xlu0 %1848
    %v1850 = vmul.f32 %v1840, %v687
    %v1851 = vmul.f32 %v1843, %v687
    %v1852 = vmul.f32 %v1846, %v687
    %v1853 = vmul.f32 %v1849, %v687
    %v1854 = vsub.f32 %v1804, %v1850
    %v1855 = vsub.f32 %v1807, %v1851
    %v1856 = vsub.f32 %v1812, %v1852
    %v1857 = vsub.f32 %v1815, %v1853
    %v1858 = vmul.f32 %v1854, %v1854
    %v1859 = vmul.f32 %v1855, %v1855
    %v1860 = vmul.f32 %v1856, %v1856
    %v1861 = vmul.f32 %v1857, %v1857
    %1866 = vrot.lane.b32.xlu0 %v1858, 64
    %v1867 = vpop.permute.xlu0 %1866
    %1868 = vrot.lane.b32.xlu0 %v1859, 64
    %v1869 = vpop.permute.xlu0 %1868
    %1870 = vrot.lane.b32.xlu0 %v1860, 64
    %v1871 = vpop.permute.xlu0 %1870
    %1872 = vrot.lane.b32.xlu0 %v1861, 64
    %v1873 = vpop.permute.xlu0 %1872
    %v1878 = vsel %vm336, %v1867, 0.0
    %1879 = vadd.xlane.f32.xlu0 %v1878
    %v1880 = vpop.xlane.xlu0 %1879
    %v1881 = vsel %vm336, %v1869, 0.0
    %1882 = vadd.xlane.f32.xlu0 %v1881
    %v1883 = vpop.xlane.xlu0 %1882
    %v1884 = vsel %vm336, %v1871, 0.0
    %1885 = vadd.xlane.f32.xlu0 %v1884
    %v1886 = vpop.xlane.xlu0 %1885
    %v1887 = vsel %vm336, %v1873, 0.0
    %1888 = vadd.xlane.f32.xlu0 %v1887
    %v1889 = vpop.xlane.xlu0 %1888
    %v1890 = vmul.f32 %v1880, %v687
    %v1891 = vmul.f32 %v1883, %v687
    %v1892 = vmul.f32 %v1886, %v687
    %v1893 = vmul.f32 %v1889, %v687
    %v1894 = vadd.f32 %v1890, 1e-05
    %v1895 = vadd.f32 %v1891, 1e-05
    %v1896 = vadd.f32 %v1892, 1e-05
    %v1897 = vadd.f32 %v1893, 1e-05
    %v1898 = vrsqrt.pop %v1894
    %v1899 = vrsqrt.pop %v1895
    %v1900 = vrsqrt.pop %v1896
    %v1901 = vrsqrt.pop %v1897
    %v1902 = vmul.f32 %v1854, %v1898
    %v1903 = vmul.f32 %v1855, %v1899
    %v1904 = vmul.f32 %v1856, %v1900
    %v1905 = vmul.f32 %v1857, %v1901
    %v1907 = vlaneseq
    %v1908 = vshrl.u32 %v1907, 7
    %v1909 = vsub.s32 0, %v1908
    %v1910 = vrot.slane %v1819, %v1909
    %1911 = vrot.lane.b32.xlu0 %v1910, 64
    %v1912 = vpop.permute.xlu0 %1911
    %v1914 = vmul.f32 %v1902, %v1912
    %v1915 = vmul.f32 %v1903, %v1912
    %v1916 = vmul.f32 %v1904, %v1912
    %v1917 = vmul.f32 %v1905, %v1912
    %v1919 = vlaneseq
    %v1920 = vshrl.u32 %v1919, 7
    %v1921 = vsub.s32 0, %v1920
    %v1922 = vrot.slane %v1821, %v1921
    %1923 = vrot.lane.b32.xlu0 %v1922, 64
    %v1924 = vpop.permute.xlu0 %1923
    %v1926 = vadd.f32 %v1914, %v1924
    %v1927 = vadd.f32 %v1915, %v1924
    %v1928 = vadd.f32 %v1916, %v1924
    %v1929 = vadd.f32 %v1917, %v1924
    %v1930 = vmax.f32 %v1926, 0.0
    %v1931 = vmax.f32 %v1927, 0.0
    %v1932 = vmax.f32 %v1928, 0.0
    %v1933 = vmax.f32 %v1929, 0.0
    %1936 = vrot.lane.b32.xlu0 %v1930, 64
    %v1937 = vpop.permute.xlu0 %1936
    %1938 = vrot.lane.b32.xlu0 %v1931, 64
    %v1939 = vpop.permute.xlu0 %1938
    %1944 = vrot.lane.b32.xlu0 %v1932, 64
    %v1945 = vpop.permute.xlu0 %1944
    %1946 = vrot.lane.b32.xlu0 %v1933, 64
    %v1947 = vpop.permute.xlu0 %1946
    %v1950 = vrot.slane %v1930, 2
    %v1951 = vrot.slane %v1931, 2
    %v1952 = vsel %vm213, %v1950, %v1951
    %1953 = vrot.lane.b32.xlu0 %v1950, 64
    %v1954 = vpop.permute.xlu0 %1953
    %1955 = vrot.lane.b32.xlu0 %v1952, 64
    %v1956 = vpop.permute.xlu0 %1955
    %1957 = vrot.lane.b32.xlu0 %v1951, 64
    %v1958 = vpop.permute.xlu0 %1957
    %v1961 = vrot.slane %v1932, 2
    %v1962 = vrot.slane %v1933, 2
    %v1963 = vsel %vm213, %v1961, %v1962
    %1964 = vrot.lane.b32.xlu0 %v1961, 64
    %v1965 = vpop.permute.xlu0 %1964
    %1966 = vrot.lane.b32.xlu0 %v1963, 64
    %v1967 = vpop.permute.xlu0 %1966
    %1968 = vrot.lane.b32.xlu0 %v1962, 64
    %v1969 = vpop.permute.xlu0 %1968
    %v1972 = vsel %vm213, 0.0, %v1954
    %v1973 = vsel %vm213, %v1958, 0.0
    %v1974 = vsel %vm213, 0.0, %v1965
    %v1975 = vsel %vm213, %v1969, 0.0
    %v1976 = vrot.slane %v1930, 4
    %v1977 = vrot.slane %v1931, 4
    %v1978 = vsel %vm230, %v1976, %v1977
    %1979 = vrot.lane.b32.xlu0 %v1976, 64
    %v1980 = vpop.permute.xlu0 %1979
    %1981 = vrot.lane.b32.xlu0 %v1978, 64
    %v1982 = vpop.permute.xlu0 %1981
    %1983 = vrot.lane.b32.xlu0 %v1977, 64
    %v1984 = vpop.permute.xlu0 %1983
    %v1987 = vrot.slane %v1932, 4
    %v1988 = vrot.slane %v1933, 4
    %v1989 = vsel %vm230, %v1987, %v1988
    %1990 = vrot.lane.b32.xlu0 %v1987, 64
    %v1991 = vpop.permute.xlu0 %1990
    %1992 = vrot.lane.b32.xlu0 %v1989, 64
    %v1993 = vpop.permute.xlu0 %1992
    %1994 = vrot.lane.b32.xlu0 %v1988, 64
    %v1995 = vpop.permute.xlu0 %1994
    %v1998 = vsel %vm230, 0.0, %v1980
    %v1999 = vsel %vm230, %v1984, 0.0
    %v2000 = vsel %vm230, 0.0, %v1991
    %v2001 = vsel %vm230, %v1995, 0.0
    %v2002 = vrot.slane %v1930, 6
    %v2003 = vrot.slane %v1931, 6
    %v2004 = vsel %vm245, %v2002, %v2003
    %2005 = vrot.lane.b32.xlu0 %v2002, 64
    %v2006 = vpop.permute.xlu0 %2005
    %2007 = vrot.lane.b32.xlu0 %v2004, 64
    %v2008 = vpop.permute.xlu0 %2007
    %2009 = vrot.lane.b32.xlu0 %v2003, 64
    %v2010 = vpop.permute.xlu0 %2009
    %v2013 = vrot.slane %v1932, 6
    %v2014 = vrot.slane %v1933, 6
    %v2015 = vsel %vm245, %v2013, %v2014
    %2016 = vrot.lane.b32.xlu0 %v2013, 64
    %v2017 = vpop.permute.xlu0 %2016
    %2018 = vrot.lane.b32.xlu0 %v2015, 64
    %v2019 = vpop.permute.xlu0 %2018
    %2020 = vrot.lane.b32.xlu0 %v2014, 64
    %v2021 = vpop.permute.xlu0 %2020
    %v2024 = vsel %vm245, 0.0, %v2006
    %v2025 = vsel %vm245, %v2010, 0.0
    %v2026 = vsel %vm245, 0.0, %v2017
    %v2027 = vsel %vm245, %v2021, 0.0
    %2032 = vrot.lane.b32.xlu0 %v1972, 32
    %v2033 = vpop.permute.xlu0 %2032
    %2034 = vrot.lane.b32.xlu0 %v1956, 32
    %v2035 = vpop.permute.xlu0 %2034
    %2036 = vrot.lane.b32.xlu0 %v1973, 32
    %v2037 = vpop.permute.xlu0 %2036
    %2038 = vrot.lane.b32.xlu0 %v1974, 32
    %v2039 = vpop.permute.xlu0 %2038
    %2040 = vrot.lane.b32.xlu0 %v1967, 32
    %v2041 = vpop.permute.xlu0 %2040
    %2042 = vrot.lane.b32.xlu0 %v1975, 32
    %v2043 = vpop.permute.xlu0 %2042
    %2054 = vrot.lane.b32.xlu0 %v1998, 64
    %v2055 = vpop.permute.xlu0 %2054
    %2056 = vrot.lane.b32.xlu0 %v1982, 64
    %v2057 = vpop.permute.xlu0 %2056
    %2058 = vrot.lane.b32.xlu0 %v1999, 64
    %v2059 = vpop.permute.xlu0 %2058
    %2060 = vrot.lane.b32.xlu0 %v2000, 64
    %v2061 = vpop.permute.xlu0 %2060
    %2062 = vrot.lane.b32.xlu0 %v1993, 64
    %v2063 = vpop.permute.xlu0 %2062
    %2064 = vrot.lane.b32.xlu0 %v2001, 64
    %v2065 = vpop.permute.xlu0 %2064
    %2076 = vrot.lane.b32.xlu0 %v2024, 96
    %v2077 = vpop.permute.xlu0 %2076
    %2078 = vrot.lane.b32.xlu0 %v2008, 96
    %v2079 = vpop.permute.xlu0 %2078
    %2080 = vrot.lane.b32.xlu0 %v2025, 96
    %v2081 = vpop.permute.xlu0 %2080
    %2082 = vrot.lane.b32.xlu0 %v2026, 96
    %v2083 = vpop.permute.xlu0 %2082
    %2084 = vrot.lane.b32.xlu0 %v2019, 96
    %v2085 = vpop.permute.xlu0 %2084
    %2086 = vrot.lane.b32.xlu0 %v2027, 96
    %v2087 = vpop.permute.xlu0 %2086
    %v2094 = vsel %vm336, 0.0, %v2033
    %v2095 = vsel %vm336, %v1937, %v2035
    %v2096 = vsel %vm336, %v1939, %v2037
    %v2097 = vsel %vm336, 0.0, %v2039
    %v2098 = vsel %vm336, %v1945, %v2041
    %v2099 = vsel %vm336, %v1947, %v2043
    %v2100 = vsel %vm344, %v2094, %v2055
    %v2101 = vsel %vm344, %v2095, %v2057
    %v2102 = vsel %vm344, %v2096, %v2059
    %v2103 = vsel %vm344, %v2097, %v2061
    %v2104 = vsel %vm344, %v2098, %v2063
    %v2105 = vsel %vm344, %v2099, %v2065
    %v2106 = vsel %vm352, %v2100, %v2077
    %v2107 = vsel %vm352, %v2101, %v2079
    %v2108 = vsel %vm352, %v2102, %v2081
    %v2109 = vsel %vm352, %v2103, %v2083
    %v2110 = vsel %vm352, %v2104, %v2085
    %v2111 = vsel %vm352, %v2105, %v2087
    %2112 = vst [vmem:[#allocation2] sm:$0xff] %v2106
    %2113 = vst [vmem:[#allocation2 + $0x8] sm:$0xff] %v2107
    %2114 = vst [vmem:[#allocation2 + $0x10] sm:$0xff] %v2108
    %2115 = vst [vmem:[#allocation2 + $0x18] sm:$0xff] %v356
    %2116 = vst [vmem:[#allocation2 + $0x20] sm:$0xff] %v2109
    %2117 = vst [vmem:[#allocation2 + $0x28] sm:$0xff] %v2110
    %2118 = vst [vmem:[#allocation2 + $0x30] sm:$0xff] %v2111
    %2119 = vst [vmem:[#allocation2 + $0x38] sm:$0xff] %v356
    %v2120 = vld [vmem:[#allocation2] sm:$0xff]
    %v2121 = vld [vmem:[#allocation2 + $0x8] sm:$0xff]
    %v2122 = vld [vmem:[#allocation2 + $0x10] sm:$0xff]
    %v2123 = vld [vmem:[#allocation2 + $0x18] sm:$0xff]
    %v2124 = vld [vmem:[#allocation2 + $0x20] sm:$0xff]
    %v2125 = vld [vmem:[#allocation2 + $0x28] sm:$0xff]
    %v2126 = vld [vmem:[#allocation2 + $0x30] sm:$0xff]
    %v2127 = vld [vmem:[#allocation2 + $0x30] sm:$0xff]
    %v2128 = vld [vmem:[#allocation2 + $0x38] sm:$0xff]
    %v2129 = vpack.c.bf16 %v2121, %v2120
    %v2130 = vpack.c.bf16 %v2122, %v2121
    %v2131 = vpack.c.bf16 %v2123, %v2122
    %v2132 = vpack.c.bf16 %v2125, %v2124
    %v2133 = vpack.c.bf16 %v2126, %v2125
    %v2134 = vpack.c.bf16 %v2128, %v2127
    %v2135 = vld [vmem:[#allocation4] sm:$0xf]
    %v2136 = vld [vmem:[#allocation4 + $0x4] sm:$0xf]
    %v2137 = vld [vmem:[#allocation4 + $0x8] sm:$0xf]
    %v2138 = vld [vmem:[#allocation4 + $0xc] sm:$0xf]
    %v2139 = vld [vmem:[#allocation4 + $0x10] sm:$0xf]
    %v2140 = vld [vmem:[#allocation4 + $0x14] sm:$0xf]
    %v2141 = vld [vmem:[#allocation4 + $0x18] sm:$0xf]
    %v2142 = vld [vmem:[#allocation4 + $0x1c] sm:$0xf]
    %v2143 = vld [vmem:[#allocation4 + $0x20] sm:$0xf]
    %v2144 = vld [vmem:[#allocation4 + $0x24] sm:$0xf]
    %v2145 = vld [vmem:[#allocation4 + $0x28] sm:$0xf]
    %v2146 = vld [vmem:[#allocation4 + $0x2c] sm:$0xf]
    %v2147 = vld [vmem:[#allocation4 + $0x30] sm:$0xf]
    %v2148 = vld [vmem:[#allocation4 + $0x34] sm:$0xf]
    %v2149 = vld [vmem:[#allocation4 + $0x38] sm:$0xf]
    %v2150 = vld [vmem:[#allocation4 + $0x3c] sm:$0xf]
    %v2151 = vld [vmem:[#allocation4 + $0x40] sm:$0xf]
    %v2152 = vld [vmem:[#allocation4 + $0x44] sm:$0xf]
    %v2153 = vld [vmem:[#allocation4 + $0x48] sm:$0xf]
    %v2154 = vld [vmem:[#allocation4 + $0x4c] sm:$0xf]
    %v2155 = vld [vmem:[#allocation4 + $0x50] sm:$0xf]
    %v2156 = vld [vmem:[#allocation4 + $0x54] sm:$0xf]
    %v2157 = vld [vmem:[#allocation4 + $0x58] sm:$0xf]
    %v2158 = vld [vmem:[#allocation4 + $0x5c] sm:$0xf]
    %v2159 = vld [vmem:[#allocation4 + $0x60] sm:$0xf]
    %v2160 = vld [vmem:[#allocation4 + $0x64] sm:$0xf]
    %v2161 = vld [vmem:[#allocation4 + $0x68] sm:$0xf]
    %v2162 = vld [vmem:[#allocation4 + $0x6c] sm:$0xf]
    %v2163 = vld [vmem:[#allocation4 + $0x70] sm:$0xf]
    %v2164 = vld [vmem:[#allocation4 + $0x74] sm:$0xf]
    %v2165 = vld [vmem:[#allocation4 + $0x78] sm:$0xf]
    %v2166 = vld [vmem:[#allocation4 + $0x7c] sm:$0xf]
    %v2167 = vld [vmem:[#allocation4 + $0x80] sm:$0xf]
    %v2168 = vld [vmem:[#allocation4 + $0x84] sm:$0xf]
    %v2169 = vld [vmem:[#allocation4 + $0x88] sm:$0xf]
    %v2170 = vld [vmem:[#allocation4 + $0x8c] sm:$0xf]
    %v2171 = vld [vmem:[#allocation4 + $0x90] sm:$0xf]
    %v2172 = vld [vmem:[#allocation4 + $0x94] sm:$0xf]
    %v2173 = vld [vmem:[#allocation4 + $0x98] sm:$0xf]
    %v2174 = vld [vmem:[#allocation4 + $0x9c] sm:$0xf]
    %v2175 = vld [vmem:[#allocation4 + $0xa0] sm:$0xf]
    %v2176 = vld [vmem:[#allocation4 + $0xa4] sm:$0xf]
    %v2177 = vld [vmem:[#allocation4 + $0xa8] sm:$0xf]
    %v2178 = vld [vmem:[#allocation4 + $0xac] sm:$0xf]
    %v2179 = vld [vmem:[#allocation4 + $0xb0] sm:$0xf]
    %v2180 = vld [vmem:[#allocation4 + $0xb4] sm:$0xf]
    %v2181 = vld [vmem:[#allocation4 + $0xb8] sm:$0xf]
    %v2182 = vld [vmem:[#allocation4 + $0xbc] sm:$0xf]
    %v2231 = vunpack.c.l.b16 %v2135
    %v2232 = vunpack.c.l.b16 %v2136
    %v2233 = vunpack.c.l.b16 %v2137
    %v2234 = vunpack.c.l.b16 %v2138
    %v2235 = vunpack.c.l.b16 %v2139
    %v2236 = vunpack.c.l.b16 %v2140
    %v2237 = vunpack.c.l.b16 %v2141
    %v2238 = vunpack.c.l.b16 %v2142
    %v2239 = vunpack.c.l.b16 %v2143
    %v2240 = vunpack.c.l.b16 %v2144
    %v2241 = vunpack.c.l.b16 %v2145
    %v2242 = vunpack.c.l.b16 %v2146
    %v2243 = vunpack.c.l.b16 %v2147
    %v2244 = vunpack.c.l.b16 %v2148
    %v2245 = vunpack.c.l.b16 %v2149
    %v2246 = vunpack.c.l.b16 %v2150
    %v2247 = vunpack.c.l.b16 %v2151
    %v2248 = vunpack.c.l.b16 %v2152
    %v2249 = vunpack.c.l.b16 %v2153
    %v2250 = vunpack.c.l.b16 %v2154
    %v2251 = vunpack.c.l.b16 %v2155
    %v2252 = vunpack.c.l.b16 %v2156
    %v2253 = vunpack.c.l.b16 %v2157
    %v2254 = vunpack.c.l.b16 %v2158
    %v2255 = vunpack.c.l.b16 %v2159
    %v2256 = vunpack.c.l.b16 %v2160
    %v2257 = vunpack.c.l.b16 %v2161
    %v2258 = vunpack.c.l.b16 %v2162
    %v2259 = vunpack.c.l.b16 %v2163
    %v2260 = vunpack.c.l.b16 %v2164
    %v2261 = vunpack.c.l.b16 %v2165
    %v2262 = vunpack.c.l.b16 %v2166
    %v2263 = vunpack.c.l.b16 %v2167
    %v2264 = vunpack.c.l.b16 %v2168
    %v2265 = vunpack.c.l.b16 %v2169
    %v2266 = vunpack.c.l.b16 %v2170
    %v2267 = vunpack.c.l.b16 %v2171
    %v2268 = vunpack.c.l.b16 %v2172
    %v2269 = vunpack.c.l.b16 %v2173
    %v2270 = vunpack.c.l.b16 %v2174
    %v2271 = vunpack.c.l.b16 %v2175
    %v2272 = vunpack.c.l.b16 %v2176
    %v2273 = vunpack.c.l.b16 %v2177
    %v2274 = vunpack.c.l.b16 %v2178
    %v2275 = vunpack.c.l.b16 %v2179
    %v2276 = vunpack.c.l.b16 %v2180
    %v2277 = vunpack.c.l.b16 %v2181
    %v2278 = vunpack.c.l.b16 %v2182
    %v2279 = vpack.c.b16 %v2232, %v2231
    %v2280 = vpack.c.b16 %v2234, %v2233
    %v2281 = vpack.c.b16 %v2236, %v2235
    %v2282 = vpack.c.b16 %v2238, %v2237
    %v2283 = vpack.c.b16 %v2240, %v2239
    %v2284 = vpack.c.b16 %v2242, %v2241
    %v2285 = vpack.c.b16 %v2244, %v2243
    %v2286 = vpack.c.b16 %v2246, %v2245
    %v2287 = vpack.c.b16 %v2248, %v2247
    %v2288 = vpack.c.b16 %v2250, %v2249
    %v2289 = vpack.c.b16 %v2252, %v2251
    %v2290 = vpack.c.b16 %v2254, %v2253
    %v2291 = vpack.c.b16 %v2256, %v2255
    %v2292 = vpack.c.b16 %v2258, %v2257
    %v2293 = vpack.c.b16 %v2260, %v2259
    %v2294 = vpack.c.b16 %v2262, %v2261
    %v2295 = vpack.c.b16 %v2264, %v2263
    %v2296 = vpack.c.b16 %v2266, %v2265
    %v2297 = vpack.c.b16 %v2268, %v2267
    %v2298 = vpack.c.b16 %v2270, %v2269
    %v2299 = vpack.c.b16 %v2272, %v2271
    %v2300 = vpack.c.b16 %v2274, %v2273
    %v2301 = vpack.c.b16 %v2276, %v2275
    %v2302 = vpack.c.b16 %v2278, %v2277
    %2327 = vmatprep.subr.bf16.mxu0 0
    %2328 = vmatpush1.bf16.msra.mxu0 %v2286
    %2329 = vmatprep.subr.bf16.mxu0 0
    %2330 = vmatpush1.bf16.msra.mxu0 %v2285
    %2331 = vmatprep.subr.bf16.mxu0 0
    %2332 = vmatpush1.bf16.msra.mxu0 %v2284
    %2333 = vmatprep.subr.bf16.mxu0 0
    %2334 = vmatpush1.bf16.msra.mxu0 %v2283
    %2335 = vmatprep.subr.bf16.mxu0 0
    %2336 = vmatpush1.bf16.msra.mxu0 %v2282
    %2337 = vmatprep.subr.bf16.mxu0 0
    %2338 = vmatpush1.bf16.msra.mxu0 %v2281
    %2339 = vmatprep.subr.bf16.mxu0 0
    %2340 = vmatpush1.bf16.msra.mxu0 %v2280
    %2341 = vmatprep.subr.bf16.mxu0 0
    %2342 = vmatpush1.bf16.msra.mxu0 %v2279
    %2343 = vmatprep.subr.bf16.mxu0 0
    %2344 = vmatpush2.bf16.msra.mxu0 %v2294
    %2345 = vmatprep.subr.bf16.mxu0 0
    %2346 = vmatpush2.bf16.msra.mxu0 %v2293
    %2347 = vmatprep.subr.bf16.mxu0 0
    %2348 = vmatpush2.bf16.msra.mxu0 %v2292
    %2349 = vmatprep.subr.bf16.mxu0 0
    %2350 = vmatpush2.bf16.msra.mxu0 %v2291
    %2351 = vmatprep.subr.bf16.mxu0 0
    %2352 = vmatpush2.bf16.msra.mxu0 %v2290
    %2353 = vmatprep.subr.bf16.mxu0 0
    %2354 = vmatpush2.bf16.msra.mxu0 %v2289
    %2355 = vmatprep.subr.bf16.mxu0 0
    %2356 = vmatpush2.bf16.msra.mxu0 %v2288
    %2357 = vmatprep.subr.bf16.mxu0 0
    %2358 = vmatpush2.bf16.msra.mxu0 %v2287
    %2359 = vmatprep.mubr.bf16.mxu0 %v2130
    %2360 = vmatmul.mubr.bf16.gmra.mxu0 %v2129
    %v2361 = vpop.f32.mrf.mxu0
    %v2362 = vadd.f32 0.0, %v2361
    %v2363 = vpop.f32.mrf.mxu0
    %v2364 = vpop.f32.mrf.mxu0
    %v2365 = vadd.f32 0.0, %v2364
    %v2366 = vpop.f32.mrf.mxu0
    %2367 = vmatprep.mubr.bf16.mxu0 %v2133
    %2368 = vmatmul.mubr.bf16.gmra.mxu0 %v2132
    %v2369 = vpop.f32.mrf.mxu0
    %v2370 = vadd.f32 0.0, %v2369
    %v2371 = vpop.f32.mrf.mxu0
    %v2372 = vpop.f32.mrf.mxu0
    %v2373 = vadd.f32 0.0, %v2372
    %v2374 = vpop.f32.mrf.mxu0
    %2375 = vdwg.mxu0
    %2376 = vmatprep.subr.bf16.mxu0 0
    %2377 = vmatpush1.bf16.msra.mxu0 %v2302
    %2378 = vmatprep.subr.bf16.mxu0 0
    %2379 = vmatpush1.bf16.msra.mxu0 %v2301
    %2380 = vmatprep.subr.bf16.mxu0 0
    %2381 = vmatpush1.bf16.msra.mxu0 %v2300
    %2382 = vmatprep.subr.bf16.mxu0 0
    %2383 = vmatpush1.bf16.msra.mxu0 %v2299
    %2384 = vmatprep.subr.bf16.mxu0 0
    %2385 = vmatpush1.bf16.msra.mxu0 %v2298
    %2386 = vmatprep.subr.bf16.mxu0 0
    %2387 = vmatpush1.bf16.msra.mxu0 %v2297
    %2388 = vmatprep.subr.bf16.mxu0 0
    %2389 = vmatpush1.bf16.msra.mxu0 %v2296
    %2390 = vmatprep.subr.bf16.mxu0 0
    %2391 = vmatpush1.bf16.msra.mxu0 %v2295
    %2392 = vmatprep.subr.bf16.mxu0 0
    %2393 = vmatpush2.bf16.msra.mxu0 0
    %2394 = vmatprep.subr.bf16.mxu0 0
    %2395 = vmatpush2.bf16.msra.mxu0 0
    %2396 = vmatprep.subr.bf16.mxu0 0
    %2397 = vmatpush2.bf16.msra.mxu0 0
    %2398 = vmatprep.subr.bf16.mxu0 0
    %2399 = vmatpush2.bf16.msra.mxu0 0
    %2400 = vmatprep.subr.bf16.mxu0 0
    %2401 = vmatpush2.bf16.msra.mxu0 0
    %2402 = vmatprep.subr.bf16.mxu0 0
    %2403 = vmatpush2.bf16.msra.mxu0 0
    %2404 = vmatprep.subr.bf16.mxu0 0
    %2405 = vmatpush2.bf16.msra.mxu0 0
    %2406 = vmatprep.subr.bf16.mxu0 0
    %2407 = vmatpush2.bf16.msra.mxu0 0
    %2408 = vmatprep.mubr.bf16.mxu0 0
    %2409 = vmatmul.mubr.bf16.gmra.mxu0 %v2131
    %v2410 = vpop.f32.mrf.mxu0
    %v2411 = vadd.f32 %v2362, %v2410
    %v2412 = vpop.f32.mrf.mxu0
    %v2413 = vpop.f32.mrf.mxu0
    %v2414 = vadd.f32 %v2365, %v2413
    %v2415 = vpop.f32.mrf.mxu0
    %2416 = vmatprep.mubr.bf16.mxu0 0
    %2417 = vmatmul.mubr.bf16.gmra.mxu0 %v2134
    %v2418 = vpop.f32.mrf.mxu0
    %v2419 = vadd.f32 %v2370, %v2418
    %v2420 = vpop.f32.mrf.mxu0
    %v2421 = vpop.f32.mrf.mxu0
    %v2422 = vadd.f32 %v2373, %v2421
    %v2423 = vpop.f32.mrf.mxu0
    %2424 = vdwg.mxu0
    %s2425 = scalar_lea.vmem %s3, 3
    %v2426 = vld [vmem:[%s2425] sm:$0x1]
    %s2427 = scalar_lea.vmem [#allocation6], 3
    %v2428 = vld [vmem:[%s2427] sm:$0x1]
    %2433 = vrot.lane.b32.xlu0 %v2411, 32
    %v2434 = vpop.permute.xlu0 %2433
    %2435 = vrot.lane.b32.xlu0 %v2414, 32
    %v2436 = vpop.permute.xlu0 %2435
    %2437 = vrot.lane.b32.xlu0 %v2419, 32
    %v2438 = vpop.permute.xlu0 %2437
    %2439 = vrot.lane.b32.xlu0 %v2422, 32
    %v2440 = vpop.permute.xlu0 %2439
    %v2445 = vsel %vm336, %v2434, 0.0
    %2446 = vadd.xlane.f32.xlu0 %v2445
    %v2447 = vpop.xlane.xlu0 %2446
    %v2448 = vsel %vm336, %v2436, 0.0
    %2449 = vadd.xlane.f32.xlu0 %v2448
    %v2450 = vpop.xlane.xlu0 %2449
    %v2451 = vsel %vm336, %v2438, 0.0
    %2452 = vadd.xlane.f32.xlu0 %v2451
    %v2453 = vpop.xlane.xlu0 %2452
    %v2454 = vsel %vm336, %v2440, 0.0
    %2455 = vadd.xlane.f32.xlu0 %v2454
    %v2456 = vpop.xlane.xlu0 %2455
    %v2457 = vmul.f32 %v2447, %v687
    %v2458 = vmul.f32 %v2450, %v687
    %v2459 = vmul.f32 %v2453, %v687
    %v2460 = vmul.f32 %v2456, %v687
    %v2461 = vsub.f32 %v2411, %v2457
    %v2462 = vsub.f32 %v2414, %v2458
    %v2463 = vsub.f32 %v2419, %v2459
    %v2464 = vsub.f32 %v2422, %v2460
    %v2465 = vmul.f32 %v2461, %v2461
    %v2466 = vmul.f32 %v2462, %v2462
    %v2467 = vmul.f32 %v2463, %v2463
    %v2468 = vmul.f32 %v2464, %v2464
    %2473 = vrot.lane.b32.xlu0 %v2465, 32
    %v2474 = vpop.permute.xlu0 %2473
    %2475 = vrot.lane.b32.xlu0 %v2466, 32
    %v2476 = vpop.permute.xlu0 %2475
    %2477 = vrot.lane.b32.xlu0 %v2467, 32
    %v2478 = vpop.permute.xlu0 %2477
    %2479 = vrot.lane.b32.xlu0 %v2468, 32
    %v2480 = vpop.permute.xlu0 %2479
    %v2485 = vsel %vm336, %v2474, 0.0
    %2486 = vadd.xlane.f32.xlu0 %v2485
    %v2487 = vpop.xlane.xlu0 %2486
    %v2488 = vsel %vm336, %v2476, 0.0
    %2489 = vadd.xlane.f32.xlu0 %v2488
    %v2490 = vpop.xlane.xlu0 %2489
    %v2491 = vsel %vm336, %v2478, 0.0
    %2492 = vadd.xlane.f32.xlu0 %v2491
    %v2493 = vpop.xlane.xlu0 %2492
    %v2494 = vsel %vm336, %v2480, 0.0
    %2495 = vadd.xlane.f32.xlu0 %v2494
    %v2496 = vpop.xlane.xlu0 %2495
    %v2497 = vmul.f32 %v2487, %v687
    %v2498 = vmul.f32 %v2490, %v687
    %v2499 = vmul.f32 %v2493, %v687
    %v2500 = vmul.f32 %v2496, %v687
    %v2501 = vadd.f32 %v2497, 1e-05
    %v2502 = vadd.f32 %v2498, 1e-05
    %v2503 = vadd.f32 %v2499, 1e-05
    %v2504 = vadd.f32 %v2500, 1e-05
    %v2505 = vrsqrt.pop %v2501
    %v2506 = vrsqrt.pop %v2502
    %v2507 = vrsqrt.pop %v2503
    %v2508 = vrsqrt.pop %v2504
    %v2509 = vmul.f32 %v2461, %v2505
    %v2510 = vmul.f32 %v2462, %v2506
    %v2511 = vmul.f32 %v2463, %v2507
    %v2512 = vmul.f32 %v2464, %v2508
    %v2514 = vlaneseq
    %v2515 = vshrl.u32 %v2514, 7
    %v2516 = vsub.s32 0, %v2515
    %v2517 = vrot.slane %v2426, %v2516
    %2518 = vrot.lane.b32.xlu0 %v2517, 96
    %v2519 = vpop.permute.xlu0 %2518
    %v2521 = vmul.f32 %v2509, %v2519
    %v2522 = vmul.f32 %v2510, %v2519
    %v2523 = vmul.f32 %v2511, %v2519
    %v2524 = vmul.f32 %v2512, %v2519
    %v2526 = vlaneseq
    %v2527 = vshrl.u32 %v2526, 7
    %v2528 = vsub.s32 0, %v2527
    %v2529 = vrot.slane %v2428, %v2528
    %2530 = vrot.lane.b32.xlu0 %v2529, 96
    %v2531 = vpop.permute.xlu0 %2530
    %v2533 = vadd.f32 %v2521, %v2531
    %v2534 = vadd.f32 %v2522, %v2531
    %v2535 = vadd.f32 %v2523, %v2531
    %v2536 = vadd.f32 %v2524, %v2531
    %2537 = vrot.lane.b32.xlu0 %v1323, 64
    %v2538 = vpop.permute.xlu0 %2537
    %2539 = vrot.lane.b32.xlu0 %v1324, 64
    %v2540 = vpop.permute.xlu0 %2539
    %2541 = vrot.lane.b32.xlu0 %v1325, 64
    %v2542 = vpop.permute.xlu0 %2541
    %2543 = vrot.lane.b32.xlu0 %v1326, 64
    %v2544 = vpop.permute.xlu0 %2543
    %v2549 = vadd.f32 %v2533, %v2538
    %v2550 = vadd.f32 %v2534, %v2540
    %v2551 = vadd.f32 %v2535, %v2542
    %v2552 = vadd.f32 %v2536, %v2544
    %v2553 = vmax.f32 %v2549, 0.0
    %v2554 = vmax.f32 %v2550, 0.0
    %v2555 = vmax.f32 %v2551, 0.0
    %v2556 = vmax.f32 %v2552, 0.0
    %vm2557 = vcmask 1048320
    %v2558 = vsel %vm2557, %v2553, 0.0
    %v2559 = vsel %vm2557, %v2554, 0.0
    %v2560 = vadd.f32 %v2558, %v2559
    %v2561 = vrot.slane %v2560, 4
    %v2562 = vadd.f32 %v2560, %v2561
    %v2563 = vrot.slane %v2562, 2
    %v2564 = vadd.f32 %v2562, %v2563
    %v2565 = vrot.slane %v2564, 1
    %v2566 = vadd.f32 %v2564, %v2565
    %v2567 = vrcp.pop 16.0
    %v2568 = vmul.f32 %v2566, %v2567
    %v2569 = vsel %vm2557, %v2555, 0.0
    %v2570 = vsel %vm2557, %v2556, 0.0
    %v2571 = vadd.f32 %v2569, %v2570
    %v2572 = vrot.slane %v2571, 4
    %v2573 = vadd.f32 %v2571, %v2572
    %v2574 = vrot.slane %v2573, 2
    %v2575 = vadd.f32 %v2573, %v2574
    %v2576 = vrot.slane %v2575, 1
    %v2577 = vadd.f32 %v2575, %v2576
    %v2578 = vmul.f32 %v2577, %v2567
    %v2579 = vsel %vm122, %v2568, %v2578
    %v2580 = vpack.c.bf16 %v2579, %v2579
    %v2581 = vld [vmem:[#allocation8] sm:$0xff]
    %v2582 = vld [vmem:[#allocation8 + $0x8] sm:$0xff]
    %v2583 = vld [vmem:[#allocation8 + $0x10] sm:$0xff]
    %v2584 = vld [vmem:[#allocation8 + $0x18] sm:$0xff]
    %v2585 = vld [vmem:[#allocation8 + $0x20] sm:$0xff]
    %v2586 = vld [vmem:[#allocation8 + $0x28] sm:$0xff]
    %v2587 = vld [vmem:[#allocation8 + $0x30] sm:$0xff]
    %v2588 = vld [vmem:[#allocation8 + $0x38] sm:$0xff]
    %v2589 = vld [vmem:[%s6] sm:$0xf]
    %v2591 = vlaneseq
    %v2592 = vshrl.u32 %v2591, 7
    %v2593 = vsub.s32 0, %v2592
    %v2594 = vrot.slane %v2589, %v2593
    %v2595 = vlaneseq
    %v2596 = vshrl.u32 %v2595, 7
    %v2597 = vsub.s32 1, %v2596
    %v2598 = vrot.slane %v2589, %v2597
    %v2599 = vlaneseq
    %v2600 = vshrl.u32 %v2599, 7
    %v2601 = vsub.s32 2, %v2600
    %v2602 = vrot.slane %v2589, %v2601
    %v2603 = vlaneseq
    %v2604 = vshrl.u32 %v2603, 7
    %v2605 = vsub.s32 3, %v2604
    %v2606 = vrot.slane %v2589, %v2605
    %2612 = vrot.lane.b32.xlu0 %v2580, 32
    %v2613 = vpop.permute.xlu0 %2612
    %v2622 = vunpack.c.l.b16 %v2581
    %v2623 = vunpack.c.h.b16 %v2581
    %v2624 = vunpack.c.l.b16 %v2582
    %v2625 = vunpack.c.h.b16 %v2582
    %v2626 = vunpack.c.l.b16 %v2583
    %v2627 = vunpack.c.h.b16 %v2583
    %v2628 = vunpack.c.l.b16 %v2584
    %v2629 = vunpack.c.h.b16 %v2584
    %v2630 = vunpack.c.l.b16 %v2585
    %v2631 = vunpack.c.h.b16 %v2585
    %v2632 = vunpack.c.l.b16 %v2586
    %v2633 = vunpack.c.h.b16 %v2586
    %v2634 = vunpack.c.l.b16 %v2587
    %v2635 = vunpack.c.h.b16 %v2587
    %v2636 = vunpack.c.l.b16 %v2588
    %v2637 = vunpack.c.h.b16 %v2588
    %v2638 = vpack.c.b16 %v2626, %v2622
    %v2639 = vpack.c.b16 %v2627, %v2623
    %v2640 = vpack.c.b16 %v2628, %v2624
    %v2641 = vpack.c.b16 %v2629, %v2625
    %v2642 = vpack.c.b16 %v2634, %v2630
    %v2643 = vpack.c.b16 %v2635, %v2631
    %v2644 = vpack.c.b16 %v2636, %v2632
    %v2645 = vpack.c.b16 %v2637, %v2633
    %v2655 = vsel %vm336, %v2613, 0
    %2657 = vmatprep.subr.bf16.mxu0 0
    %2658 = vmatpush1.bf16.msra.mxu0 0
    %2659 = vmatprep.subr.bf16.mxu0 0
    %2660 = vmatpush1.bf16.msra.mxu0 0
    %2661 = vmatprep.subr.bf16.mxu0 0
    %2662 = vmatpush1.bf16.msra.mxu0 0
    %2663 = vmatprep.subr.bf16.mxu0 0
    %2664 = vmatpush1.bf16.msra.mxu0 0
    %2665 = vmatprep.subr.bf16.mxu0 0
    %2666 = vmatpush1.bf16.msra.mxu0 0
    %2667 = vmatprep.subr.bf16.mxu0 0
    %2668 = vmatpush1.bf16.msra.mxu0 0
    %2669 = vmatprep.subr.bf16.mxu0 %v2643
    %2670 = vmatpush1.bf16.msra.mxu0 %v2642
    %2671 = vmatprep.subr.bf16.mxu0 %v2639
    %2672 = vmatpush1.bf16.msra.mxu0 %v2638
    %2673 = vmatprep.subr.bf16.mxu0 0
    %2674 = vmatpush2.bf16.msra.mxu0 0
    %2675 = vmatprep.subr.bf16.mxu0 0
    %2676 = vmatpush2.bf16.msra.mxu0 0
    %2677 = vmatprep.subr.bf16.mxu0 0
    %2678 = vmatpush2.bf16.msra.mxu0 0
    %2679 = vmatprep.subr.bf16.mxu0 0
    %2680 = vmatpush2.bf16.msra.mxu0 0
    %2681 = vmatprep.subr.bf16.mxu0 0
    %2682 = vmatpush2.bf16.msra.mxu0 0
    %2683 = vmatprep.subr.bf16.mxu0 0
    %2684 = vmatpush2.bf16.msra.mxu0 0
    %2685 = vmatprep.subr.bf16.mxu0 0
    %2686 = vmatpush2.bf16.msra.mxu0 0
    %2687 = vmatprep.subr.bf16.mxu0 0
    %2688 = vmatpush2.bf16.msra.mxu0 0
    %2689 = vmatprep.mubr.bf16.mxu0 0
    %2690 = vmatmul.mubr.bf16.gmra.mxu0 %v2655
    %v2691 = vpop.f32.mrf.mxu0
    %v2692 = vadd.f32 %v2594, %v2691
    %v2693 = vpop.f32.mrf.mxu0
    %v2694 = vadd.f32 %v2598, %v2693
    %v2695 = vpop.f32.mrf.mxu0
    %v2696 = vpop.f32.mrf.mxu0
    %2697 = vdwg.mxu0
    %2698 = vmatprep.subr.bf16.mxu0 0
    %2699 = vmatpush1.bf16.msra.mxu0 0
    %2700 = vmatprep.subr.bf16.mxu0 0
    %2701 = vmatpush1.bf16.msra.mxu0 0
    %2702 = vmatprep.subr.bf16.mxu0 0
    %2703 = vmatpush1.bf16.msra.mxu0 0
    %2704 = vmatprep.subr.bf16.mxu0 0
    %2705 = vmatpush1.bf16.msra.mxu0 0
    %2706 = vmatprep.subr.bf16.mxu0 0
    %2707 = vmatpush1.bf16.msra.mxu0 0
    %2708 = vmatprep.subr.bf16.mxu0 0
    %2709 = vmatpush1.bf16.msra.mxu0 0
    %2710 = vmatprep.subr.bf16.mxu0 %v2645
    %2711 = vmatpush1.bf16.msra.mxu0 %v2644
    %2712 = vmatprep.subr.bf16.mxu0 %v2641
    %2713 = vmatpush1.bf16.msra.mxu0 %v2640
    %2714 = vmatprep.subr.bf16.mxu0 0
    %2715 = vmatpush2.bf16.msra.mxu0 0
    %2716 = vmatprep.subr.bf16.mxu0 0
    %2717 = vmatpush2.bf16.msra.mxu0 0
    %2718 = vmatprep.subr.bf16.mxu0 0
    %2719 = vmatpush2.bf16.msra.mxu0 0
    %2720 = vmatprep.subr.bf16.mxu0 0
    %2721 = vmatpush2.bf16.msra.mxu0 0
    %2722 = vmatprep.subr.bf16.mxu0 0
    %2723 = vmatpush2.bf16.msra.mxu0 0
    %2724 = vmatprep.subr.bf16.mxu0 0
    %2725 = vmatpush2.bf16.msra.mxu0 0
    %2726 = vmatprep.subr.bf16.mxu0 0
    %2727 = vmatpush2.bf16.msra.mxu0 0
    %2728 = vmatprep.subr.bf16.mxu0 0
    %2729 = vmatpush2.bf16.msra.mxu0 0
    %2730 = vmatprep.mubr.bf16.mxu0 0
    %2731 = vmatmul.mubr.bf16.gmra.mxu0 %v2655
    %v2732 = vpop.f32.mrf.mxu0
    %v2733 = vadd.f32 %v2602, %v2732
    %v2734 = vpop.f32.mrf.mxu0
    %v2735 = vadd.f32 %v2606, %v2734
    %v2736 = vpop.f32.mrf.mxu0
    %v2737 = vpop.f32.mrf.mxu0
    %2738 = vdwg.mxu0
    %v2739 = vmax.f32 %v2692, 0.0
    %v2740 = vmax.f32 %v2694, 0.0
    %v2741 = vmax.f32 %v2733, 0.0
    %v2742 = vmax.f32 %v2735, 0.0
    %v2743 = vld [vmem:[%s7] sm:$0xf]
    %v2745 = vlaneseq
    %v2746 = vshrl.u32 %v2745, 7
    %v2747 = vsub.s32 0, %v2746
    %v2748 = vrot.slane %v2743, %v2747
    %v2749 = vlaneseq
    %v2750 = vshrl.u32 %v2749, 7
    %v2751 = vsub.s32 1, %v2750
    %v2752 = vrot.slane %v2743, %v2751
    %v2753 = vlaneseq
    %v2754 = vshrl.u32 %v2753, 7
    %v2755 = vsub.s32 2, %v2754
    %v2756 = vrot.slane %v2743, %v2755
    %v2757 = vlaneseq
    %v2758 = vshrl.u32 %v2757, 7
    %v2759 = vsub.s32 3, %v2758
    %v2760 = vrot.slane %v2743, %v2759
    %v2765 = vmul.f32 %v2739, %v2748
    %v2766 = vmul.f32 %v2740, %v2752
    %v2767 = vmul.f32 %v2741, %v2756
    %v2768 = vmul.f32 %v2742, %v2760
    %v2769 = vsel %vm245, %v2765, 0.0
    %v2770 = vsel %vm245, %v2766, 0.0
    %v2771 = vadd.f32 %v2769, %v2770
    %v2772 = vsel %vm245, %v2767, 0.0
    %v2773 = vadd.f32 %v2771, %v2772
    %v2774 = vsel %vm245, %v2768, 0.0
    %v2775 = vadd.f32 %v2773, %v2774
    %2776 = vadd.xlane.f32.xlu0 %v2775
    %v2777 = vpop.xlane.xlu0 %2776
    %s2778 = sld [smem:[#allocation3]]
    %v2779 = vstv %s2778
    %v2780 = vadd.f32 %v2777, %v2779
    %vm2781 = vcmask 1024
    %2782 = vst.msk [vmem:[%s9] sm:$0x3] %vm2781, %v2780
    // Predicated region
    $region50: #{protein_resnet_forward.1} parent=1 // pred_check
      _
    $region51: #{protein_resnet_forward.1} parent=1 // pred_check_branch
      %2784 = sbr.rel (0) target = $region53
    $region52: #{protein_resnet_forward.1} parent=1 // pred_region
      _
    $region53: #{protein_resnet_forward.1} parent=1 // pred_fallthru
      _
    // Predicated region
    $region54: #{protein_resnet_forward.1} parent=1 // pred_check
      _
    $region55: #{protein_resnet_forward.1} parent=1 // pred_check_branch
      %2786 = sbr.rel (0) target = $region57
    $region56: #{protein_resnet_forward.1} parent=1 // pred_region
      _
    $region57: #{protein_resnet_forward.1} parent=1 // pred_fallthru
      _
    %2787 = vsyncpa [#allocation5], 1
    %2788 = vsyncpa [#allocation7], 1

</llo_original>
